<compile_context>
chip_gen: v6e
topology: v6e:2x2x1
jax: 0.10.0
libtpu: 0.0.40
codegen_flags: <defaults>
</compile_context>

<pallas_src>
import math

import jax
import jax.numpy as jnp
from jax.experimental import pallas as pl
from jax.experimental.pallas import tpu as pltpu

# ---------------------------------------------------------------- dimensions
B_EPOCH = 5                      # batch of the raw epoch
T_EPOCH = 30                     # time steps per epoch
F_EPOCH = 9                      # raw features (last one is dropped)
SEC_LEN = 5                      # time steps per section
N_SECTIONS = T_EPOCH // SEC_LEN  # 6
SEC_FEAT = (F_EPOCH - 1) * SEC_LEN   # 40 flattened features per section row

BERT_B = N_SECTIONS              # 6  (== .view(6, 5, 64) leading dim)
BERT_S = B_EPOCH                 # 5
N_ROWS = BERT_B * BERT_S         # 30 rows when the (6,5,64) tensor is flattened
HIDDEN = 64
N_HEADS = 4
HEAD_DIM = HIDDEN // N_HEADS     # 16
INTERMEDIATE = 128
N_LAYERS = 2
LN_EPS = 1e-12

# head-stacked attention layout: each head gets a 32-sublane block (30 data
# rows + 2 zero pad rows) -> 4*32 = 128 stacked rows.
HEAD_ROWS = 32
STACK = N_HEADS * HEAD_ROWS      # 128

# vector-parameter slab layout (rows of a (VEC_ROWS, 128) f32 array)
VROW_GLOB = N_ROWS               # row 30: enc_b | emb_ln_g ; row 31: emb_ln_b
VROW_LAYER = 32                  # first per-layer row
VROWS_PER_LAYER = 6              # bq|bk, bv|bo, ln1g|ln1b, b1, ln2g|ln2b, b2
VEC_ROWS = 48                    # 32 + 2*6 = 44, padded to a multiple of 8


# ---------------------------------------------------------------- in-kernel helpers
def _layernorm(x, g, b):
    mu = jnp.mean(x, axis=-1, keepdims=True)
    var = jnp.mean(jnp.square(x - mu), axis=-1, keepdims=True)
    return (x - mu) * jax.lax.rsqrt(var + LN_EPS) * g + b


def _gelu(x):
    # tanh approximation of BERT's erf-GELU (EUP friendly; ~1e-3 rel. diff)
    c = 0.7978845608028654
    return 0.5 * x * (1.0 + jnp.tanh(c * (x + 0.044715 * x * x * x)))


def _mxu(a, b):
    # bf16 operands on the MXU, f32 accumulation (weights are stored bf16).
    return jnp.dot(a.astype(jnp.bfloat16), b, preferred_element_type=jnp.float32)


# ---------------------------------------------------------------- fused kernel
def bert_eeg_kernel(enc_in_ref, enc_w_ref, vec_ref, wqkv_ref, wo_ref,
                    w1_ref, w2_ref, out_ref, hs_ref):
    # zero the head-stacked scratch once; pad rows must stay exactly zero so
    # masked-out columns can never inject Inf/NaN into the softmax.
    hs_ref[...] = jnp.zeros((STACK, 3 * HEAD_DIM), jnp.float32)

    # ---- section encoder for BOTH epochs: one (60,40)@(40,64) matmul + ReLU
    enc = jnp.maximum(
        _mxu(enc_in_ref[...], enc_w_ref[...])
        + vec_ref[VROW_GLOB:VROW_GLOB + 1, 0:HIDDEN], 0.0)          # (60,64)
    next_enc = enc[N_ROWS:2 * N_ROWS, :]                            # (30,64)

    # ---- BERT embeddings: pre-tiled pos+token embedding + LayerNorm
    x = _layernorm(enc[0:N_ROWS, :] + vec_ref[0:N_ROWS, 0:HIDDEN],
                   vec_ref[VROW_GLOB:VROW_GLOB + 1, HIDDEN:2 * HIDDEN],
                   vec_ref[VROW_GLOB + 1:VROW_GLOB + 2, 0:HIDDEN])

    # ---- (head ∧ section) block-diagonal additive mask, built in-kernel from
    # iota + comparison ladders (no int division, no mask DMA).
    ri = jax.lax.broadcasted_iota(jnp.int32, (STACK, STACK), 0)
    ci = jax.lax.broadcasted_iota(jnp.int32, (STACK, STACK), 1)

    def _blk(idx):
        head = ((idx >= HEAD_ROWS).astype(jnp.int32)
                + (idx >= 2 * HEAD_ROWS).astype(jnp.int32)
                + (idx >= 3 * HEAD_ROWS).astype(jnp.int32))
        rem = idx - head * HEAD_ROWS
        sec = jnp.zeros_like(idx)
        for t in range(SEC_LEN, HEAD_ROWS, SEC_LEN):     # 5,10,...,30
            sec = sec + (rem >= t).astype(jnp.int32)
        return head, sec

    rh, rs = _blk(ri)
    ch, cs = _blk(ci)
    bias = jnp.where((rh == ch) & (rs == cs), 0.0, -1e30).astype(jnp.float32)

    for l in range(N_LAYERS):                            # unrolled (2 layers)
        base = VROW_LAYER + VROWS_PER_LAYER * l

        # fused Q/K/V projection (attention scale folded into wq/bq at init)
        qkv = _mxu(x, wqkv_ref[l])                                   # (30,192)
        q = qkv[:, 0:HIDDEN] + vec_ref[base:base + 1, 0:HIDDEN]
        k = qkv[:, HIDDEN:2 * HIDDEN] + vec_ref[base:base + 1, HIDDEN:2 * HIDDEN]
        v = qkv[:, 2 * HIDDEN:3 * HIDDEN] + vec_ref[base + 1:base + 2, 0:HIDDEN]

        # head-stack onto sublanes: head h occupies rows [32h, 32h+30)
        for h in range(N_HEADS):                         # unrolled (4 heads)
            r0 = h * HEAD_ROWS
            sl = slice(h * HEAD_DIM, (h + 1) * HEAD_DIM)
            hs_ref[r0:r0 + N_ROWS, 0:HEAD_DIM] = q[:, sl]
            hs_ref[r0:r0 + N_ROWS, HEAD_DIM:2 * HEAD_DIM] = k[:, sl]
            hs_ref[r0:r0 + N_ROWS, 2 * HEAD_DIM:3 * HEAD_DIM] = v[:, sl]
        q_hs = hs_ref[:, 0:HEAD_DIM].astype(jnp.bfloat16)            # (128,16)
        k_hs = hs_ref[:, HEAD_DIM:2 * HEAD_DIM].astype(jnp.bfloat16)
        v_hs = hs_ref[:, 2 * HEAD_DIM:3 * HEAD_DIM].astype(jnp.bfloat16)

        # one score matmul, one softmax, one PV matmul for all heads/sections
        s = jax.lax.dot_general(q_hs, k_hs, (((1,), (1,)), ((), ())),
                                preferred_element_type=jnp.float32) + bias
        s = s - jnp.max(s, axis=-1, keepdims=True)
        p = jnp.exp(s)
        p = p * pl.reciprocal(jnp.sum(p, axis=-1, keepdims=True), approx=True)
        ctx_hs = jnp.dot(p.astype(jnp.bfloat16), v_hs,
                         preferred_element_type=jnp.float32)          # (128,16)

        # fold heads back to lanes, single output projection
        ctx = jnp.concatenate(
            [ctx_hs[h * HEAD_ROWS:h * HEAD_ROWS + N_ROWS, :]
             for h in range(N_HEADS)], axis=-1)                       # (30,64)
        attn = _mxu(ctx, wo_ref[l]) + vec_ref[base + 1:base + 2, HIDDEN:2 * HIDDEN]

        h1 = _layernorm(x + attn,
                        vec_ref[base + 2:base + 3, 0:HIDDEN],
                        vec_ref[base + 2:base + 3, HIDDEN:2 * HIDDEN])
        ff = _gelu(_mxu(h1, w1_ref[l]) + vec_ref[base + 3:base + 4, 0:INTERMEDIATE])
        ff = _mxu(ff, w2_ref[l]) + vec_ref[base + 5:base + 6, 0:HIDDEN]
        x = _layernorm(h1 + ff,
                       vec_ref[base + 4:base + 5, 0:HIDDEN],
                       vec_ref[base + 4:base + 5, HIDDEN:2 * HIDDEN])

    # lane-dense single (30,128) store: [ bert last_hidden | next_epoch_enc ]
    out_ref[...] = jnp.concatenate([x, next_enc], axis=-1)


# ---------------------------------------------------------------- wrapper
def _vmem():
    return pl.BlockSpec(memory_space=pltpu.MemorySpace.VMEM)


def section_rows(epoch):
    # Mirrors BERT_EEG.section_epoch: drop last feature, split time into six
    # non-overlapping windows of 5 (stride 5).  With B=5 the PyTorch padding
    # branch (`epoch.size(0) % 5 != 0`) is never taken.
    e = epoch[:, :, :-1]                                      # (5, 30, 8)
    e = e.reshape(B_EPOCH, N_SECTIONS, SEC_LEN, F_EPOCH - 1)  # (5, 6, 5, 8)
    e = jnp.transpose(e, (1, 0, 2, 3))                        # (6, 5, 5, 8) == torch.stack
    return e.reshape(N_ROWS, SEC_FEAT)                        # (30, 40)


def bert_eeg_forward(epoch, next_epoch, params):
    # both epochs' section rows stacked -> one encoder matmul in-kernel
    enc_in = jnp.concatenate([section_rows(epoch), section_rows(next_epoch)], axis=0)

    out = pl.pallas_call(
        bert_eeg_kernel,
        out_shape=jax.ShapeDtypeStruct((N_ROWS, 2 * HIDDEN), jnp.float32),
        in_specs=[_vmem()] * 7,
        out_specs=_vmem(),
        scratch_shapes=[pltpu.VMEM((STACK, 3 * HEAD_DIM), jnp.float32)],
    )(enc_in, params["enc_w"], params["vec"], params["wqkv"],
      params["wo"], params["w1"], params["w2"])

    # == torch .view(6, 5, 64)
    bert_out = out[:, 0:HIDDEN].reshape(BERT_B, BERT_S, HIDDEN)
    next_enc = out[:, HIDDEN:2 * HIDDEN].reshape(BERT_B, BERT_S, HIDDEN)
    return bert_out, next_enc


# ---------------------------------------------------------------- deterministic params
def init_params(key):
    keys = iter(jax.random.split(key, 64))

    def nrm(shape, s=0.02):
        return (s * jax.random.normal(next(keys), shape)).astype(jnp.float32)

    zeros = lambda shape: jnp.zeros(shape, jnp.float32)
    ones = lambda shape: jnp.ones(shape, jnp.float32)

    scale = 1.0 / math.sqrt(HEAD_DIM)

    enc_w = nrm((SEC_FEAT, HIDDEN), 0.1)
    enc_b = zeros((HIDDEN,))
    pos_emb = nrm((BERT_S, HIDDEN))
    tok_emb = nrm((1, HIDDEN))
    emb_g, emb_b = ones((HIDDEN,)), zeros((HIDDEN,))

    # ---- one packed (48,128) vector slab (biases, LN params, pos+token emb)
    vec = jnp.zeros((VEC_ROWS, 2 * HIDDEN), jnp.float32)
    vec = vec.at[0:N_ROWS, 0:HIDDEN].set(jnp.tile(pos_emb + tok_emb, (N_SECTIONS, 1)))
    vec = vec.at[VROW_GLOB, 0:HIDDEN].set(enc_b)
    vec = vec.at[VROW_GLOB, HIDDEN:].set(emb_g)
    vec = vec.at[VROW_GLOB + 1, 0:HIDDEN].set(emb_b)

    wqkv_l, wo_l, w1_l, w2_l = [], [], [], []
    for l in range(N_LAYERS):
        wq, wk, wv, wo = (nrm((HIDDEN, HIDDEN)) for _ in range(4))
        w1, w2 = nrm((HIDDEN, INTERMEDIATE)), nrm((INTERMEDIATE, HIDDEN))
        bq, bk, bv, bo = (zeros((HIDDEN,)) for _ in range(4))
        ln1g, ln1b = ones((HIDDEN,)), zeros((HIDDEN,))
        b1, b2 = zeros((INTERMEDIATE,)), zeros((HIDDEN,))
        ln2g, ln2b = ones((HIDDEN,)), zeros((HIDDEN,))

        # attention scale folded into wq / bq; fused QKV weight slab
        wqkv_l.append(jnp.concatenate([wq * scale, wk, wv], axis=1))  # (64,192)
        wo_l.append(wo)
        w1_l.append(w1)
        w2_l.append(w2)

        base = VROW_LAYER + VROWS_PER_LAYER * l
        vec = vec.at[base + 0, 0:HIDDEN].set(bq * scale)
        vec = vec.at[base + 0, HIDDEN:].set(bk)
        vec = vec.at[base + 1, 0:HIDDEN].set(bv)
        vec = vec.at[base + 1, HIDDEN:].set(bo)
        vec = vec.at[base + 2, 0:HIDDEN].set(ln1g)
        vec = vec.at[base + 2, HIDDEN:].set(ln1b)
        vec = vec.at[base + 3, 0:INTERMEDIATE].set(b1)
        vec = vec.at[base + 4, 0:HIDDEN].set(ln2g)
        vec = vec.at[base + 4, HIDDEN:].set(ln2b)
        vec = vec.at[base + 5, 0:HIDDEN].set(b2)

    return {
        "vec": vec,                                        # (48,128)  f32
        "enc_w": enc_w.astype(jnp.bfloat16),               # (40,64)   bf16
        "wqkv": jnp.stack(wqkv_l).astype(jnp.bfloat16),    # (2,64,192) bf16
        "wo": jnp.stack(wo_l).astype(jnp.bfloat16),        # (2,64,64)  bf16
        "w1": jnp.stack(w1_l).astype(jnp.bfloat16),        # (2,64,128) bf16
        "w2": jnp.stack(w2_l).astype(jnp.bfloat16),        # (2,128,64) bf16
    }


# ---------------------------------------------------------------- main
if __name__ == "__main__":
    key = jax.random.PRNGKey(0)
    k_ep, k_next, k_params = jax.random.split(key, 3)

    epoch = jax.random.normal(k_ep, (B_EPOCH, T_EPOCH, F_EPOCH), jnp.float32)
    next_epoch = jax.random.normal(k_next, (B_EPOCH, T_EPOCH, F_EPOCH), jnp.float32)
    params = init_params(k_params)

    # TODO(synk): PyTorch padding branch (epoch.size(0) % 5 != 0) not implemented;
    # kernel is specialized to the module's hard-wired (6, 5, 64) view.
    fwd = jax.jit(bert_eeg_forward)
    bert_output, next_epoch_encoding = fwd(epoch, next_epoch, params)
    bert_output, next_epoch_encoding = jax.block_until_ready(
        (bert_output, next_epoch_encoding))

    assert bert_output.shape == (BERT_B, BERT_S, HIDDEN)           # (6, 5, 64)
    assert next_epoch_encoding.shape == (BERT_B, BERT_S, HIDDEN)   # (6, 5, 64)
    assert bool(jnp.all(jnp.isfinite(bert_output)))
    assert bool(jnp.all(jnp.isfinite(next_epoch_encoding)))
    print("KERNEL_OK")
</pallas_src>

<mosaic_0001>
module attributes {stable_mosaic.version = 11 : i64} {
  func.func @bert_eeg_kernel(%arg0: memref<60x40xf32, #tpu.memory_space<vmem>>, %arg1: memref<40x64xbf16, #tpu.memory_space<vmem>>, %arg2: memref<48x128xf32, #tpu.memory_space<vmem>>, %arg3: memref<2x64x192xbf16, #tpu.memory_space<vmem>>, %arg4: memref<2x64x64xbf16, #tpu.memory_space<vmem>>, %arg5: memref<2x64x128xbf16, #tpu.memory_space<vmem>>, %arg6: memref<2x128x64xbf16, #tpu.memory_space<vmem>>, %arg7: memref<30x128xf32, #tpu.memory_space<vmem>>, %arg8: memref<128x48xf32, #tpu.memory_space<vmem>>) attributes {dimension_semantics = [], scalar_prefetch = 0 : i64, scratch_operands = 1 : i64, tpu.core_type = #tpu.core_type<tc>} {
    %cst = arith.constant 0.000000e+00 : f32
    %0 = vector.broadcast %cst : f32 to vector<128x48xf32>
    %c0 = arith.constant 0 : index
    %c0_0 = arith.constant 0 : index
    %1 = vector.load %arg8[%c0, %c0_0] : memref<128x48xf32, #tpu.memory_space<vmem>>, vector<128x48xf32>
    tpu.vector_store %arg8[%c0, %c0_0], %0 {strides = array<i32>} : memref<128x48xf32, #tpu.memory_space<vmem>>, vector<128x48xf32>,
    %c0_1 = arith.constant 0 : index
    %c0_2 = arith.constant 0 : index
    %2 = vector.load %arg0[%c0_1, %c0_2] : memref<60x40xf32, #tpu.memory_space<vmem>>, vector<60x40xf32>
    %c0_3 = arith.constant 0 : index
    %c0_4 = arith.constant 0 : index
    %3 = vector.load %arg1[%c0_3, %c0_4] : memref<40x64xbf16, #tpu.memory_space<vmem>>, vector<40x64xbf16>
    %4 = arith.truncf %2 : vector<60x40xf32> to vector<60x40xbf16>
    %cst_5 = arith.constant dense<0.000000e+00> : vector<60x64xf32>
    %5 = tpu.matmul %4, %3, %cst_5 {dimension_numbers = #tpu.dot_dimension_numbers<[1], [0], [0], [1], [0, 0, 1, 1], [], []>} : vector<60x40xbf16>, vector<40x64xbf16>, vector<60x64xf32> -> vector<60x64xf32>
    %c30 = arith.constant 30 : index
    %c0_6 = arith.constant 0 : index
    %6 = vector.load %arg2[%c30, %c0_6] : memref<48x128xf32, #tpu.memory_space<vmem>>, vector<1x64xf32>
    %7 = vector.broadcast %6 : vector<1x64xf32> to vector<60x64xf32>
    %8 = arith.addf %5, %7 : vector<60x64xf32>
    %cst_7 = arith.constant 0.000000e+00 : f32
    %9 = vector.broadcast %cst_7 : f32 to vector<60x64xf32>
    %10 = arith.maximumf %8, %9 : vector<60x64xf32>
    %11 = vector.extract_strided_slice %10 {offsets = [30, 0], sizes = [30, 64], strides = [1, 1]} : vector<60x64xf32> to vector<30x64xf32>
    %12 = vector.extract_strided_slice %10 {offsets = [0, 0], sizes = [30, 64], strides = [1, 1]} : vector<60x64xf32> to vector<30x64xf32>
    %c0_8 = arith.constant 0 : index
    %c0_9 = arith.constant 0 : index
    %13 = vector.load %arg2[%c0_8, %c0_9] : memref<48x128xf32, #tpu.memory_space<vmem>>, vector<30x64xf32>
    %14 = arith.addf %12, %13 : vector<30x64xf32>
    %c30_10 = arith.constant 30 : index
    %c64 = arith.constant 64 : index
    %15 = vector.load %arg2[%c30_10, %c64] : memref<48x128xf32, #tpu.memory_space<vmem>>, vector<1x64xf32>
    %c31 = arith.constant 31 : index
    %c0_11 = arith.constant 0 : index
    %16 = vector.load %arg2[%c31, %c0_11] : memref<48x128xf32, #tpu.memory_space<vmem>>, vector<1x64xf32>
    %cst_12 = arith.constant dense<0.000000e+00> : vector<30xf32>
    %17 = vector.multi_reduction <add>, %14, %cst_12 [1] : vector<30x64xf32> to vector<30xf32>
    %18 = vector.shape_cast %17 : vector<30xf32> to vector<30x1xf32>
    %cst_13 = arith.constant 6.400000e+01 : f32
    %19 = vector.broadcast %cst_13 : f32 to vector<30x1xf32>
    %20 = arith.divf %18, %19 : vector<30x1xf32>
    %21 = vector.broadcast %20 : vector<30x1xf32> to vector<30x64xf32>
    %22 = arith.subf %14, %21 : vector<30x64xf32>
    %23 = arith.mulf %22, %22 : vector<30x64xf32>
    %cst_14 = arith.constant dense<0.000000e+00> : vector<30xf32>
    %24 = vector.multi_reduction <add>, %23, %cst_14 [1] : vector<30x64xf32> to vector<30xf32>
    %25 = vector.shape_cast %24 : vector<30xf32> to vector<30x1xf32>
    %cst_15 = arith.constant 6.400000e+01 : f32
    %26 = vector.broadcast %cst_15 : f32 to vector<30x1xf32>
    %27 = arith.divf %25, %26 : vector<30x1xf32>
    %28 = vector.broadcast %20 : vector<30x1xf32> to vector<30x64xf32>
    %29 = arith.subf %14, %28 : vector<30x64xf32>
    %cst_16 = arith.constant 9.99999996E-13 : f32
    %30 = vector.broadcast %cst_16 : f32 to vector<30x1xf32>
    %31 = arith.addf %27, %30 : vector<30x1xf32>
    %32 = math.rsqrt %31 : vector<30x1xf32>
    %33 = vector.broadcast %32 : vector<30x1xf32> to vector<30x64xf32>
    %34 = arith.mulf %29, %33 : vector<30x64xf32>
    %35 = vector.broadcast %15 : vector<1x64xf32> to vector<30x64xf32>
    %36 = arith.mulf %34, %35 : vector<30x64xf32>
    %37 = vector.broadcast %16 : vector<1x64xf32> to vector<30x64xf32>
    %38 = arith.addf %36, %37 : vector<30x64xf32>
    %39 = tpu.iota {dimensions = array<i32: 0>} : vector<128x128xi32>
    %40 = tpu.iota {dimensions = array<i32: 1>} : vector<128x128xi32>
    %c32_i32 = arith.constant 32 : i32
    %41 = vector.broadcast %c32_i32 : i32 to vector<128x128xi32>
    %42 = arith.cmpi sge, %39, %41 : vector<128x128xi32>
    %43 = arith.extui %42 : vector<128x128xi1> to vector<128x128xi32>
    %c64_i32 = arith.constant 64 : i32
    %44 = vector.broadcast %c64_i32 : i32 to vector<128x128xi32>
    %45 = arith.cmpi sge, %39, %44 : vector<128x128xi32>
    %46 = arith.extui %45 : vector<128x128xi1> to vector<128x128xi32>
    %47 = arith.addi %43, %46 : vector<128x128xi32>
    %c96_i32 = arith.constant 96 : i32
    %48 = vector.broadcast %c96_i32 : i32 to vector<128x128xi32>
    %49 = arith.cmpi sge, %39, %48 : vector<128x128xi32>
    %50 = arith.extui %49 : vector<128x128xi1> to vector<128x128xi32>
    %51 = arith.addi %47, %50 : vector<128x128xi32>
    %c32_i32_17 = arith.constant 32 : i32
    %52 = vector.broadcast %c32_i32_17 : i32 to vector<128x128xi32>
    %53 = arith.muli %51, %52 : vector<128x128xi32>
    %54 = arith.subi %39, %53 : vector<128x128xi32>
    %c0_i32 = arith.constant 0 : i32
    %55 = vector.broadcast %c0_i32 : i32 to vector<128x128xi32>
    %c5_i32 = arith.constant 5 : i32
    %56 = vector.broadcast %c5_i32 : i32 to vector<128x128xi32>
    %57 = arith.cmpi sge, %54, %56 : vector<128x128xi32>
    %58 = arith.extui %57 : vector<128x128xi1> to vector<128x128xi32>
    %59 = arith.addi %55, %58 : vector<128x128xi32>
    %c10_i32 = arith.constant 10 : i32
    %60 = vector.broadcast %c10_i32 : i32 to vector<128x128xi32>
    %61 = arith.cmpi sge, %54, %60 : vector<128x128xi32>
    %62 = arith.extui %61 : vector<128x128xi1> to vector<128x128xi32>
    %63 = arith.addi %59, %62 : vector<128x128xi32>
    %c15_i32 = arith.constant 15 : i32
    %64 = vector.broadcast %c15_i32 : i32 to vector<128x128xi32>
    %65 = arith.cmpi sge, %54, %64 : vector<128x128xi32>
    %66 = arith.extui %65 : vector<128x128xi1> to vector<128x128xi32>
    %67 = arith.addi %63, %66 : vector<128x128xi32>
    %c20_i32 = arith.constant 20 : i32
    %68 = vector.broadcast %c20_i32 : i32 to vector<128x128xi32>
    %69 = arith.cmpi sge, %54, %68 : vector<128x128xi32>
    %70 = arith.extui %69 : vector<128x128xi1> to vector<128x128xi32>
    %71 = arith.addi %67, %70 : vector<128x128xi32>
    %c25_i32 = arith.constant 25 : i32
    %72 = vector.broadcast %c25_i32 : i32 to vector<128x128xi32>
    %73 = arith.cmpi sge, %54, %72 : vector<128x128xi32>
    %74 = arith.extui %73 : vector<128x128xi1> to vector<128x128xi32>
    %75 = arith.addi %71, %74 : vector<128x128xi32>
    %c30_i32 = arith.constant 30 : i32
    %76 = vector.broadcast %c30_i32 : i32 to vector<128x128xi32>
    %77 = arith.cmpi sge, %54, %76 : vector<128x128xi32>
    %78 = arith.extui %77 : vector<128x128xi1> to vector<128x128xi32>
    %79 = arith.addi %75, %78 : vector<128x128xi32>
    %c32_i32_18 = arith.constant 32 : i32
    %80 = vector.broadcast %c32_i32_18 : i32 to vector<128x128xi32>
    %81 = arith.cmpi sge, %40, %80 : vector<128x128xi32>
    %82 = arith.extui %81 : vector<128x128xi1> to vector<128x128xi32>
    %c64_i32_19 = arith.constant 64 : i32
    %83 = vector.broadcast %c64_i32_19 : i32 to vector<128x128xi32>
    %84 = arith.cmpi sge, %40, %83 : vector<128x128xi32>
    %85 = arith.extui %84 : vector<128x128xi1> to vector<128x128xi32>
    %86 = arith.addi %82, %85 : vector<128x128xi32>
    %c96_i32_20 = arith.constant 96 : i32
    %87 = vector.broadcast %c96_i32_20 : i32 to vector<128x128xi32>
    %88 = arith.cmpi sge, %40, %87 : vector<128x128xi32>
    %89 = arith.extui %88 : vector<128x128xi1> to vector<128x128xi32>
    %90 = arith.addi %86, %89 : vector<128x128xi32>
    %c32_i32_21 = arith.constant 32 : i32
    %91 = vector.broadcast %c32_i32_21 : i32 to vector<128x128xi32>
    %92 = arith.muli %90, %91 : vector<128x128xi32>
    %93 = arith.subi %40, %92 : vector<128x128xi32>
    %c0_i32_22 = arith.constant 0 : i32
    %94 = vector.broadcast %c0_i32_22 : i32 to vector<128x128xi32>
    %c5_i32_23 = arith.constant 5 : i32
    %95 = vector.broadcast %c5_i32_23 : i32 to vector<128x128xi32>
    %96 = arith.cmpi sge, %93, %95 : vector<128x128xi32>
    %97 = arith.extui %96 : vector<128x128xi1> to vector<128x128xi32>
    %98 = arith.addi %94, %97 : vector<128x128xi32>
    %c10_i32_24 = arith.constant 10 : i32
    %99 = vector.broadcast %c10_i32_24 : i32 to vector<128x128xi32>
    %100 = arith.cmpi sge, %93, %99 : vector<128x128xi32>
    %101 = arith.extui %100 : vector<128x128xi1> to vector<128x128xi32>
    %102 = arith.addi %98, %101 : vector<128x128xi32>
    %c15_i32_25 = arith.constant 15 : i32
    %103 = vector.broadcast %c15_i32_25 : i32 to vector<128x128xi32>
    %104 = arith.cmpi sge, %93, %103 : vector<128x128xi32>
    %105 = arith.extui %104 : vector<128x128xi1> to vector<128x128xi32>
    %106 = arith.addi %102, %105 : vector<128x128xi32>
    %c20_i32_26 = arith.constant 20 : i32
    %107 = vector.broadcast %c20_i32_26 : i32 to vector<128x128xi32>
    %108 = arith.cmpi sge, %93, %107 : vector<128x128xi32>
    %109 = arith.extui %108 : vector<128x128xi1> to vector<128x128xi32>
    %110 = arith.addi %106, %109 : vector<128x128xi32>
    %c25_i32_27 = arith.constant 25 : i32
    %111 = vector.broadcast %c25_i32_27 : i32 to vector<128x128xi32>
    %112 = arith.cmpi sge, %93, %111 : vector<128x128xi32>
    %113 = arith.extui %112 : vector<128x128xi1> to vector<128x128xi32>
    %114 = arith.addi %110, %113 : vector<128x128xi32>
    %c30_i32_28 = arith.constant 30 : i32
    %115 = vector.broadcast %c30_i32_28 : i32 to vector<128x128xi32>
    %116 = arith.cmpi sge, %93, %115 : vector<128x128xi32>
    %117 = arith.extui %116 : vector<128x128xi1> to vector<128x128xi32>
    %118 = arith.addi %114, %117 : vector<128x128xi32>
    %119 = arith.cmpi eq, %51, %90 : vector<128x128xi32>
    %120 = arith.cmpi eq, %79, %118 : vector<128x128xi32>
    %121 = arith.andi %119, %120 : vector<128x128xi1>
    %cst_29 = arith.constant 0.000000e+00 : f32
    %cst_30 = arith.constant -1.000000e+30 : f32
    %122 = vector.broadcast %cst_29 : f32 to vector<128x128xf32>
    %123 = vector.broadcast %cst_30 : f32 to vector<128x128xf32>
    %124 = arith.select %121, %122, %123 : vector<128x128xi1>, vector<128x128xf32>
    %c0_31 = arith.constant 0 : index
    %c0_32 = arith.constant 0 : index
    %c0_33 = arith.constant 0 : index
    %125 = vector.load %arg3[%c0_31, %c0_32, %c0_33] : memref<2x64x192xbf16, #tpu.memory_space<vmem>>, vector<1x64x192xbf16>
    %126 = vector.shape_cast %125 : vector<1x64x192xbf16> to vector<64x192xbf16>
    %127 = arith.truncf %38 : vector<30x64xf32> to vector<30x64xbf16>
    %cst_34 = arith.constant dense<0.000000e+00> : vector<30x192xf32>
    %128 = tpu.matmul %127, %126, %cst_34 {dimension_numbers = #tpu.dot_dimension_numbers<[1], [0], [0], [1], [0, 0, 1, 1], [], []>} : vector<30x64xbf16>, vector<64x192xbf16>, vector<30x192xf32> -> vector<30x192xf32>
    %129 = vector.extract_strided_slice %128 {offsets = [0, 0], sizes = [30, 64], strides = [1, 1]} : vector<30x192xf32> to vector<30x64xf32>
    %c32 = arith.constant 32 : index
    %c0_35 = arith.constant 0 : index
    %130 = vector.load %arg2[%c32, %c0_35] : memref<48x128xf32, #tpu.memory_space<vmem>>, vector<1x64xf32>
    %131 = vector.broadcast %130 : vector<1x64xf32> to vector<30x64xf32>
    %132 = arith.addf %129, %131 : vector<30x64xf32>
    %133 = vector.extract_strided_slice %128 {offsets = [0, 64], sizes = [30, 64], strides = [1, 1]} : vector<30x192xf32> to vector<30x64xf32>
    %c32_36 = arith.constant 32 : index
    %c64_37 = arith.constant 64 : index
    %134 = vector.load %arg2[%c32_36, %c64_37] : memref<48x128xf32, #tpu.memory_space<vmem>>, vector<1x64xf32>
    %135 = vector.broadcast %134 : vector<1x64xf32> to vector<30x64xf32>
    %136 = arith.addf %133, %135 : vector<30x64xf32>
    %137 = vector.extract_strided_slice %128 {offsets = [0, 128], sizes = [30, 64], strides = [1, 1]} : vector<30x192xf32> to vector<30x64xf32>
    %c33 = arith.constant 33 : index
    %c0_38 = arith.constant 0 : index
    %138 = vector.load %arg2[%c33, %c0_38] : memref<48x128xf32, #tpu.memory_space<vmem>>, vector<1x64xf32>
    %139 = vector.broadcast %138 : vector<1x64xf32> to vector<30x64xf32>
    %140 = arith.addf %137, %139 : vector<30x64xf32>
    %141 = vector.extract_strided_slice %132 {offsets = [0, 0], sizes = [30, 16], strides = [1, 1]} : vector<30x64xf32> to vector<30x16xf32>
    %c0_39 = arith.constant 0 : index
    %c0_40 = arith.constant 0 : index
    %142 = vector.load %arg8[%c0_39, %c0_40] : memref<128x48xf32, #tpu.memory_space<vmem>>, vector<30x16xf32>
    tpu.vector_store %arg8[%c0_39, %c0_40], %141 {strides = array<i32>} : memref<128x48xf32, #tpu.memory_space<vmem>>, vector<30x16xf32>,
    %143 = vector.extract_strided_slice %136 {offsets = [0, 0], sizes = [30, 16], strides = [1, 1]} : vector<30x64xf32> to vector<30x16xf32>
    %c0_41 = arith.constant 0 : index
    %c16 = arith.constant 16 : index
    %144 = vector.load %arg8[%c0_41, %c16] : memref<128x48xf32, #tpu.memory_space<vmem>>, vector<30x16xf32>
    tpu.vector_store %arg8[%c0_41, %c16], %143 {strides = array<i32>} : memref<128x48xf32, #tpu.memory_space<vmem>>, vector<30x16xf32>,
    %145 = vector.extract_strided_slice %140 {offsets = [0, 0], sizes = [30, 16], strides = [1, 1]} : vector<30x64xf32> to vector<30x16xf32>
    %c0_42 = arith.constant 0 : index
    %c32_43 = arith.constant 32 : index
    %146 = vector.load %arg8[%c0_42, %c32_43] : memref<128x48xf32, #tpu.memory_space<vmem>>, vector<30x16xf32>
    tpu.vector_store %arg8[%c0_42, %c32_43], %145 {strides = array<i32>} : memref<128x48xf32, #tpu.memory_space<vmem>>, vector<30x16xf32>,
    %147 = vector.extract_strided_slice %132 {offsets = [0, 16], sizes = [30, 16], strides = [1, 1]} : vector<30x64xf32> to vector<30x16xf32>
    %c32_44 = arith.constant 32 : index
    %c0_45 = arith.constant 0 : index
    %148 = vector.load %arg8[%c32_44, %c0_45] : memref<128x48xf32, #tpu.memory_space<vmem>>, vector<30x16xf32>
    tpu.vector_store %arg8[%c32_44, %c0_45], %147 {strides = array<i32>} : memref<128x48xf32, #tpu.memory_space<vmem>>, vector<30x16xf32>,
    %149 = vector.extract_strided_slice %136 {offsets = [0, 16], sizes = [30, 16], strides = [1, 1]} : vector<30x64xf32> to vector<30x16xf32>
    %c32_46 = arith.constant 32 : index
    %c16_47 = arith.constant 16 : index
    %150 = vector.load %arg8[%c32_46, %c16_47] : memref<128x48xf32, #tpu.memory_space<vmem>>, vector<30x16xf32>
    tpu.vector_store %arg8[%c32_46, %c16_47], %149 {strides = array<i32>} : memref<128x48xf32, #tpu.memory_space<vmem>>, vector<30x16xf32>,
    %151 = vector.extract_strided_slice %140 {offsets = [0, 16], sizes = [30, 16], strides = [1, 1]} : vector<30x64xf32> to vector<30x16xf32>
    %c32_48 = arith.constant 32 : index
    %c32_49 = arith.constant 32 : index
    %152 = vector.load %arg8[%c32_48, %c32_49] : memref<128x48xf32, #tpu.memory_space<vmem>>, vector<30x16xf32>
    tpu.vector_store %arg8[%c32_48, %c32_49], %151 {strides = array<i32>} : memref<128x48xf32, #tpu.memory_space<vmem>>, vector<30x16xf32>,
    %153 = vector.extract_strided_slice %132 {offsets = [0, 32], sizes = [30, 16], strides = [1, 1]} : vector<30x64xf32> to vector<30x16xf32>
    %c64_50 = arith.constant 64 : index
    %c0_51 = arith.constant 0 : index
    %154 = vector.load %arg8[%c64_50, %c0_51] : memref<128x48xf32, #tpu.memory_space<vmem>>, vector<30x16xf32>
    tpu.vector_store %arg8[%c64_50, %c0_51], %153 {strides = array<i32>} : memref<128x48xf32, #tpu.memory_space<vmem>>, vector<30x16xf32>,
    %155 = vector.extract_strided_slice %136 {offsets = [0, 32], sizes = [30, 16], strides = [1, 1]} : vector<30x64xf32> to vector<30x16xf32>
    %c64_52 = arith.constant 64 : index
    %c16_53 = arith.constant 16 : index
    %156 = vector.load %arg8[%c64_52, %c16_53] : memref<128x48xf32, #tpu.memory_space<vmem>>, vector<30x16xf32>
    tpu.vector_store %arg8[%c64_52, %c16_53], %155 {strides = array<i32>} : memref<128x48xf32, #tpu.memory_space<vmem>>, vector<30x16xf32>,
    %157 = vector.extract_strided_slice %140 {offsets = [0, 32], sizes = [30, 16], strides = [1, 1]} : vector<30x64xf32> to vector<30x16xf32>
    %c64_54 = arith.constant 64 : index
    %c32_55 = arith.constant 32 : index
    %158 = vector.load %arg8[%c64_54, %c32_55] : memref<128x48xf32, #tpu.memory_space<vmem>>, vector<30x16xf32>
    tpu.vector_store %arg8[%c64_54, %c32_55], %157 {strides = array<i32>} : memref<128x48xf32, #tpu.memory_space<vmem>>, vector<30x16xf32>,
    %159 = vector.extract_strided_slice %132 {offsets = [0, 48], sizes = [30, 16], strides = [1, 1]} : vector<30x64xf32> to vector<30x16xf32>
    %c96 = arith.constant 96 : index
    %c0_56 = arith.constant 0 : index
    %160 = vector.load %arg8[%c96, %c0_56] : memref<128x48xf32, #tpu.memory_space<vmem>>, vector<30x16xf32>
    tpu.vector_store %arg8[%c96, %c0_56], %159 {strides = array<i32>} : memref<128x48xf32, #tpu.memory_space<vmem>>, vector<30x16xf32>,
    %161 = vector.extract_strided_slice %136 {offsets = [0, 48], sizes = [30, 16], strides = [1, 1]} : vector<30x64xf32> to vector<30x16xf32>
    %c96_57 = arith.constant 96 : index
    %c16_58 = arith.constant 16 : index
    %162 = vector.load %arg8[%c96_57, %c16_58] : memref<128x48xf32, #tpu.memory_space<vmem>>, vector<30x16xf32>
    tpu.vector_store %arg8[%c96_57, %c16_58], %161 {strides = array<i32>} : memref<128x48xf32, #tpu.memory_space<vmem>>, vector<30x16xf32>,
    %163 = vector.extract_strided_slice %140 {offsets = [0, 48], sizes = [30, 16], strides = [1, 1]} : vector<30x64xf32> to vector<30x16xf32>
    %c96_59 = arith.constant 96 : index
    %c32_60 = arith.constant 32 : index
    %164 = vector.load %arg8[%c96_59, %c32_60] : memref<128x48xf32, #tpu.memory_space<vmem>>, vector<30x16xf32>
    tpu.vector_store %arg8[%c96_59, %c32_60], %163 {strides = array<i32>} : memref<128x48xf32, #tpu.memory_space<vmem>>, vector<30x16xf32>,
    %c0_61 = arith.constant 0 : index
    %c0_62 = arith.constant 0 : index
    %165 = vector.load %arg8[%c0_61, %c0_62] : memref<128x48xf32, #tpu.memory_space<vmem>>, vector<128x16xf32>
    %166 = arith.truncf %165 : vector<128x16xf32> to vector<128x16xbf16>
    %c0_63 = arith.constant 0 : index
    %c16_64 = arith.constant 16 : index
    %167 = vector.load %arg8[%c0_63, %c16_64] : memref<128x48xf32, #tpu.memory_space<vmem>>, vector<128x16xf32>
    %168 = arith.truncf %167 : vector<128x16xf32> to vector<128x16xbf16>
    %c0_65 = arith.constant 0 : index
    %c32_66 = arith.constant 32 : index
    %169 = vector.load %arg8[%c0_65, %c32_66] : memref<128x48xf32, #tpu.memory_space<vmem>>, vector<128x16xf32>
    %170 = arith.truncf %169 : vector<128x16xf32> to vector<128x16xbf16>
    %cst_67 = arith.constant dense<0.000000e+00> : vector<128x128xf32>
    %171 = tpu.matmul %166, %168, %cst_67 {dimension_numbers = #tpu.dot_dimension_numbers<[1], [1], [0], [0], [0, 0, 1, 0], [], []>} : vector<128x16xbf16>, vector<128x16xbf16>, vector<128x128xf32> -> vector<128x128xf32>
    %172 = arith.addf %171, %124 : vector<128x128xf32>
    %cst_68 = arith.constant dense<0xFF800000> : vector<128xf32>
    %173 = vector.multi_reduction <maximumf>, %172, %cst_68 [1] : vector<128x128xf32> to vector<128xf32>
    %174 = vector.shape_cast %173 : vector<128xf32> to vector<128x1xf32>
    %175 = vector.broadcast %174 : vector<128x1xf32> to vector<128x128xf32>
    %176 = arith.subf %172, %175 : vector<128x128xf32>
    %177 = math.exp %176 : vector<128x128xf32>
    %cst_69 = arith.constant dense<0.000000e+00> : vector<128xf32>
    %178 = vector.multi_reduction <add>, %177, %cst_69 [1] : vector<128x128xf32> to vector<128xf32>
    %179 = vector.shape_cast %178 : vector<128xf32> to vector<128x1xf32>
    %180 = tpu.reciprocal %179 {approx = true} : vector<128x1xf32> -> vector<128x1xf32>
    %181 = vector.broadcast %180 : vector<128x1xf32> to vector<128x128xf32>
    %182 = arith.mulf %177, %181 : vector<128x128xf32>
    %183 = arith.truncf %182 : vector<128x128xf32> to vector<128x128xbf16>
    %cst_70 = arith.constant dense<0.000000e+00> : vector<128x16xf32>
    %184 = tpu.matmul %183, %170, %cst_70 {dimension_numbers = #tpu.dot_dimension_numbers<[1], [0], [0], [1], [0, 0, 1, 1], [], []>} : vector<128x128xbf16>, vector<128x16xbf16>, vector<128x16xf32> -> vector<128x16xf32>
    %185 = vector.extract_strided_slice %184 {offsets = [0, 0], sizes = [30, 16], strides = [1, 1]} : vector<128x16xf32> to vector<30x16xf32>
    %186 = vector.extract_strided_slice %184 {offsets = [32, 0], sizes = [30, 16], strides = [1, 1]} : vector<128x16xf32> to vector<30x16xf32>
    %187 = vector.extract_strided_slice %184 {offsets = [64, 0], sizes = [30, 16], strides = [1, 1]} : vector<128x16xf32> to vector<30x16xf32>
    %188 = vector.extract_strided_slice %184 {offsets = [96, 0], sizes = [30, 16], strides = [1, 1]} : vector<128x16xf32> to vector<30x16xf32>
    %189 = tpu.concatenate %185, %186, %187, %188 in 1 : vector<30x16xf32>, vector<30x16xf32>, vector<30x16xf32>, vector<30x16xf32> -> vector<30x64xf32>
    %c0_71 = arith.constant 0 : index
    %c0_72 = arith.constant 0 : index
    %c0_73 = arith.constant 0 : index
    %190 = vector.load %arg4[%c0_71, %c0_72, %c0_73] : memref<2x64x64xbf16, #tpu.memory_space<vmem>>, vector<1x64x64xbf16>
    %191 = vector.shape_cast %190 : vector<1x64x64xbf16> to vector<64x64xbf16>
    %192 = arith.truncf %189 : vector<30x64xf32> to vector<30x64xbf16>
    %cst_74 = arith.constant dense<0.000000e+00> : vector<30x64xf32>
    %193 = tpu.matmul %192, %191, %cst_74 {dimension_numbers = #tpu.dot_dimension_numbers<[1], [0], [0], [1], [0, 0, 1, 1], [], []>} : vector<30x64xbf16>, vector<64x64xbf16>, vector<30x64xf32> -> vector<30x64xf32>
    %c33_75 = arith.constant 33 : index
    %c64_76 = arith.constant 64 : index
    %194 = vector.load %arg2[%c33_75, %c64_76] : memref<48x128xf32, #tpu.memory_space<vmem>>, vector<1x64xf32>
    %195 = vector.broadcast %194 : vector<1x64xf32> to vector<30x64xf32>
    %196 = arith.addf %193, %195 : vector<30x64xf32>
    %197 = arith.addf %38, %196 : vector<30x64xf32>
    %c34 = arith.constant 34 : index
    %c0_77 = arith.constant 0 : index
    %198 = vector.load %arg2[%c34, %c0_77] : memref<48x128xf32, #tpu.memory_space<vmem>>, vector<1x64xf32>
    %c34_78 = arith.constant 34 : index
    %c64_79 = arith.constant 64 : index
    %199 = vector.load %arg2[%c34_78, %c64_79] : memref<48x128xf32, #tpu.memory_space<vmem>>, vector<1x64xf32>
    %cst_80 = arith.constant dense<0.000000e+00> : vector<30xf32>
    %200 = vector.multi_reduction <add>, %197, %cst_80 [1] : vector<30x64xf32> to vector<30xf32>
    %201 = vector.shape_cast %200 : vector<30xf32> to vector<30x1xf32>
    %cst_81 = arith.constant 6.400000e+01 : f32
    %202 = vector.broadcast %cst_81 : f32 to vector<30x1xf32>
    %203 = arith.divf %201, %202 : vector<30x1xf32>
    %204 = vector.broadcast %203 : vector<30x1xf32> to vector<30x64xf32>
    %205 = arith.subf %197, %204 : vector<30x64xf32>
    %206 = arith.mulf %205, %205 : vector<30x64xf32>
    %cst_82 = arith.constant dense<0.000000e+00> : vector<30xf32>
    %207 = vector.multi_reduction <add>, %206, %cst_82 [1] : vector<30x64xf32> to vector<30xf32>
    %208 = vector.shape_cast %207 : vector<30xf32> to vector<30x1xf32>
    %cst_83 = arith.constant 6.400000e+01 : f32
    %209 = vector.broadcast %cst_83 : f32 to vector<30x1xf32>
    %210 = arith.divf %208, %209 : vector<30x1xf32>
    %211 = vector.broadcast %203 : vector<30x1xf32> to vector<30x64xf32>
    %212 = arith.subf %197, %211 : vector<30x64xf32>
    %cst_84 = arith.constant 9.99999996E-13 : f32
    %213 = vector.broadcast %cst_84 : f32 to vector<30x1xf32>
    %214 = arith.addf %210, %213 : vector<30x1xf32>
    %215 = math.rsqrt %214 : vector<30x1xf32>
    %216 = vector.broadcast %215 : vector<30x1xf32> to vector<30x64xf32>
    %217 = arith.mulf %212, %216 : vector<30x64xf32>
    %218 = vector.broadcast %198 : vector<1x64xf32> to vector<30x64xf32>
    %219 = arith.mulf %217, %218 : vector<30x64xf32>
    %220 = vector.broadcast %199 : vector<1x64xf32> to vector<30x64xf32>
    %221 = arith.addf %219, %220 : vector<30x64xf32>
    %c0_85 = arith.constant 0 : index
    %c0_86 = arith.constant 0 : index
    %c0_87 = arith.constant 0 : index
    %222 = vector.load %arg5[%c0_85, %c0_86, %c0_87] : memref<2x64x128xbf16, #tpu.memory_space<vmem>>, vector<1x64x128xbf16>
    %223 = vector.shape_cast %222 : vector<1x64x128xbf16> to vector<64x128xbf16>
    %224 = arith.truncf %221 : vector<30x64xf32> to vector<30x64xbf16>
    %cst_88 = arith.constant dense<0.000000e+00> : vector<30x128xf32>
    %225 = tpu.matmul %224, %223, %cst_88 {dimension_numbers = #tpu.dot_dimension_numbers<[1], [0], [0], [1], [0, 0, 1, 1], [], []>} : vector<30x64xbf16>, vector<64x128xbf16>, vector<30x128xf32> -> vector<30x128xf32>
    %c35 = arith.constant 35 : index
    %c0_89 = arith.constant 0 : index
    %226 = vector.load %arg2[%c35, %c0_89] : memref<48x128xf32, #tpu.memory_space<vmem>>, vector<1x128xf32>
    %227 = vector.broadcast %226 : vector<1x128xf32> to vector<30x128xf32>
    %228 = arith.addf %225, %227 : vector<30x128xf32>
    %cst_90 = arith.constant 5.000000e-01 : f32
    %229 = vector.broadcast %cst_90 : f32 to vector<30x128xf32>
    %230 = arith.mulf %229, %228 : vector<30x128xf32>
    %cst_91 = arith.constant 4.471500e-02 : f32
    %231 = vector.broadcast %cst_91 : f32 to vector<30x128xf32>
    %232 = arith.mulf %231, %228 : vector<30x128xf32>
    %233 = arith.mulf %232, %228 : vector<30x128xf32>
    %234 = arith.mulf %233, %228 : vector<30x128xf32>
    %235 = arith.addf %228, %234 : vector<30x128xf32>
    %cst_92 = arith.constant 0.797884583 : f32
    %236 = vector.broadcast %cst_92 : f32 to vector<30x128xf32>
    %237 = arith.mulf %236, %235 : vector<30x128xf32>
    %238 = math.tanh %237 : vector<30x128xf32>
    %cst_93 = arith.constant 1.000000e+00 : f32
    %239 = vector.broadcast %cst_93 : f32 to vector<30x128xf32>
    %240 = arith.addf %239, %238 : vector<30x128xf32>
    %241 = arith.mulf %230, %240 : vector<30x128xf32>
    %c0_94 = arith.constant 0 : index
    %c0_95 = arith.constant 0 : index
    %c0_96 = arith.constant 0 : index
    %242 = vector.load %arg6[%c0_94, %c0_95, %c0_96] : memref<2x128x64xbf16, #tpu.memory_space<vmem>>, vector<1x128x64xbf16>
    %243 = vector.shape_cast %242 : vector<1x128x64xbf16> to vector<128x64xbf16>
    %244 = arith.truncf %241 : vector<30x128xf32> to vector<30x128xbf16>
    %cst_97 = arith.constant dense<0.000000e+00> : vector<30x64xf32>
    %245 = tpu.matmul %244, %243, %cst_97 {dimension_numbers = #tpu.dot_dimension_numbers<[1], [0], [0], [1], [0, 0, 1, 1], [], []>} : vector<30x128xbf16>, vector<128x64xbf16>, vector<30x64xf32> -> vector<30x64xf32>
    %c37 = arith.constant 37 : index
    %c0_98 = arith.constant 0 : index
    %246 = vector.load %arg2[%c37, %c0_98] : memref<48x128xf32, #tpu.memory_space<vmem>>, vector<1x64xf32>
    %247 = vector.broadcast %246 : vector<1x64xf32> to vector<30x64xf32>
    %248 = arith.addf %245, %247 : vector<30x64xf32>
    %249 = arith.addf %221, %248 : vector<30x64xf32>
    %c36 = arith.constant 36 : index
    %c0_99 = arith.constant 0 : index
    %250 = vector.load %arg2[%c36, %c0_99] : memref<48x128xf32, #tpu.memory_space<vmem>>, vector<1x64xf32>
    %c36_100 = arith.constant 36 : index
    %c64_101 = arith.constant 64 : index
    %251 = vector.load %arg2[%c36_100, %c64_101] : memref<48x128xf32, #tpu.memory_space<vmem>>, vector<1x64xf32>
    %cst_102 = arith.constant dense<0.000000e+00> : vector<30xf32>
    %252 = vector.multi_reduction <add>, %249, %cst_102 [1] : vector<30x64xf32> to vector<30xf32>
    %253 = vector.shape_cast %252 : vector<30xf32> to vector<30x1xf32>
    %cst_103 = arith.constant 6.400000e+01 : f32
    %254 = vector.broadcast %cst_103 : f32 to vector<30x1xf32>
    %255 = arith.divf %253, %254 : vector<30x1xf32>
    %256 = vector.broadcast %255 : vector<30x1xf32> to vector<30x64xf32>
    %257 = arith.subf %249, %256 : vector<30x64xf32>
    %258 = arith.mulf %257, %257 : vector<30x64xf32>
    %cst_104 = arith.constant dense<0.000000e+00> : vector<30xf32>
    %259 = vector.multi_reduction <add>, %258, %cst_104 [1] : vector<30x64xf32> to vector<30xf32>
    %260 = vector.shape_cast %259 : vector<30xf32> to vector<30x1xf32>
    %cst_105 = arith.constant 6.400000e+01 : f32
    %261 = vector.broadcast %cst_105 : f32 to vector<30x1xf32>
    %262 = arith.divf %260, %261 : vector<30x1xf32>
    %263 = vector.broadcast %255 : vector<30x1xf32> to vector<30x64xf32>
    %264 = arith.subf %249, %263 : vector<30x64xf32>
    %cst_106 = arith.constant 9.99999996E-13 : f32
    %265 = vector.broadcast %cst_106 : f32 to vector<30x1xf32>
    %266 = arith.addf %262, %265 : vector<30x1xf32>
    %267 = math.rsqrt %266 : vector<30x1xf32>
    %268 = vector.broadcast %267 : vector<30x1xf32> to vector<30x64xf32>
    %269 = arith.mulf %264, %268 : vector<30x64xf32>
    %270 = vector.broadcast %250 : vector<1x64xf32> to vector<30x64xf32>
    %271 = arith.mulf %269, %270 : vector<30x64xf32>
    %272 = vector.broadcast %251 : vector<1x64xf32> to vector<30x64xf32>
    %273 = arith.addf %271, %272 : vector<30x64xf32>
    %c1 = arith.constant 1 : index
    %c0_107 = arith.constant 0 : index
    %c0_108 = arith.constant 0 : index
    %274 = vector.load %arg3[%c1, %c0_107, %c0_108] : memref<2x64x192xbf16, #tpu.memory_space<vmem>>, vector<1x64x192xbf16>
    %275 = vector.shape_cast %274 : vector<1x64x192xbf16> to vector<64x192xbf16>
    %276 = arith.truncf %273 : vector<30x64xf32> to vector<30x64xbf16>
    %cst_109 = arith.constant dense<0.000000e+00> : vector<30x192xf32>
    %277 = tpu.matmul %276, %275, %cst_109 {dimension_numbers = #tpu.dot_dimension_numbers<[1], [0], [0], [1], [0, 0, 1, 1], [], []>} : vector<30x64xbf16>, vector<64x192xbf16>, vector<30x192xf32> -> vector<30x192xf32>
    %278 = vector.extract_strided_slice %277 {offsets = [0, 0], sizes = [30, 64], strides = [1, 1]} : vector<30x192xf32> to vector<30x64xf32>
    %c38 = arith.constant 38 : index
    %c0_110 = arith.constant 0 : index
    %279 = vector.load %arg2[%c38, %c0_110] : memref<48x128xf32, #tpu.memory_space<vmem>>, vector<1x64xf32>
    %280 = vector.broadcast %279 : vector<1x64xf32> to vector<30x64xf32>
    %281 = arith.addf %278, %280 : vector<30x64xf32>
    %282 = vector.extract_strided_slice %277 {offsets = [0, 64], sizes = [30, 64], strides = [1, 1]} : vector<30x192xf32> to vector<30x64xf32>
    %c38_111 = arith.constant 38 : index
    %c64_112 = arith.constant 64 : index
    %283 = vector.load %arg2[%c38_111, %c64_112] : memref<48x128xf32, #tpu.memory_space<vmem>>, vector<1x64xf32>
    %284 = vector.broadcast %283 : vector<1x64xf32> to vector<30x64xf32>
    %285 = arith.addf %282, %284 : vector<30x64xf32>
    %286 = vector.extract_strided_slice %277 {offsets = [0, 128], sizes = [30, 64], strides = [1, 1]} : vector<30x192xf32> to vector<30x64xf32>
    %c39 = arith.constant 39 : index
    %c0_113 = arith.constant 0 : index
    %287 = vector.load %arg2[%c39, %c0_113] : memref<48x128xf32, #tpu.memory_space<vmem>>, vector<1x64xf32>
    %288 = vector.broadcast %287 : vector<1x64xf32> to vector<30x64xf32>
    %289 = arith.addf %286, %288 : vector<30x64xf32>
    %290 = vector.extract_strided_slice %281 {offsets = [0, 0], sizes = [30, 16], strides = [1, 1]} : vector<30x64xf32> to vector<30x16xf32>
    %c0_114 = arith.constant 0 : index
    %c0_115 = arith.constant 0 : index
    %291 = vector.load %arg8[%c0_114, %c0_115] : memref<128x48xf32, #tpu.memory_space<vmem>>, vector<30x16xf32>
    tpu.vector_store %arg8[%c0_114, %c0_115], %290 {strides = array<i32>} : memref<128x48xf32, #tpu.memory_space<vmem>>, vector<30x16xf32>,
    %292 = vector.extract_strided_slice %285 {offsets = [0, 0], sizes = [30, 16], strides = [1, 1]} : vector<30x64xf32> to vector<30x16xf32>
    %c0_116 = arith.constant 0 : index
    %c16_117 = arith.constant 16 : index
    %293 = vector.load %arg8[%c0_116, %c16_117] : memref<128x48xf32, #tpu.memory_space<vmem>>, vector<30x16xf32>
    tpu.vector_store %arg8[%c0_116, %c16_117], %292 {strides = array<i32>} : memref<128x48xf32, #tpu.memory_space<vmem>>, vector<30x16xf32>,
    %294 = vector.extract_strided_slice %289 {offsets = [0, 0], sizes = [30, 16], strides = [1, 1]} : vector<30x64xf32> to vector<30x16xf32>
    %c0_118 = arith.constant 0 : index
    %c32_119 = arith.constant 32 : index
    %295 = vector.load %arg8[%c0_118, %c32_119] : memref<128x48xf32, #tpu.memory_space<vmem>>, vector<30x16xf32>
    tpu.vector_store %arg8[%c0_118, %c32_119], %294 {strides = array<i32>} : memref<128x48xf32, #tpu.memory_space<vmem>>, vector<30x16xf32>,
    %296 = vector.extract_strided_slice %281 {offsets = [0, 16], sizes = [30, 16], strides = [1, 1]} : vector<30x64xf32> to vector<30x16xf32>
    %c32_120 = arith.constant 32 : index
    %c0_121 = arith.constant 0 : index
    %297 = vector.load %arg8[%c32_120, %c0_121] : memref<128x48xf32, #tpu.memory_space<vmem>>, vector<30x16xf32>
    tpu.vector_store %arg8[%c32_120, %c0_121], %296 {strides = array<i32>} : memref<128x48xf32, #tpu.memory_space<vmem>>, vector<30x16xf32>,
    %298 = vector.extract_strided_slice %285 {offsets = [0, 16], sizes = [30, 16], strides = [1, 1]} : vector<30x64xf32> to vector<30x16xf32>
    %c32_122 = arith.constant 32 : index
    %c16_123 = arith.constant 16 : index
    %299 = vector.load %arg8[%c32_122, %c16_123] : memref<128x48xf32, #tpu.memory_space<vmem>>, vector<30x16xf32>
    tpu.vector_store %arg8[%c32_122, %c16_123], %298 {strides = array<i32>} : memref<128x48xf32, #tpu.memory_space<vmem>>, vector<30x16xf32>,
    %300 = vector.extract_strided_slice %289 {offsets = [0, 16], sizes = [30, 16], strides = [1, 1]} : vector<30x64xf32> to vector<30x16xf32>
    %c32_124 = arith.constant 32 : index
    %c32_125 = arith.constant 32 : index
    %301 = vector.load %arg8[%c32_124, %c32_125] : memref<128x48xf32, #tpu.memory_space<vmem>>, vector<30x16xf32>
    tpu.vector_store %arg8[%c32_124, %c32_125], %300 {strides = array<i32>} : memref<128x48xf32, #tpu.memory_space<vmem>>, vector<30x16xf32>,
    %302 = vector.extract_strided_slice %281 {offsets = [0, 32], sizes = [30, 16], strides = [1, 1]} : vector<30x64xf32> to vector<30x16xf32>
    %c64_126 = arith.constant 64 : index
    %c0_127 = arith.constant 0 : index
    %303 = vector.load %arg8[%c64_126, %c0_127] : memref<128x48xf32, #tpu.memory_space<vmem>>, vector<30x16xf32>
    tpu.vector_store %arg8[%c64_126, %c0_127], %302 {strides = array<i32>} : memref<128x48xf32, #tpu.memory_space<vmem>>, vector<30x16xf32>,
    %304 = vector.extract_strided_slice %285 {offsets = [0, 32], sizes = [30, 16], strides = [1, 1]} : vector<30x64xf32> to vector<30x16xf32>
    %c64_128 = arith.constant 64 : index
    %c16_129 = arith.constant 16 : index
    %305 = vector.load %arg8[%c64_128, %c16_129] : memref<128x48xf32, #tpu.memory_space<vmem>>, vector<30x16xf32>
    tpu.vector_store %arg8[%c64_128, %c16_129], %304 {strides = array<i32>} : memref<128x48xf32, #tpu.memory_space<vmem>>, vector<30x16xf32>,
    %306 = vector.extract_strided_slice %289 {offsets = [0, 32], sizes = [30, 16], strides = [1, 1]} : vector<30x64xf32> to vector<30x16xf32>
    %c64_130 = arith.constant 64 : index
    %c32_131 = arith.constant 32 : index
    %307 = vector.load %arg8[%c64_130, %c32_131] : memref<128x48xf32, #tpu.memory_space<vmem>>, vector<30x16xf32>
    tpu.vector_store %arg8[%c64_130, %c32_131], %306 {strides = array<i32>} : memref<128x48xf32, #tpu.memory_space<vmem>>, vector<30x16xf32>,
    %308 = vector.extract_strided_slice %281 {offsets = [0, 48], sizes = [30, 16], strides = [1, 1]} : vector<30x64xf32> to vector<30x16xf32>
    %c96_132 = arith.constant 96 : index
    %c0_133 = arith.constant 0 : index
    %309 = vector.load %arg8[%c96_132, %c0_133] : memref<128x48xf32, #tpu.memory_space<vmem>>, vector<30x16xf32>
    tpu.vector_store %arg8[%c96_132, %c0_133], %308 {strides = array<i32>} : memref<128x48xf32, #tpu.memory_space<vmem>>, vector<30x16xf32>,
    %310 = vector.extract_strided_slice %285 {offsets = [0, 48], sizes = [30, 16], strides = [1, 1]} : vector<30x64xf32> to vector<30x16xf32>
    %c96_134 = arith.constant 96 : index
    %c16_135 = arith.constant 16 : index
    %311 = vector.load %arg8[%c96_134, %c16_135] : memref<128x48xf32, #tpu.memory_space<vmem>>, vector<30x16xf32>
    tpu.vector_store %arg8[%c96_134, %c16_135], %310 {strides = array<i32>} : memref<128x48xf32, #tpu.memory_space<vmem>>, vector<30x16xf32>,
    %312 = vector.extract_strided_slice %289 {offsets = [0, 48], sizes = [30, 16], strides = [1, 1]} : vector<30x64xf32> to vector<30x16xf32>
    %c96_136 = arith.constant 96 : index
    %c32_137 = arith.constant 32 : index
    %313 = vector.load %arg8[%c96_136, %c32_137] : memref<128x48xf32, #tpu.memory_space<vmem>>, vector<30x16xf32>
    tpu.vector_store %arg8[%c96_136, %c32_137], %312 {strides = array<i32>} : memref<128x48xf32, #tpu.memory_space<vmem>>, vector<30x16xf32>,
    %c0_138 = arith.constant 0 : index
    %c0_139 = arith.constant 0 : index
    %314 = vector.load %arg8[%c0_138, %c0_139] : memref<128x48xf32, #tpu.memory_space<vmem>>, vector<128x16xf32>
    %315 = arith.truncf %314 : vector<128x16xf32> to vector<128x16xbf16>
    %c0_140 = arith.constant 0 : index
    %c16_141 = arith.constant 16 : index
    %316 = vector.load %arg8[%c0_140, %c16_141] : memref<128x48xf32, #tpu.memory_space<vmem>>, vector<128x16xf32>
    %317 = arith.truncf %316 : vector<128x16xf32> to vector<128x16xbf16>
    %c0_142 = arith.constant 0 : index
    %c32_143 = arith.constant 32 : index
    %318 = vector.load %arg8[%c0_142, %c32_143] : memref<128x48xf32, #tpu.memory_space<vmem>>, vector<128x16xf32>
    %319 = arith.truncf %318 : vector<128x16xf32> to vector<128x16xbf16>
    %cst_144 = arith.constant dense<0.000000e+00> : vector<128x128xf32>
    %320 = tpu.matmul %315, %317, %cst_144 {dimension_numbers = #tpu.dot_dimension_numbers<[1], [1], [0], [0], [0, 0, 1, 0], [], []>} : vector<128x16xbf16>, vector<128x16xbf16>, vector<128x128xf32> -> vector<128x128xf32>
    %321 = arith.addf %320, %124 : vector<128x128xf32>
    %cst_145 = arith.constant dense<0xFF800000> : vector<128xf32>
    %322 = vector.multi_reduction <maximumf>, %321, %cst_145 [1] : vector<128x128xf32> to vector<128xf32>
    %323 = vector.shape_cast %322 : vector<128xf32> to vector<128x1xf32>
    %324 = vector.broadcast %323 : vector<128x1xf32> to vector<128x128xf32>
    %325 = arith.subf %321, %324 : vector<128x128xf32>
    %326 = math.exp %325 : vector<128x128xf32>
    %cst_146 = arith.constant dense<0.000000e+00> : vector<128xf32>
    %327 = vector.multi_reduction <add>, %326, %cst_146 [1] : vector<128x128xf32> to vector<128xf32>
    %328 = vector.shape_cast %327 : vector<128xf32> to vector<128x1xf32>
    %329 = tpu.reciprocal %328 {approx = true} : vector<128x1xf32> -> vector<128x1xf32>
    %330 = vector.broadcast %329 : vector<128x1xf32> to vector<128x128xf32>
    %331 = arith.mulf %326, %330 : vector<128x128xf32>
    %332 = arith.truncf %331 : vector<128x128xf32> to vector<128x128xbf16>
    %cst_147 = arith.constant dense<0.000000e+00> : vector<128x16xf32>
    %333 = tpu.matmul %332, %319, %cst_147 {dimension_numbers = #tpu.dot_dimension_numbers<[1], [0], [0], [1], [0, 0, 1, 1], [], []>} : vector<128x128xbf16>, vector<128x16xbf16>, vector<128x16xf32> -> vector<128x16xf32>
    %334 = vector.extract_strided_slice %333 {offsets = [0, 0], sizes = [30, 16], strides = [1, 1]} : vector<128x16xf32> to vector<30x16xf32>
    %335 = vector.extract_strided_slice %333 {offsets = [32, 0], sizes = [30, 16], strides = [1, 1]} : vector<128x16xf32> to vector<30x16xf32>
    %336 = vector.extract_strided_slice %333 {offsets = [64, 0], sizes = [30, 16], strides = [1, 1]} : vector<128x16xf32> to vector<30x16xf32>
    %337 = vector.extract_strided_slice %333 {offsets = [96, 0], sizes = [30, 16], strides = [1, 1]} : vector<128x16xf32> to vector<30x16xf32>
    %338 = tpu.concatenate %334, %335, %336, %337 in 1 : vector<30x16xf32>, vector<30x16xf32>, vector<30x16xf32>, vector<30x16xf32> -> vector<30x64xf32>
    %c1_148 = arith.constant 1 : index
    %c0_149 = arith.constant 0 : index
    %c0_150 = arith.constant 0 : index
    %339 = vector.load %arg4[%c1_148, %c0_149, %c0_150] : memref<2x64x64xbf16, #tpu.memory_space<vmem>>, vector<1x64x64xbf16>
    %340 = vector.shape_cast %339 : vector<1x64x64xbf16> to vector<64x64xbf16>
    %341 = arith.truncf %338 : vector<30x64xf32> to vector<30x64xbf16>
    %cst_151 = arith.constant dense<0.000000e+00> : vector<30x64xf32>
    %342 = tpu.matmul %341, %340, %cst_151 {dimension_numbers = #tpu.dot_dimension_numbers<[1], [0], [0], [1], [0, 0, 1, 1], [], []>} : vector<30x64xbf16>, vector<64x64xbf16>, vector<30x64xf32> -> vector<30x64xf32>
    %c39_152 = arith.constant 39 : index
    %c64_153 = arith.constant 64 : index
    %343 = vector.load %arg2[%c39_152, %c64_153] : memref<48x128xf32, #tpu.memory_space<vmem>>, vector<1x64xf32>
    %344 = vector.broadcast %343 : vector<1x64xf32> to vector<30x64xf32>
    %345 = arith.addf %342, %344 : vector<30x64xf32>
    %346 = arith.addf %273, %345 : vector<30x64xf32>
    %c40 = arith.constant 40 : index
    %c0_154 = arith.constant 0 : index
    %347 = vector.load %arg2[%c40, %c0_154] : memref<48x128xf32, #tpu.memory_space<vmem>>, vector<1x64xf32>
    %c40_155 = arith.constant 40 : index
    %c64_156 = arith.constant 64 : index
    %348 = vector.load %arg2[%c40_155, %c64_156] : memref<48x128xf32, #tpu.memory_space<vmem>>, vector<1x64xf32>
    %cst_157 = arith.constant dense<0.000000e+00> : vector<30xf32>
    %349 = vector.multi_reduction <add>, %346, %cst_157 [1] : vector<30x64xf32> to vector<30xf32>
    %350 = vector.shape_cast %349 : vector<30xf32> to vector<30x1xf32>
    %cst_158 = arith.constant 6.400000e+01 : f32
    %351 = vector.broadcast %cst_158 : f32 to vector<30x1xf32>
    %352 = arith.divf %350, %351 : vector<30x1xf32>
    %353 = vector.broadcast %352 : vector<30x1xf32> to vector<30x64xf32>
    %354 = arith.subf %346, %353 : vector<30x64xf32>
    %355 = arith.mulf %354, %354 : vector<30x64xf32>
    %cst_159 = arith.constant dense<0.000000e+00> : vector<30xf32>
    %356 = vector.multi_reduction <add>, %355, %cst_159 [1] : vector<30x64xf32> to vector<30xf32>
    %357 = vector.shape_cast %356 : vector<30xf32> to vector<30x1xf32>
    %cst_160 = arith.constant 6.400000e+01 : f32
    %358 = vector.broadcast %cst_160 : f32 to vector<30x1xf32>
    %359 = arith.divf %357, %358 : vector<30x1xf32>
    %360 = vector.broadcast %352 : vector<30x1xf32> to vector<30x64xf32>
    %361 = arith.subf %346, %360 : vector<30x64xf32>
    %cst_161 = arith.constant 9.99999996E-13 : f32
    %362 = vector.broadcast %cst_161 : f32 to vector<30x1xf32>
    %363 = arith.addf %359, %362 : vector<30x1xf32>
    %364 = math.rsqrt %363 : vector<30x1xf32>
    %365 = vector.broadcast %364 : vector<30x1xf32> to vector<30x64xf32>
    %366 = arith.mulf %361, %365 : vector<30x64xf32>
    %367 = vector.broadcast %347 : vector<1x64xf32> to vector<30x64xf32>
    %368 = arith.mulf %366, %367 : vector<30x64xf32>
    %369 = vector.broadcast %348 : vector<1x64xf32> to vector<30x64xf32>
    %370 = arith.addf %368, %369 : vector<30x64xf32>
    %c1_162 = arith.constant 1 : index
    %c0_163 = arith.constant 0 : index
    %c0_164 = arith.constant 0 : index
    %371 = vector.load %arg5[%c1_162, %c0_163, %c0_164] : memref<2x64x128xbf16, #tpu.memory_space<vmem>>, vector<1x64x128xbf16>
    %372 = vector.shape_cast %371 : vector<1x64x128xbf16> to vector<64x128xbf16>
    %373 = arith.truncf %370 : vector<30x64xf32> to vector<30x64xbf16>
    %cst_165 = arith.constant dense<0.000000e+00> : vector<30x128xf32>
    %374 = tpu.matmul %373, %372, %cst_165 {dimension_numbers = #tpu.dot_dimension_numbers<[1], [0], [0], [1], [0, 0, 1, 1], [], []>} : vector<30x64xbf16>, vector<64x128xbf16>, vector<30x128xf32> -> vector<30x128xf32>
    %c41 = arith.constant 41 : index
    %c0_166 = arith.constant 0 : index
    %375 = vector.load %arg2[%c41, %c0_166] : memref<48x128xf32, #tpu.memory_space<vmem>>, vector<1x128xf32>
    %376 = vector.broadcast %375 : vector<1x128xf32> to vector<30x128xf32>
    %377 = arith.addf %374, %376 : vector<30x128xf32>
    %cst_167 = arith.constant 5.000000e-01 : f32
    %378 = vector.broadcast %cst_167 : f32 to vector<30x128xf32>
    %379 = arith.mulf %378, %377 : vector<30x128xf32>
    %cst_168 = arith.constant 4.471500e-02 : f32
    %380 = vector.broadcast %cst_168 : f32 to vector<30x128xf32>
    %381 = arith.mulf %380, %377 : vector<30x128xf32>
    %382 = arith.mulf %381, %377 : vector<30x128xf32>
    %383 = arith.mulf %382, %377 : vector<30x128xf32>
    %384 = arith.addf %377, %383 : vector<30x128xf32>
    %cst_169 = arith.constant 0.797884583 : f32
    %385 = vector.broadcast %cst_169 : f32 to vector<30x128xf32>
    %386 = arith.mulf %385, %384 : vector<30x128xf32>
    %387 = math.tanh %386 : vector<30x128xf32>
    %cst_170 = arith.constant 1.000000e+00 : f32
    %388 = vector.broadcast %cst_170 : f32 to vector<30x128xf32>
    %389 = arith.addf %388, %387 : vector<30x128xf32>
    %390 = arith.mulf %379, %389 : vector<30x128xf32>
    %c1_171 = arith.constant 1 : index
    %c0_172 = arith.constant 0 : index
    %c0_173 = arith.constant 0 : index
    %391 = vector.load %arg6[%c1_171, %c0_172, %c0_173] : memref<2x128x64xbf16, #tpu.memory_space<vmem>>, vector<1x128x64xbf16>
    %392 = vector.shape_cast %391 : vector<1x128x64xbf16> to vector<128x64xbf16>
    %393 = arith.truncf %390 : vector<30x128xf32> to vector<30x128xbf16>
    %cst_174 = arith.constant dense<0.000000e+00> : vector<30x64xf32>
    %394 = tpu.matmul %393, %392, %cst_174 {dimension_numbers = #tpu.dot_dimension_numbers<[1], [0], [0], [1], [0, 0, 1, 1], [], []>} : vector<30x128xbf16>, vector<128x64xbf16>, vector<30x64xf32> -> vector<30x64xf32>
    %c43 = arith.constant 43 : index
    %c0_175 = arith.constant 0 : index
    %395 = vector.load %arg2[%c43, %c0_175] : memref<48x128xf32, #tpu.memory_space<vmem>>, vector<1x64xf32>
    %396 = vector.broadcast %395 : vector<1x64xf32> to vector<30x64xf32>
    %397 = arith.addf %394, %396 : vector<30x64xf32>
    %398 = arith.addf %370, %397 : vector<30x64xf32>
    %c42 = arith.constant 42 : index
    %c0_176 = arith.constant 0 : index
    %399 = vector.load %arg2[%c42, %c0_176] : memref<48x128xf32, #tpu.memory_space<vmem>>, vector<1x64xf32>
    %c42_177 = arith.constant 42 : index
    %c64_178 = arith.constant 64 : index
    %400 = vector.load %arg2[%c42_177, %c64_178] : memref<48x128xf32, #tpu.memory_space<vmem>>, vector<1x64xf32>
    %cst_179 = arith.constant dense<0.000000e+00> : vector<30xf32>
    %401 = vector.multi_reduction <add>, %398, %cst_179 [1] : vector<30x64xf32> to vector<30xf32>
    %402 = vector.shape_cast %401 : vector<30xf32> to vector<30x1xf32>
    %cst_180 = arith.constant 6.400000e+01 : f32
    %403 = vector.broadcast %cst_180 : f32 to vector<30x1xf32>
    %404 = arith.divf %402, %403 : vector<30x1xf32>
    %405 = vector.broadcast %404 : vector<30x1xf32> to vector<30x64xf32>
    %406 = arith.subf %398, %405 : vector<30x64xf32>
    %407 = arith.mulf %406, %406 : vector<30x64xf32>
    %cst_181 = arith.constant dense<0.000000e+00> : vector<30xf32>
    %408 = vector.multi_reduction <add>, %407, %cst_181 [1] : vector<30x64xf32> to vector<30xf32>
    %409 = vector.shape_cast %408 : vector<30xf32> to vector<30x1xf32>
    %cst_182 = arith.constant 6.400000e+01 : f32
    %410 = vector.broadcast %cst_182 : f32 to vector<30x1xf32>
    %411 = arith.divf %409, %410 : vector<30x1xf32>
    %412 = vector.broadcast %404 : vector<30x1xf32> to vector<30x64xf32>
    %413 = arith.subf %398, %412 : vector<30x64xf32>
    %cst_183 = arith.constant 9.99999996E-13 : f32
    %414 = vector.broadcast %cst_183 : f32 to vector<30x1xf32>
    %415 = arith.addf %411, %414 : vector<30x1xf32>
    %416 = math.rsqrt %415 : vector<30x1xf32>
    %417 = vector.broadcast %416 : vector<30x1xf32> to vector<30x64xf32>
    %418 = arith.mulf %413, %417 : vector<30x64xf32>
    %419 = vector.broadcast %399 : vector<1x64xf32> to vector<30x64xf32>
    %420 = arith.mulf %418, %419 : vector<30x64xf32>
    %421 = vector.broadcast %400 : vector<1x64xf32> to vector<30x64xf32>
    %422 = arith.addf %420, %421 : vector<30x64xf32>
    %423 = tpu.concatenate %422, %11 in 1 : vector<30x64xf32>, vector<30x64xf32> -> vector<30x128xf32>
    %c0_184 = arith.constant 0 : index
    %c0_185 = arith.constant 0 : index
    %424 = vector.load %arg7[%c0_184, %c0_185] : memref<30x128xf32, #tpu.memory_space<vmem>>, vector<30x128xf32>
    tpu.vector_store %arg7[%c0_184, %c0_185], %423 {strides = array<i32>} : memref<30x128xf32, #tpu.memory_space<vmem>>, vector<30x128xf32>,
    return
  }
}

</mosaic_0001>

<llo_original>
// kernel: bert_eeg_forward.1
$region0: #{bert_eeg_forward.1}
  #allocation0 [shape = 'u32[]', space=smem, size = 0x4, offset = 0x4, fixed_abs, tag = 'smem constant byte address 0x4 - core index']
  #allocation1 [shape = 'u32[144,128]{1,0:T(1,128)}', space=vmem, size = 0x12000, scoped, tag = 'internal scratch']
  #allocation2 [shape = 'f32[128,48]{1,0:T(8,128)}', space=vmem, size = 0x10000, scoped, tag = 'scratch operand']
  %s0 = inlined_call_operand.vmem [shape: f32[60,40], index: 0, kind: input, shape index: {}]
  %s1 = inlined_call_operand.vmem [shape: bf16[40,64], index: 1, kind: input, shape index: {}]
  %s2 = inlined_call_operand.vmem [shape: f32[48,128], index: 2, kind: input, shape index: {}]
  %s3 = inlined_call_operand.vmem [shape: bf16[2,64,192], index: 3, kind: input, shape index: {}]
  %s4 = inlined_call_operand.vmem [shape: bf16[2,64,64], index: 4, kind: input, shape index: {}]
  %s5 = inlined_call_operand.vmem [shape: bf16[2,64,128], index: 5, kind: input, shape index: {}]
  %s6 = inlined_call_operand.vmem [shape: bf16[2,128,64], index: 6, kind: input, shape index: {}]
  %s7 = inlined_call_operand.vmem [shape: f32[30,128], index: 7, kind: output, shape index: {}]
  %s8 = sld [smem:[#allocation0]]
  $region38: #{bert_eeg_forward.1} parent=0
    _
  %s10 = ssub.s32 1, %s8
  %s11 = scalar_select 0, %s10, %s8
  // Predicated region
  $region2: #{bert_eeg_forward.1} parent=0 // pred_check
    _
  $region3: #{bert_eeg_forward.1} parent=0 // pred_check_branch
    %13 = sbr.rel (0) target = $region5
  $region4: #{bert_eeg_forward.1} parent=0 // pred_region
    _
  $region5: #{bert_eeg_forward.1} parent=0 // pred_fallthru
    _
  // Predicated region
  $region6: #{bert_eeg_forward.1} parent=0 // pred_check
    _
  $region7: #{bert_eeg_forward.1} parent=0 // pred_check_branch
    %15 = sbr.rel (0) target = $region9
  $region8: #{bert_eeg_forward.1} parent=0 // pred_region
    _
  $region9: #{bert_eeg_forward.1} parent=0 // pred_fallthru
    _
  // Predicated region
  $region10: #{bert_eeg_forward.1} parent=0 // pred_check
    _
  $region11: #{bert_eeg_forward.1} parent=0 // pred_check_branch
    %17 = sbr.rel (0) target = $region13
  $region12: #{bert_eeg_forward.1} parent=0 // pred_region
    _
  $region13: #{bert_eeg_forward.1} parent=0 // pred_fallthru
    _
  // Predicated region
  $region14: #{bert_eeg_forward.1} parent=0 // pred_check
    _
  $region15: #{bert_eeg_forward.1} parent=0 // pred_check_branch
    %19 = sbr.rel (0) target = $region17
  $region16: #{bert_eeg_forward.1} parent=0 // pred_region
    _
  $region17: #{bert_eeg_forward.1} parent=0 // pred_fallthru
    _
  // Predicated region
  $region18: #{bert_eeg_forward.1} parent=0 // pred_check
    _
  $region19: #{bert_eeg_forward.1} parent=0 // pred_check_branch
    %21 = sbr.rel (0) target = $region21
  $region20: #{bert_eeg_forward.1} parent=0 // pred_region
    _
  $region21: #{bert_eeg_forward.1} parent=0 // pred_fallthru
    _
  // Predicated region
  $region22: #{bert_eeg_forward.1} parent=0 // pred_check
    _
  $region23: #{bert_eeg_forward.1} parent=0 // pred_check_branch
    %23 = sbr.rel (0) target = $region25
  $region24: #{bert_eeg_forward.1} parent=0 // pred_region
    _
  $region25: #{bert_eeg_forward.1} parent=0 // pred_fallthru
    _
  // Predicated region
  $region26: #{bert_eeg_forward.1} parent=0 // pred_check
    _
  $region27: #{bert_eeg_forward.1} parent=0 // pred_check_branch
    %25 = sbr.rel (0) target = $region29
  $region28: #{bert_eeg_forward.1} parent=0 // pred_region
    _
  $region29: #{bert_eeg_forward.1} parent=0 // pred_fallthru
    _
  %vm27 = vcmask 392192
  %28 = vst.msk [vmem:[#allocation2] sm:$0xff] %vm27, 0.0
  %29 = vst.msk [vmem:[#allocation2 + $0x8] sm:$0xff] %vm27, 0.0
  %30 = vst.msk [vmem:[#allocation2 + $0x10] sm:$0xff] %vm27, 0.0
  %31 = vst.msk [vmem:[#allocation2 + $0x18] sm:$0xff] %vm27, 0.0
  %32 = vst.msk [vmem:[#allocation2 + $0x20] sm:$0xff] %vm27, 0.0
  %33 = vst.msk [vmem:[#allocation2 + $0x28] sm:$0xff] %vm27, 0.0
  %34 = vst.msk [vmem:[#allocation2 + $0x30] sm:$0xff] %vm27, 0.0
  %35 = vst.msk [vmem:[#allocation2 + $0x38] sm:$0xff] %vm27, 0.0
  %36 = vst.msk [vmem:[#allocation2 + $0x40] sm:$0xff] %vm27, 0.0
  %37 = vst.msk [vmem:[#allocation2 + $0x48] sm:$0xff] %vm27, 0.0
  %38 = vst.msk [vmem:[#allocation2 + $0x50] sm:$0xff] %vm27, 0.0
  %39 = vst.msk [vmem:[#allocation2 + $0x58] sm:$0xff] %vm27, 0.0
  %40 = vst.msk [vmem:[#allocation2 + $0x60] sm:$0xff] %vm27, 0.0
  %41 = vst.msk [vmem:[#allocation2 + $0x68] sm:$0xff] %vm27, 0.0
  %42 = vst.msk [vmem:[#allocation2 + $0x70] sm:$0xff] %vm27, 0.0
  %43 = vst.msk [vmem:[#allocation2 + $0x78] sm:$0xff] %vm27, 0.0
  %v44 = vld [vmem:[%s0] sm:$0xff]
  %v45 = vld [vmem:[%s0 + $0x8] sm:$0xff]
  %v46 = vld [vmem:[%s0 + $0x10] sm:$0xff]
  %v47 = vld [vmem:[%s0 + $0x18] sm:$0xff]
  %v48 = vld [vmem:[%s0 + $0x20] sm:$0xff]
  %v49 = vld [vmem:[%s0 + $0x28] sm:$0xff]
  %v50 = vld [vmem:[%s0 + $0x30] sm:$0xff]
  %v51 = vld [vmem:[%s0 + $0x38] sm:$0xf]
  %v52 = vld [vmem:[%s1] sm:$0xf]
  %v53 = vld [vmem:[%s1 + $0x4] sm:$0xf]
  %v54 = vld [vmem:[%s1 + $0x8] sm:$0xf]
  %v55 = vld [vmem:[%s1 + $0xc] sm:$0xf]
  %v56 = vld [vmem:[%s1 + $0x10] sm:$0xf]
  %v57 = vpack.c.bf16 %v45, %v44
  %v58 = vpack.c.bf16 %v47, %v46
  %v59 = vpack.c.bf16 %v49, %v48
  %v60 = vpack.c.bf16 %v51, %v50
  %v61 = vld [vmem:[%s2 + $0x1e] sm:$0x1]
  %v62 = vlaneseq
  %v63 = vshrl.u32 %v62, 7
  %v64 = vsub.s32 0, %v63
  %v65 = vrot.slane %v61, %v64
  %v71 = vunpack.c.l.b16 %v52
  %v72 = vunpack.c.l.b16 %v53
  %v73 = vunpack.c.l.b16 %v54
  %v74 = vunpack.c.l.b16 %v55
  %v75 = vunpack.c.l.b16 %v56
  %v76 = vpack.c.b16 %v72, %v71
  %v77 = vpack.c.b16 %v74, %v73
  %v78 = vpack.c.b16 %v75, %v75
  %vm81 = vcmask 326656
  %v83 = vsel %vm81, %v57, 0
  %v86 = vsel %vm81, %v58, 0
  %v89 = vsel %vm81, %v59, 0
  %v92 = vsel %vm81, %v60, 0
  %vm94 = vcmask 1043456
  %v96 = vsel %vm94, %v78, 0
  %98 = vmatprep.subr.bf16.mxu0 0
  %99 = vmatpush1.bf16.msra.mxu0 0
  %100 = vmatprep.subr.bf16.mxu0 0
  %101 = vmatpush1.bf16.msra.mxu0 0
  %102 = vmatprep.subr.bf16.mxu0 0
  %103 = vmatpush1.bf16.msra.mxu0 0
  %104 = vmatprep.subr.bf16.mxu0 0
  %105 = vmatpush1.bf16.msra.mxu0 0
  %106 = vmatprep.subr.bf16.mxu0 0
  %107 = vmatpush1.bf16.msra.mxu0 0
  %108 = vmatprep.subr.bf16.mxu0 0
  %109 = vmatpush1.bf16.msra.mxu0 %v96
  %110 = vmatprep.subr.bf16.mxu0 0
  %111 = vmatpush1.bf16.msra.mxu0 %v77
  %112 = vmatprep.subr.bf16.mxu0 0
  %113 = vmatpush1.bf16.msra.mxu0 %v76
  %114 = vmatprep.subr.bf16.mxu0 0
  %115 = vmatpush2.bf16.msra.mxu0 0
  %116 = vmatprep.subr.bf16.mxu0 0
  %117 = vmatpush2.bf16.msra.mxu0 0
  %118 = vmatprep.subr.bf16.mxu0 0
  %119 = vmatpush2.bf16.msra.mxu0 0
  %120 = vmatprep.subr.bf16.mxu0 0
  %121 = vmatpush2.bf16.msra.mxu0 0
  %122 = vmatprep.subr.bf16.mxu0 0
  %123 = vmatpush2.bf16.msra.mxu0 0
  %124 = vmatprep.subr.bf16.mxu0 0
  %125 = vmatpush2.bf16.msra.mxu0 0
  %126 = vmatprep.subr.bf16.mxu0 0
  %127 = vmatpush2.bf16.msra.mxu0 0
  %128 = vmatprep.subr.bf16.mxu0 0
  %129 = vmatpush2.bf16.msra.mxu0 0
  %130 = vmatprep.mubr.bf16.mxu0 0
  %131 = vmatmul.mubr.bf16.gmra.mxu0 %v83
  %v132 = vpop.f32.mrf.mxu0
  %v133 = vadd.f32 %v65, %v132
  %v134 = vpop.f32.mrf.mxu0
  %v135 = vpop.f32.mrf.mxu0
  %v136 = vadd.f32 %v65, %v135
  %v137 = vpop.f32.mrf.mxu0
  %138 = vmatprep.mubr.bf16.mxu0 0
  %139 = vmatmul.mubr.bf16.gmra.mxu0 %v86
  %v140 = vpop.f32.mrf.mxu0
  %v141 = vadd.f32 %v65, %v140
  %v142 = vpop.f32.mrf.mxu0
  %v143 = vpop.f32.mrf.mxu0
  %v144 = vadd.f32 %v65, %v143
  %v145 = vpop.f32.mrf.mxu0
  %146 = vmatprep.mubr.bf16.mxu0 0
  %147 = vmatmul.mubr.bf16.gmra.mxu0 %v89
  %v148 = vpop.f32.mrf.mxu0
  %v149 = vadd.f32 %v65, %v148
  %v150 = vpop.f32.mrf.mxu0
  %v151 = vpop.f32.mrf.mxu0
  %v152 = vadd.f32 %v65, %v151
  %v153 = vpop.f32.mrf.mxu0
  %154 = vmatprep.mubr.bf16.mxu0 0
  %155 = vmatmul.mubr.bf16.gmra.mxu0 %v92
  %v156 = vpop.f32.mrf.mxu0
  %v157 = vadd.f32 %v65, %v156
  %v158 = vpop.f32.mrf.mxu0
  %v159 = vpop.f32.mrf.mxu0
  %v160 = vadd.f32 %v65, %v159
  %v161 = vpop.f32.mrf.mxu0
  %162 = vdwg.mxu0
  %v163 = vmax.f32 %v133, 0.0
  %v164 = vmax.f32 %v136, 0.0
  %v165 = vmax.f32 %v141, 0.0
  %v166 = vmax.f32 %v144, 0.0
  %v167 = vmax.f32 %v149, 0.0
  %v168 = vmax.f32 %v152, 0.0
  %v169 = vmax.f32 %v157, 0.0
  %v170 = vmax.f32 %v160, 0.0
  %v171 = vld [vmem:[%s2] sm:$0xff]
  %v172 = vld [vmem:[%s2 + $0x8] sm:$0xff]
  %v173 = vld [vmem:[%s2 + $0x10] sm:$0xff]
  %v174 = vld [vmem:[%s2 + $0x18] sm:$0x3f]
  %v175 = vadd.f32 %v163, %v171
  %v176 = vadd.f32 %v164, %v172
  %v177 = vadd.f32 %v165, %v173
  %v178 = vadd.f32 %v166, %v174
  %v179 = vld [vmem:[%s2 + $0x1f] sm:$0x1]
  %vm180 = vcmask 523264
  %v181 = vsel %vm180, %v175, 0.0
  %182 = vadd.xlane.f32.xlu0 %v181
  %v183 = vpop.xlane.xlu0 %182
  %v184 = vsel %vm180, %v176, 0.0
  %185 = vadd.xlane.f32.xlu0 %v184
  %v186 = vpop.xlane.xlu0 %185
  %v187 = vsel %vm180, %v177, 0.0
  %188 = vadd.xlane.f32.xlu0 %v187
  %v189 = vpop.xlane.xlu0 %188
  %vm190 = vcmask 521216
  %v191 = vsel %vm190, %v178, 0.0
  %192 = vadd.xlane.f32.xlu0 %v191
  %v193 = vpop.xlane.xlu0 %192
  %v194 = vrcp.pop 64.0
  %v195 = vmul.f32 %v183, %v194
  %v196 = vmul.f32 %v186, %v194
  %v197 = vmul.f32 %v189, %v194
  %v198 = vmul.f32 %v193, %v194
  %v199 = vsub.f32 %v175, %v195
  %v200 = vsub.f32 %v176, %v196
  %v201 = vsub.f32 %v177, %v197
  %v202 = vsub.f32 %v178, %v198
  %v203 = vmul.f32 %v199, %v199
  %v204 = vmul.f32 %v200, %v200
  %v205 = vmul.f32 %v201, %v201
  %v206 = vmul.f32 %v202, %v202
  %v207 = vsel %vm180, %v203, 0.0
  %208 = vadd.xlane.f32.xlu0 %v207
  %v209 = vpop.xlane.xlu0 %208
  %v210 = vsel %vm180, %v204, 0.0
  %211 = vadd.xlane.f32.xlu0 %v210
  %v212 = vpop.xlane.xlu0 %211
  %v213 = vsel %vm180, %v205, 0.0
  %214 = vadd.xlane.f32.xlu0 %v213
  %v215 = vpop.xlane.xlu0 %214
  %v216 = vsel %vm190, %v206, 0.0
  %217 = vadd.xlane.f32.xlu0 %v216
  %v218 = vpop.xlane.xlu0 %217
  %v219 = vmul.f32 %v209, %v194
  %v220 = vmul.f32 %v212, %v194
  %v221 = vmul.f32 %v215, %v194
  %v222 = vmul.f32 %v218, %v194
  %v223 = vadd.f32 %v219, 1e-12
  %v224 = vadd.f32 %v220, 1e-12
  %v225 = vadd.f32 %v221, 1e-12
  %v226 = vadd.f32 %v222, 1e-12
  %v227 = vrsqrt.pop %v223
  %v228 = vrsqrt.pop %v224
  %v229 = vrsqrt.pop %v225
  %v230 = vrsqrt.pop %v226
  %v231 = vmul.f32 %v199, %v227
  %v232 = vmul.f32 %v200, %v228
  %v233 = vmul.f32 %v201, %v229
  %v234 = vmul.f32 %v202, %v230
  %236 = vrot.lane.b32.xlu0 %v65, 64
  %v237 = vpop.permute.xlu0 %236
  %v239 = vmul.f32 %v231, %v237
  %v240 = vmul.f32 %v232, %v237
  %v241 = vmul.f32 %v233, %v237
  %v242 = vmul.f32 %v234, %v237
  %v243 = vlaneseq
  %v244 = vshrl.u32 %v243, 7
  %v245 = vsub.s32 0, %v244
  %v246 = vrot.slane %v179, %v245
  %v247 = vadd.f32 %v239, %v246
  %v248 = vadd.f32 %v240, %v246
  %v249 = vadd.f32 %v241, %v246
  %v250 = vadd.f32 %v242, %v246
  %v251 = vlaneseq
  %v252 = vshrl.u32 %v251, 7
  %v253 = vadd.s32 %v252, 8
  %v254 = vadd.s32 %v252, 16
  %v255 = vadd.s32 %v252, 24
  %v256 = vadd.s32 %v252, 32
  %v257 = vadd.s32 %v252, 40
  %v258 = vadd.s32 %v252, 48
  %v259 = vadd.s32 %v252, 56
  %v260 = vadd.s32 %v252, 64
  %v261 = vadd.s32 %v252, 72
  %v262 = vadd.s32 %v252, 80
  %v263 = vadd.s32 %v252, 88
  %v264 = vadd.s32 %v252, 96
  %v265 = vadd.s32 %v252, 104
  %v266 = vadd.s32 %v252, 112
  %v267 = vadd.s32 %v252, 120
  %v268 = vlaneseq
  %v269 = vand.u32 %v268, 127
  %vm270 = vcmp.ge.s32.totalorder %v252, 32
  %vm271 = vcmp.ge.s32.totalorder %v253, 32
  %vm272 = vcmp.ge.s32.totalorder %v254, 32
  %vm273 = vcmp.ge.s32.totalorder %v255, 32
  %vm274 = vcmp.ge.s32.totalorder %v256, 32
  %vm275 = vcmp.ge.s32.totalorder %v257, 32
  %vm276 = vcmp.ge.s32.totalorder %v258, 32
  %vm277 = vcmp.ge.s32.totalorder %v259, 32
  %vm278 = vcmp.ge.s32.totalorder %v260, 32
  %vm279 = vcmp.ge.s32.totalorder %v261, 32
  %vm280 = vcmp.ge.s32.totalorder %v262, 32
  %vm281 = vcmp.ge.s32.totalorder %v263, 32
  %vm282 = vcmp.ge.s32.totalorder %v264, 32
  %vm283 = vcmp.ge.s32.totalorder %v265, 32
  %vm284 = vcmp.ge.s32.totalorder %v266, 32
  %vm285 = vcmp.ge.s32.totalorder %v267, 32
  %v286 = vsel %vm270, 1, 0
  %v287 = vsel %vm271, 1, 0
  %v288 = vsel %vm272, 1, 0
  %v289 = vsel %vm273, 1, 0
  %v290 = vsel %vm274, 1, 0
  %v291 = vsel %vm275, 1, 0
  %v292 = vsel %vm276, 1, 0
  %v293 = vsel %vm277, 1, 0
  %v294 = vsel %vm278, 1, 0
  %v295 = vsel %vm279, 1, 0
  %v296 = vsel %vm280, 1, 0
  %v297 = vsel %vm281, 1, 0
  %v298 = vsel %vm282, 1, 0
  %v299 = vsel %vm283, 1, 0
  %v300 = vsel %vm284, 1, 0
  %v301 = vsel %vm285, 1, 0
  %vm302 = vcmp.ge.s32.totalorder %v252, 64
  %vm303 = vcmp.ge.s32.totalorder %v253, 64
  %vm304 = vcmp.ge.s32.totalorder %v254, 64
  %vm305 = vcmp.ge.s32.totalorder %v255, 64
  %vm306 = vcmp.ge.s32.totalorder %v256, 64
  %vm307 = vcmp.ge.s32.totalorder %v257, 64
  %vm308 = vcmp.ge.s32.totalorder %v258, 64
  %vm309 = vcmp.ge.s32.totalorder %v259, 64
  %vm310 = vcmp.ge.s32.totalorder %v260, 64
  %vm311 = vcmp.ge.s32.totalorder %v261, 64
  %vm312 = vcmp.ge.s32.totalorder %v262, 64
  %vm313 = vcmp.ge.s32.totalorder %v263, 64
  %vm314 = vcmp.ge.s32.totalorder %v264, 64
  %vm315 = vcmp.ge.s32.totalorder %v265, 64
  %vm316 = vcmp.ge.s32.totalorder %v266, 64
  %vm317 = vcmp.ge.s32.totalorder %v267, 64
  %v318 = vsel %vm302, 1, 0
  %v319 = vsel %vm303, 1, 0
  %v320 = vsel %vm304, 1, 0
  %v321 = vsel %vm305, 1, 0
  %v322 = vsel %vm306, 1, 0
  %v323 = vsel %vm307, 1, 0
  %v324 = vsel %vm308, 1, 0
  %v325 = vsel %vm309, 1, 0
  %v326 = vsel %vm310, 1, 0
  %v327 = vsel %vm311, 1, 0
  %v328 = vsel %vm312, 1, 0
  %v329 = vsel %vm313, 1, 0
  %v330 = vsel %vm314, 1, 0
  %v331 = vsel %vm315, 1, 0
  %v332 = vsel %vm316, 1, 0
  %v333 = vsel %vm317, 1, 0
  %v334 = vadd.s32 %v286, %v318
  %v335 = vadd.s32 %v287, %v319
  %v336 = vadd.s32 %v288, %v320
  %v337 = vadd.s32 %v289, %v321
  %v338 = vadd.s32 %v290, %v322
  %v339 = vadd.s32 %v291, %v323
  %v340 = vadd.s32 %v292, %v324
  %v341 = vadd.s32 %v293, %v325
  %v342 = vadd.s32 %v294, %v326
  %v343 = vadd.s32 %v295, %v327
  %v344 = vadd.s32 %v296, %v328
  %v345 = vadd.s32 %v297, %v329
  %v346 = vadd.s32 %v298, %v330
  %v347 = vadd.s32 %v299, %v331
  %v348 = vadd.s32 %v300, %v332
  %v349 = vadd.s32 %v301, %v333
  %vm350 = vcmp.ge.s32.totalorder %v252, 96
  %vm351 = vcmp.ge.s32.totalorder %v253, 96
  %vm352 = vcmp.ge.s32.totalorder %v254, 96
  %vm353 = vcmp.ge.s32.totalorder %v255, 96
  %vm354 = vcmp.ge.s32.totalorder %v256, 96
  %vm355 = vcmp.ge.s32.totalorder %v257, 96
  %vm356 = vcmp.ge.s32.totalorder %v258, 96
  %vm357 = vcmp.ge.s32.totalorder %v259, 96
  %vm358 = vcmp.ge.s32.totalorder %v260, 96
  %vm359 = vcmp.ge.s32.totalorder %v261, 96
  %vm360 = vcmp.ge.s32.totalorder %v262, 96
  %vm361 = vcmp.ge.s32.totalorder %v263, 96
  %vm362 = vcmp.ge.s32.totalorder %v264, 96
  %vm363 = vcmp.ge.s32.totalorder %v265, 96
  %vm364 = vcmp.ge.s32.totalorder %v266, 96
  %vm365 = vcmp.ge.s32.totalorder %v267, 96
  %v366 = vsel %vm350, 1, 0
  %v367 = vsel %vm351, 1, 0
  %v368 = vsel %vm352, 1, 0
  %v369 = vsel %vm353, 1, 0
  %v370 = vsel %vm354, 1, 0
  %v371 = vsel %vm355, 1, 0
  %v372 = vsel %vm356, 1, 0
  %v373 = vsel %vm357, 1, 0
  %v374 = vsel %vm358, 1, 0
  %v375 = vsel %vm359, 1, 0
  %v376 = vsel %vm360, 1, 0
  %v377 = vsel %vm361, 1, 0
  %v378 = vsel %vm362, 1, 0
  %v379 = vsel %vm363, 1, 0
  %v380 = vsel %vm364, 1, 0
  %v381 = vsel %vm365, 1, 0
  %v382 = vadd.s32 %v334, %v366
  %v383 = vadd.s32 %v335, %v367
  %v384 = vadd.s32 %v336, %v368
  %v385 = vadd.s32 %v337, %v369
  %v386 = vadd.s32 %v338, %v370
  %v387 = vadd.s32 %v339, %v371
  %v388 = vadd.s32 %v340, %v372
  %v389 = vadd.s32 %v341, %v373
  %v390 = vadd.s32 %v342, %v374
  %v391 = vadd.s32 %v343, %v375
  %v392 = vadd.s32 %v344, %v376
  %v393 = vadd.s32 %v345, %v377
  %v394 = vadd.s32 %v346, %v378
  %v395 = vadd.s32 %v347, %v379
  %v396 = vadd.s32 %v348, %v380
  %v397 = vadd.s32 %v349, %v381
  %v398 = vmul.u32 %v382, 32
  %v399 = vmul.u32 %v383, 32
  %v400 = vmul.u32 %v384, 32
  %v401 = vmul.u32 %v385, 32
  %v402 = vmul.u32 %v386, 32
  %v403 = vmul.u32 %v387, 32
  %v404 = vmul.u32 %v388, 32
  %v405 = vmul.u32 %v389, 32
  %v406 = vmul.u32 %v390, 32
  %v407 = vmul.u32 %v391, 32
  %v408 = vmul.u32 %v392, 32
  %v409 = vmul.u32 %v393, 32
  %v410 = vmul.u32 %v394, 32
  %v411 = vmul.u32 %v395, 32
  %v412 = vmul.u32 %v396, 32
  %v413 = vmul.u32 %v397, 32
  %v414 = vsub.s32 %v252, %v398
  %v415 = vsub.s32 %v253, %v399
  %v416 = vsub.s32 %v254, %v400
  %v417 = vsub.s32 %v255, %v401
  %v418 = vsub.s32 %v256, %v402
  %v419 = vsub.s32 %v257, %v403
  %v420 = vsub.s32 %v258, %v404
  %v421 = vsub.s32 %v259, %v405
  %v422 = vsub.s32 %v260, %v406
  %v423 = vsub.s32 %v261, %v407
  %v424 = vsub.s32 %v262, %v408
  %v425 = vsub.s32 %v263, %v409
  %v426 = vsub.s32 %v264, %v410
  %v427 = vsub.s32 %v265, %v411
  %v428 = vsub.s32 %v266, %v412
  %v429 = vsub.s32 %v267, %v413
  %vm430 = vcmp.ge.s32.totalorder %v414, 5
  %vm431 = vcmp.ge.s32.totalorder %v415, 5
  %vm432 = vcmp.ge.s32.totalorder %v416, 5
  %vm433 = vcmp.ge.s32.totalorder %v417, 5
  %vm434 = vcmp.ge.s32.totalorder %v418, 5
  %vm435 = vcmp.ge.s32.totalorder %v419, 5
  %vm436 = vcmp.ge.s32.totalorder %v420, 5
  %vm437 = vcmp.ge.s32.totalorder %v421, 5
  %vm438 = vcmp.ge.s32.totalorder %v422, 5
  %vm439 = vcmp.ge.s32.totalorder %v423, 5
  %vm440 = vcmp.ge.s32.totalorder %v424, 5
  %vm441 = vcmp.ge.s32.totalorder %v425, 5
  %vm442 = vcmp.ge.s32.totalorder %v426, 5
  %vm443 = vcmp.ge.s32.totalorder %v427, 5
  %vm444 = vcmp.ge.s32.totalorder %v428, 5
  %vm445 = vcmp.ge.s32.totalorder %v429, 5
  %v446 = vsel %vm430, 1, 0
  %v447 = vsel %vm431, 1, 0
  %v448 = vsel %vm432, 1, 0
  %v449 = vsel %vm433, 1, 0
  %v450 = vsel %vm434, 1, 0
  %v451 = vsel %vm435, 1, 0
  %v452 = vsel %vm436, 1, 0
  %v453 = vsel %vm437, 1, 0
  %v454 = vsel %vm438, 1, 0
  %v455 = vsel %vm439, 1, 0
  %v456 = vsel %vm440, 1, 0
  %v457 = vsel %vm441, 1, 0
  %v458 = vsel %vm442, 1, 0
  %v459 = vsel %vm443, 1, 0
  %v460 = vsel %vm444, 1, 0
  %v461 = vsel %vm445, 1, 0
  %vm462 = vcmp.ge.s32.totalorder %v414, 10
  %vm463 = vcmp.ge.s32.totalorder %v415, 10
  %vm464 = vcmp.ge.s32.totalorder %v416, 10
  %vm465 = vcmp.ge.s32.totalorder %v417, 10
  %vm466 = vcmp.ge.s32.totalorder %v418, 10
  %vm467 = vcmp.ge.s32.totalorder %v419, 10
  %vm468 = vcmp.ge.s32.totalorder %v420, 10
  %vm469 = vcmp.ge.s32.totalorder %v421, 10
  %vm470 = vcmp.ge.s32.totalorder %v422, 10
  %vm471 = vcmp.ge.s32.totalorder %v423, 10
  %vm472 = vcmp.ge.s32.totalorder %v424, 10
  %vm473 = vcmp.ge.s32.totalorder %v425, 10
  %vm474 = vcmp.ge.s32.totalorder %v426, 10
  %vm475 = vcmp.ge.s32.totalorder %v427, 10
  %vm476 = vcmp.ge.s32.totalorder %v428, 10
  %vm477 = vcmp.ge.s32.totalorder %v429, 10
  %v478 = vsel %vm462, 1, 0
  %v479 = vsel %vm463, 1, 0
  %v480 = vsel %vm464, 1, 0
  %v481 = vsel %vm465, 1, 0
  %v482 = vsel %vm466, 1, 0
  %v483 = vsel %vm467, 1, 0
  %v484 = vsel %vm468, 1, 0
  %v485 = vsel %vm469, 1, 0
  %v486 = vsel %vm470, 1, 0
  %v487 = vsel %vm471, 1, 0
  %v488 = vsel %vm472, 1, 0
  %v489 = vsel %vm473, 1, 0
  %v490 = vsel %vm474, 1, 0
  %v491 = vsel %vm475, 1, 0
  %v492 = vsel %vm476, 1, 0
  %v493 = vsel %vm477, 1, 0
  %v494 = vadd.s32 %v446, %v478
  %v495 = vadd.s32 %v447, %v479
  %v496 = vadd.s32 %v448, %v480
  %v497 = vadd.s32 %v449, %v481
  %v498 = vadd.s32 %v450, %v482
  %v499 = vadd.s32 %v451, %v483
  %v500 = vadd.s32 %v452, %v484
  %v501 = vadd.s32 %v453, %v485
  %v502 = vadd.s32 %v454, %v486
  %v503 = vadd.s32 %v455, %v487
  %v504 = vadd.s32 %v456, %v488
  %v505 = vadd.s32 %v457, %v489
  %v506 = vadd.s32 %v458, %v490
  %v507 = vadd.s32 %v459, %v491
  %v508 = vadd.s32 %v460, %v492
  %v509 = vadd.s32 %v461, %v493
  %vm510 = vcmp.ge.s32.totalorder %v414, 15
  %vm511 = vcmp.ge.s32.totalorder %v415, 15
  %vm512 = vcmp.ge.s32.totalorder %v416, 15
  %vm513 = vcmp.ge.s32.totalorder %v417, 15
  %vm514 = vcmp.ge.s32.totalorder %v418, 15
  %vm515 = vcmp.ge.s32.totalorder %v419, 15
  %vm516 = vcmp.ge.s32.totalorder %v420, 15
  %vm517 = vcmp.ge.s32.totalorder %v421, 15
  %vm518 = vcmp.ge.s32.totalorder %v422, 15
  %vm519 = vcmp.ge.s32.totalorder %v423, 15
  %vm520 = vcmp.ge.s32.totalorder %v424, 15
  %vm521 = vcmp.ge.s32.totalorder %v425, 15
  %vm522 = vcmp.ge.s32.totalorder %v426, 15
  %vm523 = vcmp.ge.s32.totalorder %v427, 15
  %vm524 = vcmp.ge.s32.totalorder %v428, 15
  %vm525 = vcmp.ge.s32.totalorder %v429, 15
  %v526 = vsel %vm510, 1, 0
  %v527 = vsel %vm511, 1, 0
  %v528 = vsel %vm512, 1, 0
  %v529 = vsel %vm513, 1, 0
  %v530 = vsel %vm514, 1, 0
  %v531 = vsel %vm515, 1, 0
  %v532 = vsel %vm516, 1, 0
  %v533 = vsel %vm517, 1, 0
  %v534 = vsel %vm518, 1, 0
  %v535 = vsel %vm519, 1, 0
  %v536 = vsel %vm520, 1, 0
  %v537 = vsel %vm521, 1, 0
  %v538 = vsel %vm522, 1, 0
  %v539 = vsel %vm523, 1, 0
  %v540 = vsel %vm524, 1, 0
  %v541 = vsel %vm525, 1, 0
  %v542 = vadd.s32 %v494, %v526
  %v543 = vadd.s32 %v495, %v527
  %v544 = vadd.s32 %v496, %v528
  %v545 = vadd.s32 %v497, %v529
  %v546 = vadd.s32 %v498, %v530
  %v547 = vadd.s32 %v499, %v531
  %v548 = vadd.s32 %v500, %v532
  %v549 = vadd.s32 %v501, %v533
  %v550 = vadd.s32 %v502, %v534
  %v551 = vadd.s32 %v503, %v535
  %v552 = vadd.s32 %v504, %v536
  %v553 = vadd.s32 %v505, %v537
  %v554 = vadd.s32 %v506, %v538
  %v555 = vadd.s32 %v507, %v539
  %v556 = vadd.s32 %v508, %v540
  %v557 = vadd.s32 %v509, %v541
  %vm558 = vcmp.ge.s32.totalorder %v414, 20
  %vm559 = vcmp.ge.s32.totalorder %v415, 20
  %vm560 = vcmp.ge.s32.totalorder %v416, 20
  %vm561 = vcmp.ge.s32.totalorder %v417, 20
  %vm562 = vcmp.ge.s32.totalorder %v418, 20
  %vm563 = vcmp.ge.s32.totalorder %v419, 20
  %vm564 = vcmp.ge.s32.totalorder %v420, 20
  %vm565 = vcmp.ge.s32.totalorder %v421, 20
  %vm566 = vcmp.ge.s32.totalorder %v422, 20
  %vm567 = vcmp.ge.s32.totalorder %v423, 20
  %vm568 = vcmp.ge.s32.totalorder %v424, 20
  %vm569 = vcmp.ge.s32.totalorder %v425, 20
  %vm570 = vcmp.ge.s32.totalorder %v426, 20
  %vm571 = vcmp.ge.s32.totalorder %v427, 20
  %vm572 = vcmp.ge.s32.totalorder %v428, 20
  %vm573 = vcmp.ge.s32.totalorder %v429, 20
  %v574 = vsel %vm558, 1, 0
  %v575 = vsel %vm559, 1, 0
  %v576 = vsel %vm560, 1, 0
  %v577 = vsel %vm561, 1, 0
  %v578 = vsel %vm562, 1, 0
  %v579 = vsel %vm563, 1, 0
  %v580 = vsel %vm564, 1, 0
  %v581 = vsel %vm565, 1, 0
  %v582 = vsel %vm566, 1, 0
  %v583 = vsel %vm567, 1, 0
  %v584 = vsel %vm568, 1, 0
  %v585 = vsel %vm569, 1, 0
  %v586 = vsel %vm570, 1, 0
  %v587 = vsel %vm571, 1, 0
  %v588 = vsel %vm572, 1, 0
  %v589 = vsel %vm573, 1, 0
  %v590 = vadd.s32 %v542, %v574
  %v591 = vadd.s32 %v543, %v575
  %v592 = vadd.s32 %v544, %v576
  %v593 = vadd.s32 %v545, %v577
  %v594 = vadd.s32 %v546, %v578
  %v595 = vadd.s32 %v547, %v579
  %v596 = vadd.s32 %v548, %v580
  %v597 = vadd.s32 %v549, %v581
  %v598 = vadd.s32 %v550, %v582
  %v599 = vadd.s32 %v551, %v583
  %v600 = vadd.s32 %v552, %v584
  %v601 = vadd.s32 %v553, %v585
  %v602 = vadd.s32 %v554, %v586
  %v603 = vadd.s32 %v555, %v587
  %v604 = vadd.s32 %v556, %v588
  %v605 = vadd.s32 %v557, %v589
  %vm606 = vcmp.ge.s32.totalorder %v414, 25
  %vm607 = vcmp.ge.s32.totalorder %v415, 25
  %vm608 = vcmp.ge.s32.totalorder %v416, 25
  %vm609 = vcmp.ge.s32.totalorder %v417, 25
  %vm610 = vcmp.ge.s32.totalorder %v418, 25
  %vm611 = vcmp.ge.s32.totalorder %v419, 25
  %vm612 = vcmp.ge.s32.totalorder %v420, 25
  %vm613 = vcmp.ge.s32.totalorder %v421, 25
  %vm614 = vcmp.ge.s32.totalorder %v422, 25
  %vm615 = vcmp.ge.s32.totalorder %v423, 25
  %vm616 = vcmp.ge.s32.totalorder %v424, 25
  %vm617 = vcmp.ge.s32.totalorder %v425, 25
  %vm618 = vcmp.ge.s32.totalorder %v426, 25
  %vm619 = vcmp.ge.s32.totalorder %v427, 25
  %vm620 = vcmp.ge.s32.totalorder %v428, 25
  %vm621 = vcmp.ge.s32.totalorder %v429, 25
  %v622 = vsel %vm606, 1, 0
  %v623 = vsel %vm607, 1, 0
  %v624 = vsel %vm608, 1, 0
  %v625 = vsel %vm609, 1, 0
  %v626 = vsel %vm610, 1, 0
  %v627 = vsel %vm611, 1, 0
  %v628 = vsel %vm612, 1, 0
  %v629 = vsel %vm613, 1, 0
  %v630 = vsel %vm614, 1, 0
  %v631 = vsel %vm615, 1, 0
  %v632 = vsel %vm616, 1, 0
  %v633 = vsel %vm617, 1, 0
  %v634 = vsel %vm618, 1, 0
  %v635 = vsel %vm619, 1, 0
  %v636 = vsel %vm620, 1, 0
  %v637 = vsel %vm621, 1, 0
  %v638 = vadd.s32 %v590, %v622
  %v639 = vadd.s32 %v591, %v623
  %v640 = vadd.s32 %v592, %v624
  %v641 = vadd.s32 %v593, %v625
  %v642 = vadd.s32 %v594, %v626
  %v643 = vadd.s32 %v595, %v627
  %v644 = vadd.s32 %v596, %v628
  %v645 = vadd.s32 %v597, %v629
  %v646 = vadd.s32 %v598, %v630
  %v647 = vadd.s32 %v599, %v631
  %v648 = vadd.s32 %v600, %v632
  %v649 = vadd.s32 %v601, %v633
  %v650 = vadd.s32 %v602, %v634
  %v651 = vadd.s32 %v603, %v635
  %v652 = vadd.s32 %v604, %v636
  %v653 = vadd.s32 %v605, %v637
  %vm654 = vcmp.ge.s32.totalorder %v414, 30
  %vm655 = vcmp.ge.s32.totalorder %v415, 30
  %vm656 = vcmp.ge.s32.totalorder %v416, 30
  %vm657 = vcmp.ge.s32.totalorder %v417, 30
  %vm658 = vcmp.ge.s32.totalorder %v418, 30
  %vm659 = vcmp.ge.s32.totalorder %v419, 30
  %vm660 = vcmp.ge.s32.totalorder %v420, 30
  %vm661 = vcmp.ge.s32.totalorder %v421, 30
  %vm662 = vcmp.ge.s32.totalorder %v422, 30
  %vm663 = vcmp.ge.s32.totalorder %v423, 30
  %vm664 = vcmp.ge.s32.totalorder %v424, 30
  %vm665 = vcmp.ge.s32.totalorder %v425, 30
  %vm666 = vcmp.ge.s32.totalorder %v426, 30
  %vm667 = vcmp.ge.s32.totalorder %v427, 30
  %vm668 = vcmp.ge.s32.totalorder %v428, 30
  %vm669 = vcmp.ge.s32.totalorder %v429, 30
  %v670 = vsel %vm654, 1, 0
  %v671 = vsel %vm655, 1, 0
  %v672 = vsel %vm656, 1, 0
  %v673 = vsel %vm657, 1, 0
  %v674 = vsel %vm658, 1, 0
  %v675 = vsel %vm659, 1, 0
  %v676 = vsel %vm660, 1, 0
  %v677 = vsel %vm661, 1, 0
  %v678 = vsel %vm662, 1, 0
  %v679 = vsel %vm663, 1, 0
  %v680 = vsel %vm664, 1, 0
  %v681 = vsel %vm665, 1, 0
  %v682 = vsel %vm666, 1, 0
  %v683 = vsel %vm667, 1, 0
  %v684 = vsel %vm668, 1, 0
  %v685 = vsel %vm669, 1, 0
  %v686 = vadd.s32 %v638, %v670
  %v687 = vadd.s32 %v639, %v671
  %v688 = vadd.s32 %v640, %v672
  %v689 = vadd.s32 %v641, %v673
  %v690 = vadd.s32 %v642, %v674
  %v691 = vadd.s32 %v643, %v675
  %v692 = vadd.s32 %v644, %v676
  %v693 = vadd.s32 %v645, %v677
  %v694 = vadd.s32 %v646, %v678
  %v695 = vadd.s32 %v647, %v679
  %v696 = vadd.s32 %v648, %v680
  %v697 = vadd.s32 %v649, %v681
  %v698 = vadd.s32 %v650, %v682
  %v699 = vadd.s32 %v651, %v683
  %v700 = vadd.s32 %v652, %v684
  %v701 = vadd.s32 %v653, %v685
  %vm702 = vcmp.ge.s32.totalorder %v269, 32
  %v703 = vsel %vm702, 1, 0
  %vm704 = vcmp.ge.s32.totalorder %v269, 64
  %v705 = vsel %vm704, 1, 0
  %v706 = vadd.s32 %v703, %v705
  %vm707 = vcmp.ge.s32.totalorder %v269, 96
  %v708 = vsel %vm707, 1, 0
  %v709 = vadd.s32 %v706, %v708
  %v710 = vmul.u32 %v709, 32
  %v711 = vsub.s32 %v269, %v710
  %vm712 = vcmp.ge.s32.totalorder %v711, 5
  %v713 = vsel %vm712, 1, 0
  %vm714 = vcmp.ge.s32.totalorder %v711, 10
  %v715 = vsel %vm714, 1, 0
  %v716 = vadd.s32 %v713, %v715
  %vm717 = vcmp.ge.s32.totalorder %v711, 15
  %v718 = vsel %vm717, 1, 0
  %v719 = vadd.s32 %v716, %v718
  %vm720 = vcmp.ge.s32.totalorder %v711, 20
  %v721 = vsel %vm720, 1, 0
  %v722 = vadd.s32 %v719, %v721
  %vm723 = vcmp.ge.s32.totalorder %v711, 25
  %v724 = vsel %vm723, 1, 0
  %v725 = vadd.s32 %v722, %v724
  %vm726 = vcmp.ge.s32.totalorder %v711, 30
  %v727 = vsel %vm726, 1, 0
  %v728 = vadd.s32 %v725, %v727
  %vm729 = vcmp.eq.s32.totalorder %v382, %v709
  %vm730 = vcmp.eq.s32.totalorder %v383, %v709
  %vm731 = vcmp.eq.s32.totalorder %v384, %v709
  %vm732 = vcmp.eq.s32.totalorder %v385, %v709
  %vm733 = vcmp.eq.s32.totalorder %v386, %v709
  %vm734 = vcmp.eq.s32.totalorder %v387, %v709
  %vm735 = vcmp.eq.s32.totalorder %v388, %v709
  %vm736 = vcmp.eq.s32.totalorder %v389, %v709
  %vm737 = vcmp.eq.s32.totalorder %v390, %v709
  %vm738 = vcmp.eq.s32.totalorder %v391, %v709
  %vm739 = vcmp.eq.s32.totalorder %v392, %v709
  %vm740 = vcmp.eq.s32.totalorder %v393, %v709
  %vm741 = vcmp.eq.s32.totalorder %v394, %v709
  %vm742 = vcmp.eq.s32.totalorder %v395, %v709
  %vm743 = vcmp.eq.s32.totalorder %v396, %v709
  %vm744 = vcmp.eq.s32.totalorder %v397, %v709
  %vm745 = vcmp.eq.s32.totalorder %v686, %v728
  %vm746 = vcmp.eq.s32.totalorder %v687, %v728
  %vm747 = vcmp.eq.s32.totalorder %v688, %v728
  %vm748 = vcmp.eq.s32.totalorder %v689, %v728
  %vm749 = vcmp.eq.s32.totalorder %v690, %v728
  %vm750 = vcmp.eq.s32.totalorder %v691, %v728
  %vm751 = vcmp.eq.s32.totalorder %v692, %v728
  %vm752 = vcmp.eq.s32.totalorder %v693, %v728
  %vm753 = vcmp.eq.s32.totalorder %v694, %v728
  %vm754 = vcmp.eq.s32.totalorder %v695, %v728
  %vm755 = vcmp.eq.s32.totalorder %v696, %v728
  %vm756 = vcmp.eq.s32.totalorder %v697, %v728
  %vm757 = vcmp.eq.s32.totalorder %v698, %v728
  %vm758 = vcmp.eq.s32.totalorder %v699, %v728
  %vm759 = vcmp.eq.s32.totalorder %v700, %v728
  %vm760 = vcmp.eq.s32.totalorder %v701, %v728
  %vm761 = vmand %vm729, %vm745
  %vm762 = vmand %vm730, %vm746
  %vm763 = vmand %vm731, %vm747
  %vm764 = vmand %vm732, %vm748
  %vm765 = vmand %vm733, %vm749
  %vm766 = vmand %vm734, %vm750
  %vm767 = vmand %vm735, %vm751
  %vm768 = vmand %vm736, %vm752
  %vm769 = vmand %vm737, %vm753
  %vm770 = vmand %vm738, %vm754
  %vm771 = vmand %vm739, %vm755
  %vm772 = vmand %vm740, %vm756
  %vm773 = vmand %vm741, %vm757
  %vm774 = vmand %vm742, %vm758
  %vm775 = vmand %vm743, %vm759
  %vm776 = vmand %vm744, %vm760
  %v777 = vsel %vm761, 0.0, -1e+30
  %v778 = vsel %vm762, 0.0, -1e+30
  %v779 = vsel %vm763, 0.0, -1e+30
  %v780 = vsel %vm764, 0.0, -1e+30
  %v781 = vsel %vm765, 0.0, -1e+30
  %v782 = vsel %vm766, 0.0, -1e+30
  %v783 = vsel %vm767, 0.0, -1e+30
  %v784 = vsel %vm768, 0.0, -1e+30
  %v785 = vsel %vm769, 0.0, -1e+30
  %v786 = vsel %vm770, 0.0, -1e+30
  %v787 = vsel %vm771, 0.0, -1e+30
  %v788 = vsel %vm772, 0.0, -1e+30
  %v789 = vsel %vm773, 0.0, -1e+30
  %v790 = vsel %vm774, 0.0, -1e+30
  %v791 = vsel %vm775, 0.0, -1e+30
  %v792 = vsel %vm776, 0.0, -1e+30
  %v793 = vld [vmem:[%s3] sm:$0xff]
  %v794 = vld [vmem:[%s3 + $0x8] sm:$0xff]
  %v795 = vld [vmem:[%s3 + $0x10] sm:$0xff]
  %v796 = vld [vmem:[%s3 + $0x18] sm:$0xff]
  %v797 = vld [vmem:[%s3 + $0x20] sm:$0xff]
  %v798 = vld [vmem:[%s3 + $0x28] sm:$0xff]
  %v799 = vld [vmem:[%s3 + $0x30] sm:$0xff]
  %v800 = vld [vmem:[%s3 + $0x38] sm:$0xff]
  %v801 = vpack.c.bf16 %v248, %v247
  %v802 = vpack.c.bf16 %v250, %v249
  %v811 = vunpack.c.l.b16 %v793
  %v812 = vunpack.c.h.b16 %v793
  %v813 = vunpack.c.l.b16 %v794
  %v814 = vunpack.c.h.b16 %v794
  %v815 = vunpack.c.l.b16 %v795
  %v816 = vunpack.c.h.b16 %v795
  %v817 = vunpack.c.l.b16 %v796
  %v818 = vunpack.c.h.b16 %v796
  %v819 = vunpack.c.l.b16 %v797
  %v820 = vunpack.c.h.b16 %v797
  %v821 = vunpack.c.l.b16 %v798
  %v822 = vunpack.c.h.b16 %v798
  %v823 = vunpack.c.l.b16 %v799
  %v824 = vunpack.c.h.b16 %v799
  %v825 = vunpack.c.l.b16 %v800
  %v826 = vunpack.c.h.b16 %v800
  %v827 = vpack.c.b16 %v813, %v811
  %v828 = vpack.c.b16 %v814, %v812
  %v829 = vpack.c.b16 %v817, %v815
  %v830 = vpack.c.b16 %v818, %v816
  %v831 = vpack.c.b16 %v821, %v819
  %v832 = vpack.c.b16 %v822, %v820
  %v833 = vpack.c.b16 %v825, %v823
  %v834 = vpack.c.b16 %v826, %v824
  %v844 = vsel %vm180, %v801, 0
  %v847 = vsel %vm180, %v802, 0
  %849 = vmatprep.subr.bf16.mxu0 0
  %850 = vmatpush1.bf16.msra.mxu0 0
  %851 = vmatprep.subr.bf16.mxu0 0
  %852 = vmatpush1.bf16.msra.mxu0 0
  %853 = vmatprep.subr.bf16.mxu0 0
  %854 = vmatpush1.bf16.msra.mxu0 0
  %855 = vmatprep.subr.bf16.mxu0 0
  %856 = vmatpush1.bf16.msra.mxu0 0
  %857 = vmatprep.subr.bf16.mxu0 %v834
  %858 = vmatpush1.bf16.msra.mxu0 %v833
  %859 = vmatprep.subr.bf16.mxu0 %v832
  %860 = vmatpush1.bf16.msra.mxu0 %v831
  %861 = vmatprep.subr.bf16.mxu0 %v830
  %862 = vmatpush1.bf16.msra.mxu0 %v829
  %863 = vmatprep.subr.bf16.mxu0 %v828
  %864 = vmatpush1.bf16.msra.mxu0 %v827
  %865 = vmatprep.subr.bf16.mxu0 0
  %866 = vmatpush2.bf16.msra.mxu0 0
  %867 = vmatprep.subr.bf16.mxu0 0
  %868 = vmatpush2.bf16.msra.mxu0 0
  %869 = vmatprep.subr.bf16.mxu0 0
  %870 = vmatpush2.bf16.msra.mxu0 0
  %871 = vmatprep.subr.bf16.mxu0 0
  %872 = vmatpush2.bf16.msra.mxu0 0
  %873 = vmatprep.subr.bf16.mxu0 0
  %874 = vmatpush2.bf16.msra.mxu0 0
  %875 = vmatprep.subr.bf16.mxu0 0
  %876 = vmatpush2.bf16.msra.mxu0 0
  %877 = vmatprep.subr.bf16.mxu0 0
  %878 = vmatpush2.bf16.msra.mxu0 0
  %879 = vmatprep.subr.bf16.mxu0 0
  %880 = vmatpush2.bf16.msra.mxu0 0
  %881 = vmatprep.mubr.bf16.mxu0 0
  %882 = vmatmul.mubr.bf16.gmra.mxu0 %v844
  %v883 = vpop.f32.mrf.mxu0
  %v884 = vadd.f32 0.0, %v883
  %v885 = vpop.f32.mrf.mxu0
  %v886 = vadd.f32 0.0, %v885
  %v887 = vpop.f32.mrf.mxu0
  %v888 = vadd.f32 0.0, %v887
  %v889 = vpop.f32.mrf.mxu0
  %v890 = vadd.f32 0.0, %v889
  %891 = vmatprep.mubr.bf16.mxu0 0
  %892 = vmatmul.mubr.bf16.gmra.mxu0 %v847
  %v893 = vpop.f32.mrf.mxu0
  %v894 = vadd.f32 0.0, %v893
  %v895 = vpop.f32.mrf.mxu0
  %v896 = vadd.f32 0.0, %v895
  %v897 = vpop.f32.mrf.mxu0
  %v898 = vadd.f32 0.0, %v897
  %v899 = vpop.f32.mrf.mxu0
  %v900 = vadd.f32 0.0, %v899
  %901 = vdwg.mxu0
  %v902 = vld [vmem:[%s2 + $0x20] sm:$0x1]
  %v903 = vlaneseq
  %v904 = vshrl.u32 %v903, 7
  %v905 = vsub.s32 0, %v904
  %v906 = vrot.slane %v902, %v905
  %v907 = vadd.f32 %v884, %v906
  %v908 = vadd.f32 %v888, %v906
  %v909 = vadd.f32 %v894, %v906
  %v910 = vadd.f32 %v898, %v906
  %v911 = vld [vmem:[%s2 + $0x21] sm:$0x1]
  %v912 = vlaneseq
  %v913 = vshrl.u32 %v912, 7
  %v914 = vsub.s32 0, %v913
  %v915 = vrot.slane %v911, %v914
  %v916 = vadd.f32 %v886, %v915
  %v917 = vadd.f32 %v890, %v915
  %v918 = vadd.f32 %v896, %v915
  %v919 = vadd.f32 %v900, %v915
  %vm920 = vcmask 130048
  %921 = vst.msk [vmem:[#allocation2] sm:$0xff] %vm920, %v907
  %922 = vst.msk [vmem:[#allocation2 + $0x8] sm:$0xff] %vm920, %v908
  %923 = vst.msk [vmem:[#allocation2 + $0x10] sm:$0xff] %vm920, %v909
  %vm924 = vcmask 128000
  %925 = vst.msk [vmem:[#allocation2 + $0x18] sm:$0x3f] %vm924, %v910
  %930 = vrot.lane.b32.xlu0 %v907, 80
  %v931 = vpop.permute.xlu0 %930
  %932 = vrot.lane.b32.xlu0 %v908, 80
  %v933 = vpop.permute.xlu0 %932
  %934 = vrot.lane.b32.xlu0 %v909, 80
  %v935 = vpop.permute.xlu0 %934
  %936 = vrot.lane.b32.xlu0 %v910, 80
  %v937 = vpop.permute.xlu0 %936
  %vm942 = vcmask 261248
  %943 = vst.msk [vmem:[#allocation2] sm:$0xff] %vm942, %v931
  %944 = vst.msk [vmem:[#allocation2 + $0x8] sm:$0xff] %vm942, %v933
  %945 = vst.msk [vmem:[#allocation2 + $0x10] sm:$0xff] %vm942, %v935
  %vm946 = vcmask 259200
  %947 = vst.msk [vmem:[#allocation2 + $0x18] sm:$0x3f] %vm946, %v937
  %952 = vrot.lane.b32.xlu0 %v916, 32
  %v953 = vpop.permute.xlu0 %952
  %954 = vrot.lane.b32.xlu0 %v917, 32
  %v955 = vpop.permute.xlu0 %954
  %956 = vrot.lane.b32.xlu0 %v918, 32
  %v957 = vpop.permute.xlu0 %956
  %958 = vrot.lane.b32.xlu0 %v919, 32
  %v959 = vpop.permute.xlu0 %958
  %vm964 = vcmask 392448
  %965 = vst.msk [vmem:[#allocation2] sm:$0xff] %vm964, %v953
  %966 = vst.msk [vmem:[#allocation2 + $0x8] sm:$0xff] %vm964, %v955
  %967 = vst.msk [vmem:[#allocation2 + $0x10] sm:$0xff] %vm964, %v957
  %vm968 = vcmask 390400
  %969 = vst.msk [vmem:[#allocation2 + $0x18] sm:$0x3f] %vm968, %v959
  %970 = vrot.lane.b32.xlu0 %v907, 112
  %v971 = vpop.permute.xlu0 %970
  %972 = vrot.lane.b32.xlu0 %v908, 112
  %v973 = vpop.permute.xlu0 %972
  %974 = vrot.lane.b32.xlu0 %v909, 112
  %v975 = vpop.permute.xlu0 %974
  %976 = vrot.lane.b32.xlu0 %v910, 112
  %v977 = vpop.permute.xlu0 %976
  %982 = vst.msk [vmem:[#allocation2 + $0x20] sm:$0xff] %vm920, %v971
  %983 = vst.msk [vmem:[#allocation2 + $0x28] sm:$0xff] %vm920, %v973
  %984 = vst.msk [vmem:[#allocation2 + $0x30] sm:$0xff] %vm920, %v975
  %985 = vst.msk [vmem:[#allocation2 + $0x38] sm:$0x3f] %vm924, %v977
  %986 = vrot.lane.b32.xlu0 %v907, 64
  %v987 = vpop.permute.xlu0 %986
  %988 = vrot.lane.b32.xlu0 %v908, 64
  %v989 = vpop.permute.xlu0 %988
  %990 = vrot.lane.b32.xlu0 %v909, 64
  %v991 = vpop.permute.xlu0 %990
  %992 = vrot.lane.b32.xlu0 %v910, 64
  %v993 = vpop.permute.xlu0 %992
  %998 = vst.msk [vmem:[#allocation2 + $0x20] sm:$0xff] %vm942, %v987
  %999 = vst.msk [vmem:[#allocation2 + $0x28] sm:$0xff] %vm942, %v989
  %1000 = vst.msk [vmem:[#allocation2 + $0x30] sm:$0xff] %vm942, %v991
  %1001 = vst.msk [vmem:[#allocation2 + $0x38] sm:$0x3f] %vm946, %v993
  %1002 = vrot.lane.b32.xlu0 %v916, 16
  %v1003 = vpop.permute.xlu0 %1002
  %1004 = vrot.lane.b32.xlu0 %v917, 16
  %v1005 = vpop.permute.xlu0 %1004
  %1006 = vrot.lane.b32.xlu0 %v918, 16
  %v1007 = vpop.permute.xlu0 %1006
  %1008 = vrot.lane.b32.xlu0 %v919, 16
  %v1009 = vpop.permute.xlu0 %1008
  %1014 = vst.msk [vmem:[#allocation2 + $0x20] sm:$0xff] %vm964, %v1003
  %1015 = vst.msk [vmem:[#allocation2 + $0x28] sm:$0xff] %vm964, %v1005
  %1016 = vst.msk [vmem:[#allocation2 + $0x30] sm:$0xff] %vm964, %v1007
  %1017 = vst.msk [vmem:[#allocation2 + $0x38] sm:$0x3f] %vm968, %v1009
  %1018 = vrot.lane.b32.xlu0 %v907, 96
  %v1019 = vpop.permute.xlu0 %1018
  %1020 = vrot.lane.b32.xlu0 %v908, 96
  %v1021 = vpop.permute.xlu0 %1020
  %1022 = vrot.lane.b32.xlu0 %v909, 96
  %v1023 = vpop.permute.xlu0 %1022
  %1024 = vrot.lane.b32.xlu0 %v910, 96
  %v1025 = vpop.permute.xlu0 %1024
  %1030 = vst.msk [vmem:[#allocation2 + $0x40] sm:$0xff] %vm920, %v1019
  %1031 = vst.msk [vmem:[#allocation2 + $0x48] sm:$0xff] %vm920, %v1021
  %1032 = vst.msk [vmem:[#allocation2 + $0x50] sm:$0xff] %vm920, %v1023
  %1033 = vst.msk [vmem:[#allocation2 + $0x58] sm:$0x3f] %vm924, %v1025
  %1034 = vrot.lane.b32.xlu0 %v907, 48
  %v1035 = vpop.permute.xlu0 %1034
  %1036 = vrot.lane.b32.xlu0 %v908, 48
  %v1037 = vpop.permute.xlu0 %1036
  %1038 = vrot.lane.b32.xlu0 %v909, 48
  %v1039 = vpop.permute.xlu0 %1038
  %1040 = vrot.lane.b32.xlu0 %v910, 48
  %v1041 = vpop.permute.xlu0 %1040
  %1046 = vst.msk [vmem:[#allocation2 + $0x40] sm:$0xff] %vm942, %v1035
  %1047 = vst.msk [vmem:[#allocation2 + $0x48] sm:$0xff] %vm942, %v1037
  %1048 = vst.msk [vmem:[#allocation2 + $0x50] sm:$0xff] %vm942, %v1039
  %1049 = vst.msk [vmem:[#allocation2 + $0x58] sm:$0x3f] %vm946, %v1041
  %1050 = vst.msk [vmem:[#allocation2 + $0x40] sm:$0xff] %vm964, %v916
  %1051 = vst.msk [vmem:[#allocation2 + $0x48] sm:$0xff] %vm964, %v917
  %1052 = vst.msk [vmem:[#allocation2 + $0x50] sm:$0xff] %vm964, %v918
  %1053 = vst.msk [vmem:[#allocation2 + $0x58] sm:$0x3f] %vm968, %v919
  %1054 = vst.msk [vmem:[#allocation2 + $0x60] sm:$0xff] %vm920, %v931
  %1055 = vst.msk [vmem:[#allocation2 + $0x68] sm:$0xff] %vm920, %v933
  %1056 = vst.msk [vmem:[#allocation2 + $0x70] sm:$0xff] %vm920, %v935
  %1057 = vst.msk [vmem:[#allocation2 + $0x78] sm:$0x3f] %vm924, %v937
  %1058 = vrot.lane.b32.xlu0 %v907, 32
  %v1059 = vpop.permute.xlu0 %1058
  %1060 = vrot.lane.b32.xlu0 %v908, 32
  %v1061 = vpop.permute.xlu0 %1060
  %1062 = vrot.lane.b32.xlu0 %v909, 32
  %v1063 = vpop.permute.xlu0 %1062
  %1064 = vrot.lane.b32.xlu0 %v910, 32
  %v1065 = vpop.permute.xlu0 %1064
  %1070 = vst.msk [vmem:[#allocation2 + $0x60] sm:$0xff] %vm942, %v1059
  %1071 = vst.msk [vmem:[#allocation2 + $0x68] sm:$0xff] %vm942, %v1061
  %1072 = vst.msk [vmem:[#allocation2 + $0x70] sm:$0xff] %vm942, %v1063
  %1073 = vst.msk [vmem:[#allocation2 + $0x78] sm:$0x3f] %vm946, %v1065
  %1074 = vrot.lane.b32.xlu0 %v916, 112
  %v1075 = vpop.permute.xlu0 %1074
  %1076 = vrot.lane.b32.xlu0 %v917, 112
  %v1077 = vpop.permute.xlu0 %1076
  %1078 = vrot.lane.b32.xlu0 %v918, 112
  %v1079 = vpop.permute.xlu0 %1078
  %1080 = vrot.lane.b32.xlu0 %v919, 112
  %v1081 = vpop.permute.xlu0 %1080
  %1086 = vst.msk [vmem:[#allocation2 + $0x60] sm:$0xff] %vm964, %v1075
  %1087 = vst.msk [vmem:[#allocation2 + $0x68] sm:$0xff] %vm964, %v1077
  %1088 = vst.msk [vmem:[#allocation2 + $0x70] sm:$0xff] %vm964, %v1079
  %1089 = vst.msk [vmem:[#allocation2 + $0x78] sm:$0x3f] %vm968, %v1081
  %v1090 = vld [vmem:[#allocation2] sm:$0xff]
  %v1091 = vld [vmem:[#allocation2 + $0x8] sm:$0xff]
  %v1092 = vld [vmem:[#allocation2 + $0x10] sm:$0xff]
  %v1093 = vld [vmem:[#allocation2 + $0x18] sm:$0xff]
  %v1094 = vld [vmem:[#allocation2 + $0x20] sm:$0xff]
  %v1095 = vld [vmem:[#allocation2 + $0x28] sm:$0xff]
  %v1096 = vld [vmem:[#allocation2 + $0x30] sm:$0xff]
  %v1097 = vld [vmem:[#allocation2 + $0x38] sm:$0xff]
  %v1098 = vld [vmem:[#allocation2 + $0x40] sm:$0xff]
  %v1099 = vld [vmem:[#allocation2 + $0x48] sm:$0xff]
  %v1100 = vld [vmem:[#allocation2 + $0x50] sm:$0xff]
  %v1101 = vld [vmem:[#allocation2 + $0x58] sm:$0xff]
  %v1102 = vld [vmem:[#allocation2 + $0x60] sm:$0xff]
  %v1103 = vld [vmem:[#allocation2 + $0x68] sm:$0xff]
  %v1104 = vld [vmem:[#allocation2 + $0x70] sm:$0xff]
  %v1105 = vld [vmem:[#allocation2 + $0x78] sm:$0xff]
  %v1106 = vpack.c.bf16 %v1091, %v1090
  %v1107 = vpack.c.bf16 %v1093, %v1092
  %v1108 = vpack.c.bf16 %v1095, %v1094
  %v1109 = vpack.c.bf16 %v1097, %v1096
  %v1110 = vpack.c.bf16 %v1099, %v1098
  %v1111 = vpack.c.bf16 %v1101, %v1100
  %v1112 = vpack.c.bf16 %v1103, %v1102
  %v1113 = vpack.c.bf16 %v1105, %v1104
  %1122 = vrot.lane.b32.xlu0 %v1106, 112
  %v1123 = vpop.permute.xlu0 %1122
  %1124 = vrot.lane.b32.xlu0 %v1107, 112
  %v1125 = vpop.permute.xlu0 %1124
  %1126 = vrot.lane.b32.xlu0 %v1108, 112
  %v1127 = vpop.permute.xlu0 %1126
  %1128 = vrot.lane.b32.xlu0 %v1109, 112
  %v1129 = vpop.permute.xlu0 %1128
  %1130 = vrot.lane.b32.xlu0 %v1110, 112
  %v1131 = vpop.permute.xlu0 %1130
  %1132 = vrot.lane.b32.xlu0 %v1111, 112
  %v1133 = vpop.permute.xlu0 %1132
  %1134 = vrot.lane.b32.xlu0 %v1112, 112
  %v1135 = vpop.permute.xlu0 %1134
  %1136 = vrot.lane.b32.xlu0 %v1113, 112
  %v1137 = vpop.permute.xlu0 %1136
  %v1139 = vsel %vm920, %v1106, 0
  %v1142 = vsel %vm920, %v1107, 0
  %v1145 = vsel %vm920, %v1108, 0
  %v1148 = vsel %vm920, %v1109, 0
  %v1151 = vsel %vm920, %v1110, 0
  %v1154 = vsel %vm920, %v1111, 0
  %v1157 = vsel %vm920, %v1112, 0
  %v1160 = vsel %vm920, %v1113, 0
  %v1163 = vsel %vm920, %v1123, 0
  %v1166 = vsel %vm920, %v1125, 0
  %v1169 = vsel %vm920, %v1127, 0
  %v1172 = vsel %vm920, %v1129, 0
  %v1175 = vsel %vm920, %v1131, 0
  %v1178 = vsel %vm920, %v1133, 0
  %v1181 = vsel %vm920, %v1135, 0
  %v1184 = vsel %vm920, %v1137, 0
  %1186 = vmatprep.subr.bf16.mxu0 0
  %1187 = vmatpush1.bf16.xpose.msra.mxu0 %v1184
  %1188 = vmatprep.subr.bf16.mxu0 0
  %1189 = vmatpush1.bf16.xpose.msra.mxu0 %v1181
  %1190 = vmatprep.subr.bf16.mxu0 0
  %1191 = vmatpush1.bf16.xpose.msra.mxu0 %v1178
  %1192 = vmatprep.subr.bf16.mxu0 0
  %1193 = vmatpush1.bf16.xpose.msra.mxu0 %v1175
  %1194 = vmatprep.subr.bf16.mxu0 0
  %1195 = vmatpush1.bf16.xpose.msra.mxu0 %v1172
  %1196 = vmatprep.subr.bf16.mxu0 0
  %1197 = vmatpush1.bf16.xpose.msra.mxu0 %v1169
  %1198 = vmatprep.subr.bf16.mxu0 0
  %1199 = vmatpush1.bf16.xpose.msra.mxu0 %v1166
  %1200 = vmatprep.subr.bf16.mxu0 0
  %1201 = vmatpush1.bf16.xpose.msra.mxu0 %v1163
  %1202 = vmatprep.subr.bf16.mxu0 0
  %1203 = vmatpush2.bf16.xpose.msra.mxu0 0
  %1204 = vmatprep.subr.bf16.mxu0 0
  %1205 = vmatpush2.bf16.xpose.msra.mxu0 0
  %1206 = vmatprep.subr.bf16.mxu0 0
  %1207 = vmatpush2.bf16.xpose.msra.mxu0 0
  %1208 = vmatprep.subr.bf16.mxu0 0
  %1209 = vmatpush2.bf16.xpose.msra.mxu0 0
  %1210 = vmatprep.subr.bf16.mxu0 0
  %1211 = vmatpush2.bf16.xpose.msra.mxu0 0
  %1212 = vmatprep.subr.bf16.mxu0 0
  %1213 = vmatpush2.bf16.xpose.msra.mxu0 0
  %1214 = vmatprep.subr.bf16.mxu0 0
  %1215 = vmatpush2.bf16.xpose.msra.mxu0 0
  %1216 = vmatprep.subr.bf16.mxu0 0
  %1217 = vmatpush2.bf16.xpose.msra.mxu0 0
  %1218 = vmatprep.mubr.bf16.mxu0 0
  %1219 = vmatmul.mubr.bf16.gmra.mxu0 %v1139
  %v1220 = vpop.f32.mrf.mxu0
  %v1221 = vadd.f32 %v777, %v1220
  %v1222 = vpop.f32.mrf.mxu0
  %v1223 = vpop.f32.mrf.mxu0
  %v1224 = vadd.f32 %v778, %v1223
  %v1225 = vpop.f32.mrf.mxu0
  %1226 = vmatprep.mubr.bf16.mxu0 0
  %1227 = vmatmul.mubr.bf16.gmra.mxu0 %v1142
  %v1228 = vpop.f32.mrf.mxu0
  %v1229 = vadd.f32 %v779, %v1228
  %v1230 = vpop.f32.mrf.mxu0
  %v1231 = vpop.f32.mrf.mxu0
  %v1232 = vadd.f32 %v780, %v1231
  %v1233 = vpop.f32.mrf.mxu0
  %1234 = vmatprep.mubr.bf16.mxu0 0
  %1235 = vmatmul.mubr.bf16.gmra.mxu0 %v1145
  %v1236 = vpop.f32.mrf.mxu0
  %v1237 = vadd.f32 %v781, %v1236
  %v1238 = vpop.f32.mrf.mxu0
  %v1239 = vpop.f32.mrf.mxu0
  %v1240 = vadd.f32 %v782, %v1239
  %v1241 = vpop.f32.mrf.mxu0
  %1242 = vmatprep.mubr.bf16.mxu0 0
  %1243 = vmatmul.mubr.bf16.gmra.mxu0 %v1148
  %v1244 = vpop.f32.mrf.mxu0
  %v1245 = vadd.f32 %v783, %v1244
  %v1246 = vpop.f32.mrf.mxu0
  %v1247 = vpop.f32.mrf.mxu0
  %v1248 = vadd.f32 %v784, %v1247
  %v1249 = vpop.f32.mrf.mxu0
  %1250 = vmatprep.mubr.bf16.mxu0 0
  %1251 = vmatmul.mubr.bf16.gmra.mxu0 %v1151
  %v1252 = vpop.f32.mrf.mxu0
  %v1253 = vadd.f32 %v785, %v1252
  %v1254 = vpop.f32.mrf.mxu0
  %v1255 = vpop.f32.mrf.mxu0
  %v1256 = vadd.f32 %v786, %v1255
  %v1257 = vpop.f32.mrf.mxu0
  %1258 = vmatprep.mubr.bf16.mxu0 0
  %1259 = vmatmul.mubr.bf16.gmra.mxu0 %v1154
  %v1260 = vpop.f32.mrf.mxu0
  %v1261 = vadd.f32 %v787, %v1260
  %v1262 = vpop.f32.mrf.mxu0
  %v1263 = vpop.f32.mrf.mxu0
  %v1264 = vadd.f32 %v788, %v1263
  %v1265 = vpop.f32.mrf.mxu0
  %1266 = vmatprep.mubr.bf16.mxu0 0
  %1267 = vmatmul.mubr.bf16.gmra.mxu0 %v1157
  %v1268 = vpop.f32.mrf.mxu0
  %v1269 = vadd.f32 %v789, %v1268
  %v1270 = vpop.f32.mrf.mxu0
  %v1271 = vpop.f32.mrf.mxu0
  %v1272 = vadd.f32 %v790, %v1271
  %v1273 = vpop.f32.mrf.mxu0
  %1274 = vmatprep.mubr.bf16.mxu0 0
  %1275 = vmatmul.mubr.bf16.gmra.mxu0 %v1160
  %v1276 = vpop.f32.mrf.mxu0
  %v1277 = vadd.f32 %v791, %v1276
  %v1278 = vpop.f32.mrf.mxu0
  %v1279 = vpop.f32.mrf.mxu0
  %v1280 = vadd.f32 %v792, %v1279
  %v1281 = vpop.f32.mrf.mxu0
  %1282 = vdwg.mxu0
  %1283 = vmax.xlane.f32.xlu0 %v1221
  %v1284 = vpop.xlane.xlu0 %1283
  %1285 = vmax.xlane.f32.xlu0 %v1224
  %v1286 = vpop.xlane.xlu0 %1285
  %1287 = vmax.xlane.f32.xlu0 %v1229
  %v1288 = vpop.xlane.xlu0 %1287
  %1289 = vmax.xlane.f32.xlu0 %v1232
  %v1290 = vpop.xlane.xlu0 %1289
  %1291 = vmax.xlane.f32.xlu0 %v1237
  %v1292 = vpop.xlane.xlu0 %1291
  %1293 = vmax.xlane.f32.xlu0 %v1240
  %v1294 = vpop.xlane.xlu0 %1293
  %1295 = vmax.xlane.f32.xlu0 %v1245
  %v1296 = vpop.xlane.xlu0 %1295
  %1297 = vmax.xlane.f32.xlu0 %v1248
  %v1298 = vpop.xlane.xlu0 %1297
  %1299 = vmax.xlane.f32.xlu0 %v1253
  %v1300 = vpop.xlane.xlu0 %1299
  %1301 = vmax.xlane.f32.xlu0 %v1256
  %v1302 = vpop.xlane.xlu0 %1301
  %1303 = vmax.xlane.f32.xlu0 %v1261
  %v1304 = vpop.xlane.xlu0 %1303
  %1305 = vmax.xlane.f32.xlu0 %v1264
  %v1306 = vpop.xlane.xlu0 %1305
  %1307 = vmax.xlane.f32.xlu0 %v1269
  %v1308 = vpop.xlane.xlu0 %1307
  %1309 = vmax.xlane.f32.xlu0 %v1272
  %v1310 = vpop.xlane.xlu0 %1309
  %1311 = vmax.xlane.f32.xlu0 %v1277
  %v1312 = vpop.xlane.xlu0 %1311
  %1313 = vmax.xlane.f32.xlu0 %v1280
  %v1314 = vpop.xlane.xlu0 %1313
  %v1315 = vsub.f32 %v1221, %v1284
  %v1316 = vsub.f32 %v1224, %v1286
  %v1317 = vsub.f32 %v1229, %v1288
  %v1318 = vsub.f32 %v1232, %v1290
  %v1319 = vsub.f32 %v1237, %v1292
  %v1320 = vsub.f32 %v1240, %v1294
  %v1321 = vsub.f32 %v1245, %v1296
  %v1322 = vsub.f32 %v1248, %v1298
  %v1323 = vsub.f32 %v1253, %v1300
  %v1324 = vsub.f32 %v1256, %v1302
  %v1325 = vsub.f32 %v1261, %v1304
  %v1326 = vsub.f32 %v1264, %v1306
  %v1327 = vsub.f32 %v1269, %v1308
  %v1328 = vsub.f32 %v1272, %v1310
  %v1329 = vsub.f32 %v1277, %v1312
  %v1330 = vsub.f32 %v1280, %v1314
  %v1331 = vmul.f32 %v1315, 1.442695
  %v1332 = vpow.pop %v1331
  %v1333 = vmul.f32 %v1316, 1.442695
  %v1334 = vpow.pop %v1333
  %v1335 = vmul.f32 %v1317, 1.442695
  %v1336 = vpow.pop %v1335
  %v1337 = vmul.f32 %v1318, 1.442695
  %v1338 = vpow.pop %v1337
  %v1339 = vmul.f32 %v1319, 1.442695
  %v1340 = vpow.pop %v1339
  %v1341 = vmul.f32 %v1320, 1.442695
  %v1342 = vpow.pop %v1341
  %v1343 = vmul.f32 %v1321, 1.442695
  %v1344 = vpow.pop %v1343
  %v1345 = vmul.f32 %v1322, 1.442695
  %v1346 = vpow.pop %v1345
  %v1347 = vmul.f32 %v1323, 1.442695
  %v1348 = vpow.pop %v1347
  %v1349 = vmul.f32 %v1324, 1.442695
  %v1350 = vpow.pop %v1349
  %v1351 = vmul.f32 %v1325, 1.442695
  %v1352 = vpow.pop %v1351
  %v1353 = vmul.f32 %v1326, 1.442695
  %v1354 = vpow.pop %v1353
  %v1355 = vmul.f32 %v1327, 1.442695
  %v1356 = vpow.pop %v1355
  %v1357 = vmul.f32 %v1328, 1.442695
  %v1358 = vpow.pop %v1357
  %v1359 = vmul.f32 %v1329, 1.442695
  %v1360 = vpow.pop %v1359
  %v1361 = vmul.f32 %v1330, 1.442695
  %v1362 = vpow.pop %v1361
  %1363 = vadd.xlane.f32.xlu0 %v1332
  %v1364 = vpop.xlane.xlu0 %1363
  %1365 = vadd.xlane.f32.xlu0 %v1334
  %v1366 = vpop.xlane.xlu0 %1365
  %1367 = vadd.xlane.f32.xlu0 %v1336
  %v1368 = vpop.xlane.xlu0 %1367
  %1369 = vadd.xlane.f32.xlu0 %v1338
  %v1370 = vpop.xlane.xlu0 %1369
  %1371 = vadd.xlane.f32.xlu0 %v1340
  %v1372 = vpop.xlane.xlu0 %1371
  %1373 = vadd.xlane.f32.xlu0 %v1342
  %v1374 = vpop.xlane.xlu0 %1373
  %1375 = vadd.xlane.f32.xlu0 %v1344
  %v1376 = vpop.xlane.xlu0 %1375
  %1377 = vadd.xlane.f32.xlu0 %v1346
  %v1378 = vpop.xlane.xlu0 %1377
  %1379 = vadd.xlane.f32.xlu0 %v1348
  %v1380 = vpop.xlane.xlu0 %1379
  %1381 = vadd.xlane.f32.xlu0 %v1350
  %v1382 = vpop.xlane.xlu0 %1381
  %1383 = vadd.xlane.f32.xlu0 %v1352
  %v1384 = vpop.xlane.xlu0 %1383
  %1385 = vadd.xlane.f32.xlu0 %v1354
  %v1386 = vpop.xlane.xlu0 %1385
  %1387 = vadd.xlane.f32.xlu0 %v1356
  %v1388 = vpop.xlane.xlu0 %1387
  %1389 = vadd.xlane.f32.xlu0 %v1358
  %v1390 = vpop.xlane.xlu0 %1389
  %1391 = vadd.xlane.f32.xlu0 %v1360
  %v1392 = vpop.xlane.xlu0 %1391
  %1393 = vadd.xlane.f32.xlu0 %v1362
  %v1394 = vpop.xlane.xlu0 %1393
  %v1395 = vrcp.pop %v1364
  %v1396 = vrcp.pop %v1366
  %v1397 = vrcp.pop %v1368
  %v1398 = vrcp.pop %v1370
  %v1399 = vrcp.pop %v1372
  %v1400 = vrcp.pop %v1374
  %v1401 = vrcp.pop %v1376
  %v1402 = vrcp.pop %v1378
  %v1403 = vrcp.pop %v1380
  %v1404 = vrcp.pop %v1382
  %v1405 = vrcp.pop %v1384
  %v1406 = vrcp.pop %v1386
  %v1407 = vrcp.pop %v1388
  %v1408 = vrcp.pop %v1390
  %v1409 = vrcp.pop %v1392
  %v1410 = vrcp.pop %v1394
  %v1411 = vmul.f32 %v1332, %v1395
  %v1412 = vmul.f32 %v1334, %v1396
  %v1413 = vmul.f32 %v1336, %v1397
  %v1414 = vmul.f32 %v1338, %v1398
  %v1415 = vmul.f32 %v1340, %v1399
  %v1416 = vmul.f32 %v1342, %v1400
  %v1417 = vmul.f32 %v1344, %v1401
  %v1418 = vmul.f32 %v1346, %v1402
  %v1419 = vmul.f32 %v1348, %v1403
  %v1420 = vmul.f32 %v1350, %v1404
  %v1421 = vmul.f32 %v1352, %v1405
  %v1422 = vmul.f32 %v1354, %v1406
  %v1423 = vmul.f32 %v1356, %v1407
  %v1424 = vmul.f32 %v1358, %v1408
  %v1425 = vmul.f32 %v1360, %v1409
  %v1426 = vmul.f32 %v1362, %v1410
  %v1427 = vpack.c.bf16 %v1412, %v1411
  %v1428 = vpack.c.bf16 %v1414, %v1413
  %v1429 = vpack.c.bf16 %v1416, %v1415
  %v1430 = vpack.c.bf16 %v1418, %v1417
  %v1431 = vpack.c.bf16 %v1420, %v1419
  %v1432 = vpack.c.bf16 %v1422, %v1421
  %v1433 = vpack.c.bf16 %v1424, %v1423
  %v1434 = vpack.c.bf16 %v1426, %v1425
  %1435 = vrot.lane.b32.xlu0 %v1106, 96
  %v1436 = vpop.permute.xlu0 %1435
  %1437 = vrot.lane.b32.xlu0 %v1107, 96
  %v1438 = vpop.permute.xlu0 %1437
  %1439 = vrot.lane.b32.xlu0 %v1108, 96
  %v1440 = vpop.permute.xlu0 %1439
  %1441 = vrot.lane.b32.xlu0 %v1109, 96
  %v1442 = vpop.permute.xlu0 %1441
  %1443 = vrot.lane.b32.xlu0 %v1110, 96
  %v1444 = vpop.permute.xlu0 %1443
  %1445 = vrot.lane.b32.xlu0 %v1111, 96
  %v1446 = vpop.permute.xlu0 %1445
  %1447 = vrot.lane.b32.xlu0 %v1112, 96
  %v1448 = vpop.permute.xlu0 %1447
  %1449 = vrot.lane.b32.xlu0 %v1113, 96
  %v1450 = vpop.permute.xlu0 %1449
  %1459 = vmatprep.subr.bf16.mxu0 0
  %1460 = vmatpush1.bf16.msra.mxu0 %v1450
  %1461 = vmatprep.subr.bf16.mxu0 0
  %1462 = vmatpush1.bf16.msra.mxu0 %v1448
  %1463 = vmatprep.subr.bf16.mxu0 0
  %1464 = vmatpush1.bf16.msra.mxu0 %v1446
  %1465 = vmatprep.subr.bf16.mxu0 0
  %1466 = vmatpush1.bf16.msra.mxu0 %v1444
  %1467 = vmatprep.subr.bf16.mxu0 0
  %1468 = vmatpush1.bf16.msra.mxu0 %v1442
  %1469 = vmatprep.subr.bf16.mxu0 0
  %1470 = vmatpush1.bf16.msra.mxu0 %v1440
  %1471 = vmatprep.subr.bf16.mxu0 0
  %1472 = vmatpush1.bf16.msra.mxu0 %v1438
  %1473 = vmatprep.subr.bf16.mxu0 0
  %1474 = vmatpush1.bf16.msra.mxu0 %v1436
  %1475 = vmatprep.subr.bf16.mxu0 0
  %1476 = vmatpush2.bf16.msra.mxu0 0
  %1477 = vmatprep.subr.bf16.mxu0 0
  %1478 = vmatpush2.bf16.msra.mxu0 0
  %1479 = vmatprep.subr.bf16.mxu0 0
  %1480 = vmatpush2.bf16.msra.mxu0 0
  %1481 = vmatprep.subr.bf16.mxu0 0
  %1482 = vmatpush2.bf16.msra.mxu0 0
  %1483 = vmatprep.subr.bf16.mxu0 0
  %1484 = vmatpush2.bf16.msra.mxu0 0
  %1485 = vmatprep.subr.bf16.mxu0 0
  %1486 = vmatpush2.bf16.msra.mxu0 0
  %1487 = vmatprep.subr.bf16.mxu0 0
  %1488 = vmatpush2.bf16.msra.mxu0 0
  %1489 = vmatprep.subr.bf16.mxu0 0
  %1490 = vmatpush2.bf16.msra.mxu0 0
  %1491 = vmatprep.mubr.bf16.mxu0 0
  %1492 = vmatmul.mubr.bf16.gmra.mxu0 %v1427
  %v1493 = vpop.f32.mrf.mxu0
  %v1494 = vadd.f32 0.0, %v1493
  %v1495 = vpop.f32.mrf.mxu0
  %v1496 = vpop.f32.mrf.mxu0
  %v1497 = vadd.f32 0.0, %v1496
  %v1498 = vpop.f32.mrf.mxu0
  %1499 = vmatprep.mubr.bf16.mxu0 0
  %1500 = vmatmul.mubr.bf16.gmra.mxu0 %v1428
  %v1501 = vpop.f32.mrf.mxu0
  %v1502 = vadd.f32 0.0, %v1501
  %v1503 = vpop.f32.mrf.mxu0
  %v1504 = vpop.f32.mrf.mxu0
  %v1505 = vadd.f32 0.0, %v1504
  %v1506 = vpop.f32.mrf.mxu0
  %1507 = vmatprep.mubr.bf16.mxu0 0
  %1508 = vmatmul.mubr.bf16.gmra.mxu0 %v1429
  %v1509 = vpop.f32.mrf.mxu0
  %v1510 = vadd.f32 0.0, %v1509
  %v1511 = vpop.f32.mrf.mxu0
  %v1512 = vpop.f32.mrf.mxu0
  %v1513 = vadd.f32 0.0, %v1512
  %v1514 = vpop.f32.mrf.mxu0
  %1515 = vmatprep.mubr.bf16.mxu0 0
  %1516 = vmatmul.mubr.bf16.gmra.mxu0 %v1430
  %v1517 = vpop.f32.mrf.mxu0
  %v1518 = vadd.f32 0.0, %v1517
  %v1519 = vpop.f32.mrf.mxu0
  %v1520 = vpop.f32.mrf.mxu0
  %v1521 = vadd.f32 0.0, %v1520
  %v1522 = vpop.f32.mrf.mxu0
  %1523 = vmatprep.mubr.bf16.mxu0 0
  %1524 = vmatmul.mubr.bf16.gmra.mxu0 %v1431
  %v1525 = vpop.f32.mrf.mxu0
  %v1526 = vadd.f32 0.0, %v1525
  %v1527 = vpop.f32.mrf.mxu0
  %v1528 = vpop.f32.mrf.mxu0
  %v1529 = vadd.f32 0.0, %v1528
  %v1530 = vpop.f32.mrf.mxu0
  %1531 = vmatprep.mubr.bf16.mxu0 0
  %1532 = vmatmul.mubr.bf16.gmra.mxu0 %v1432
  %v1533 = vpop.f32.mrf.mxu0
  %v1534 = vadd.f32 0.0, %v1533
  %v1535 = vpop.f32.mrf.mxu0
  %v1536 = vpop.f32.mrf.mxu0
  %v1537 = vadd.f32 0.0, %v1536
  %v1538 = vpop.f32.mrf.mxu0
  %1539 = vmatprep.mubr.bf16.mxu0 0
  %1540 = vmatmul.mubr.bf16.gmra.mxu0 %v1433
  %v1541 = vpop.f32.mrf.mxu0
  %v1542 = vadd.f32 0.0, %v1541
  %v1543 = vpop.f32.mrf.mxu0
  %v1544 = vpop.f32.mrf.mxu0
  %v1545 = vadd.f32 0.0, %v1544
  %v1546 = vpop.f32.mrf.mxu0
  %1547 = vmatprep.mubr.bf16.mxu0 0
  %1548 = vmatmul.mubr.bf16.gmra.mxu0 %v1434
  %v1549 = vpop.f32.mrf.mxu0
  %v1550 = vadd.f32 0.0, %v1549
  %v1551 = vpop.f32.mrf.mxu0
  %v1552 = vpop.f32.mrf.mxu0
  %v1553 = vadd.f32 0.0, %v1552
  %v1554 = vpop.f32.mrf.mxu0
  %1555 = vdwg.mxu0
  %1560 = vrot.lane.b32.xlu0 %v1510, 16
  %v1561 = vpop.permute.xlu0 %1560
  %1562 = vrot.lane.b32.xlu0 %v1513, 16
  %v1563 = vpop.permute.xlu0 %1562
  %1564 = vrot.lane.b32.xlu0 %v1518, 16
  %v1565 = vpop.permute.xlu0 %1564
  %1566 = vrot.lane.b32.xlu0 %v1521, 16
  %v1567 = vpop.permute.xlu0 %1566
  %1576 = vrot.lane.b32.xlu0 %v1526, 32
  %v1577 = vpop.permute.xlu0 %1576
  %1578 = vrot.lane.b32.xlu0 %v1529, 32
  %v1579 = vpop.permute.xlu0 %1578
  %1580 = vrot.lane.b32.xlu0 %v1534, 32
  %v1581 = vpop.permute.xlu0 %1580
  %1582 = vrot.lane.b32.xlu0 %v1537, 32
  %v1583 = vpop.permute.xlu0 %1582
  %1592 = vrot.lane.b32.xlu0 %v1542, 48
  %v1593 = vpop.permute.xlu0 %1592
  %1594 = vrot.lane.b32.xlu0 %v1545, 48
  %v1595 = vpop.permute.xlu0 %1594
  %1596 = vrot.lane.b32.xlu0 %v1550, 48
  %v1597 = vpop.permute.xlu0 %1596
  %1598 = vrot.lane.b32.xlu0 %v1553, 48
  %v1599 = vpop.permute.xlu0 %1598
  %v1604 = vsel %vm920, %v1494, %v1561
  %v1605 = vsel %vm920, %v1497, %v1563
  %v1606 = vsel %vm920, %v1502, %v1565
  %v1607 = vsel %vm920, %v1505, %v1567
  %vm1608 = vcmask 261120
  %v1609 = vsel %vm1608, %v1604, %v1577
  %v1610 = vsel %vm1608, %v1605, %v1579
  %v1611 = vsel %vm1608, %v1606, %v1581
  %v1612 = vsel %vm1608, %v1607, %v1583
  %v1613 = vsel %vm27, %v1609, %v1593
  %v1614 = vsel %vm27, %v1610, %v1595
  %v1615 = vsel %vm27, %v1611, %v1597
  %v1616 = vsel %vm27, %v1612, %v1599
  %v1617 = vld [vmem:[%s4] sm:$0xf]
  %v1618 = vld [vmem:[%s4 + $0x4] sm:$0xf]
  %v1619 = vld [vmem:[%s4 + $0x8] sm:$0xf]
  %v1620 = vld [vmem:[%s4 + $0xc] sm:$0xf]
  %v1621 = vld [vmem:[%s4 + $0x10] sm:$0xf]
  %v1622 = vld [vmem:[%s4 + $0x14] sm:$0xf]
  %v1623 = vld [vmem:[%s4 + $0x18] sm:$0xf]
  %v1624 = vld [vmem:[%s4 + $0x1c] sm:$0xf]
  %v1625 = vpack.c.bf16 %v1614, %v1613
  %v1626 = vpack.c.bf16 %v1616, %v1615
  %v1627 = vld [vmem:[%s2 + $0x21] sm:$0x1]
  %v1628 = vlaneseq
  %v1629 = vshrl.u32 %v1628, 7
  %v1630 = vsub.s32 0, %v1629
  %v1631 = vrot.slane %v1627, %v1630
  %v1640 = vunpack.c.l.b16 %v1617
  %v1641 = vunpack.c.l.b16 %v1618
  %v1642 = vunpack.c.l.b16 %v1619
  %v1643 = vunpack.c.l.b16 %v1620
  %v1644 = vunpack.c.l.b16 %v1621
  %v1645 = vunpack.c.l.b16 %v1622
  %v1646 = vunpack.c.l.b16 %v1623
  %v1647 = vunpack.c.l.b16 %v1624
  %v1648 = vpack.c.b16 %v1641, %v1640
  %v1649 = vpack.c.b16 %v1643, %v1642
  %v1650 = vpack.c.b16 %v1645, %v1644
  %v1651 = vpack.c.b16 %v1647, %v1646
  %1657 = vrot.lane.b32.xlu0 %v1631, 64
  %v1658 = vpop.permute.xlu0 %1657
  %v1661 = vsel %vm180, %v1625, 0
  %v1664 = vsel %vm180, %v1626, 0
  %1666 = vmatprep.subr.bf16.mxu0 0
  %1667 = vmatpush1.bf16.msra.mxu0 0
  %1668 = vmatprep.subr.bf16.mxu0 0
  %1669 = vmatpush1.bf16.msra.mxu0 0
  %1670 = vmatprep.subr.bf16.mxu0 0
  %1671 = vmatpush1.bf16.msra.mxu0 0
  %1672 = vmatprep.subr.bf16.mxu0 0
  %1673 = vmatpush1.bf16.msra.mxu0 0
  %1674 = vmatprep.subr.bf16.mxu0 0
  %1675 = vmatpush1.bf16.msra.mxu0 %v1651
  %1676 = vmatprep.subr.bf16.mxu0 0
  %1677 = vmatpush1.bf16.msra.mxu0 %v1650
  %1678 = vmatprep.subr.bf16.mxu0 0
  %1679 = vmatpush1.bf16.msra.mxu0 %v1649
  %1680 = vmatprep.subr.bf16.mxu0 0
  %1681 = vmatpush1.bf16.msra.mxu0 %v1648
  %1682 = vmatprep.subr.bf16.mxu0 0
  %1683 = vmatpush2.bf16.msra.mxu0 0
  %1684 = vmatprep.subr.bf16.mxu0 0
  %1685 = vmatpush2.bf16.msra.mxu0 0
  %1686 = vmatprep.subr.bf16.mxu0 0
  %1687 = vmatpush2.bf16.msra.mxu0 0
  %1688 = vmatprep.subr.bf16.mxu0 0
  %1689 = vmatpush2.bf16.msra.mxu0 0
  %1690 = vmatprep.subr.bf16.mxu0 0
  %1691 = vmatpush2.bf16.msra.mxu0 0
  %1692 = vmatprep.subr.bf16.mxu0 0
  %1693 = vmatpush2.bf16.msra.mxu0 0
  %1694 = vmatprep.subr.bf16.mxu0 0
  %1695 = vmatpush2.bf16.msra.mxu0 0
  %1696 = vmatprep.subr.bf16.mxu0 0
  %1697 = vmatpush2.bf16.msra.mxu0 0
  %1698 = vmatprep.mubr.bf16.mxu0 0
  %1699 = vmatmul.mubr.bf16.gmra.mxu0 %v1661
  %v1700 = vpop.f32.mrf.mxu0
  %v1701 = vadd.f32 %v1658, %v1700
  %v1702 = vpop.f32.mrf.mxu0
  %v1703 = vpop.f32.mrf.mxu0
  %v1704 = vadd.f32 %v1658, %v1703
  %v1705 = vpop.f32.mrf.mxu0
  %1706 = vmatprep.mubr.bf16.mxu0 0
  %1707 = vmatmul.mubr.bf16.gmra.mxu0 %v1664
  %v1708 = vpop.f32.mrf.mxu0
  %v1709 = vadd.f32 %v1658, %v1708
  %v1710 = vpop.f32.mrf.mxu0
  %v1711 = vpop.f32.mrf.mxu0
  %v1712 = vadd.f32 %v1658, %v1711
  %v1713 = vpop.f32.mrf.mxu0
  %1714 = vdwg.mxu0
  %v1715 = vadd.f32 %v247, %v1701
  %v1716 = vadd.f32 %v248, %v1704
  %v1717 = vadd.f32 %v249, %v1709
  %v1718 = vadd.f32 %v250, %v1712
  %v1719 = vld [vmem:[%s2 + $0x22] sm:$0x1]
  %v1720 = vsel %vm180, %v1715, 0.0
  %1721 = vadd.xlane.f32.xlu0 %v1720
  %v1722 = vpop.xlane.xlu0 %1721
  %v1723 = vsel %vm180, %v1716, 0.0
  %1724 = vadd.xlane.f32.xlu0 %v1723
  %v1725 = vpop.xlane.xlu0 %1724
  %v1726 = vsel %vm180, %v1717, 0.0
  %1727 = vadd.xlane.f32.xlu0 %v1726
  %v1728 = vpop.xlane.xlu0 %1727
  %v1729 = vsel %vm190, %v1718, 0.0
  %1730 = vadd.xlane.f32.xlu0 %v1729
  %v1731 = vpop.xlane.xlu0 %1730
  %v1732 = vmul.f32 %v1722, %v194
  %v1733 = vmul.f32 %v1725, %v194
  %v1734 = vmul.f32 %v1728, %v194
  %v1735 = vmul.f32 %v1731, %v194
  %v1736 = vsub.f32 %v1715, %v1732
  %v1737 = vsub.f32 %v1716, %v1733
  %v1738 = vsub.f32 %v1717, %v1734
  %v1739 = vsub.f32 %v1718, %v1735
  %v1740 = vmul.f32 %v1736, %v1736
  %v1741 = vmul.f32 %v1737, %v1737
  %v1742 = vmul.f32 %v1738, %v1738
  %v1743 = vmul.f32 %v1739, %v1739
  %v1744 = vsel %vm180, %v1740, 0.0
  %1745 = vadd.xlane.f32.xlu0 %v1744
  %v1746 = vpop.xlane.xlu0 %1745
  %v1747 = vsel %vm180, %v1741, 0.0
  %1748 = vadd.xlane.f32.xlu0 %v1747
  %v1749 = vpop.xlane.xlu0 %1748
  %v1750 = vsel %vm180, %v1742, 0.0
  %1751 = vadd.xlane.f32.xlu0 %v1750
  %v1752 = vpop.xlane.xlu0 %1751
  %v1753 = vsel %vm190, %v1743, 0.0
  %1754 = vadd.xlane.f32.xlu0 %v1753
  %v1755 = vpop.xlane.xlu0 %1754
  %v1756 = vmul.f32 %v1746, %v194
  %v1757 = vmul.f32 %v1749, %v194
  %v1758 = vmul.f32 %v1752, %v194
  %v1759 = vmul.f32 %v1755, %v194
  %v1760 = vadd.f32 %v1756, 1e-12
  %v1761 = vadd.f32 %v1757, 1e-12
  %v1762 = vadd.f32 %v1758, 1e-12
  %v1763 = vadd.f32 %v1759, 1e-12
  %v1764 = vrsqrt.pop %v1760
  %v1765 = vrsqrt.pop %v1761
  %v1766 = vrsqrt.pop %v1762
  %v1767 = vrsqrt.pop %v1763
  %v1768 = vmul.f32 %v1736, %v1764
  %v1769 = vmul.f32 %v1737, %v1765
  %v1770 = vmul.f32 %v1738, %v1766
  %v1771 = vmul.f32 %v1739, %v1767
  %v1772 = vlaneseq
  %v1773 = vshrl.u32 %v1772, 7
  %v1774 = vsub.s32 0, %v1773
  %v1775 = vrot.slane %v1719, %v1774
  %v1776 = vmul.f32 %v1768, %v1775
  %v1777 = vmul.f32 %v1769, %v1775
  %v1778 = vmul.f32 %v1770, %v1775
  %v1779 = vmul.f32 %v1771, %v1775
  %1781 = vrot.lane.b32.xlu0 %v1775, 64
  %v1782 = vpop.permute.xlu0 %1781
  %v1784 = vadd.f32 %v1776, %v1782
  %v1785 = vadd.f32 %v1777, %v1782
  %v1786 = vadd.f32 %v1778, %v1782
  %v1787 = vadd.f32 %v1779, %v1782
  %v1788 = vld [vmem:[%s5] sm:$0xf]
  %v1789 = vld [vmem:[%s5 + $0x4] sm:$0xf]
  %v1790 = vld [vmem:[%s5 + $0x8] sm:$0xf]
  %v1791 = vld [vmem:[%s5 + $0xc] sm:$0xf]
  %v1792 = vld [vmem:[%s5 + $0x10] sm:$0xf]
  %v1793 = vld [vmem:[%s5 + $0x14] sm:$0xf]
  %v1794 = vld [vmem:[%s5 + $0x18] sm:$0xf]
  %v1795 = vld [vmem:[%s5 + $0x1c] sm:$0xf]
  %v1796 = vpack.c.bf16 %v1785, %v1784
  %v1797 = vpack.c.bf16 %v1787, %v1786
  %v1798 = vld [vmem:[%s2 + $0x23] sm:$0x1]
  %v1799 = vlaneseq
  %v1800 = vshrl.u32 %v1799, 7
  %v1801 = vsub.s32 0, %v1800
  %v1802 = vrot.slane %v1798, %v1801
  %v1811 = vunpack.c.l.b16 %v1788
  %v1812 = vunpack.c.l.b16 %v1789
  %v1813 = vunpack.c.l.b16 %v1790
  %v1814 = vunpack.c.l.b16 %v1791
  %v1815 = vunpack.c.l.b16 %v1792
  %v1816 = vunpack.c.l.b16 %v1793
  %v1817 = vunpack.c.l.b16 %v1794
  %v1818 = vunpack.c.l.b16 %v1795
  %v1819 = vpack.c.b16 %v1812, %v1811
  %v1820 = vpack.c.b16 %v1814, %v1813
  %v1821 = vpack.c.b16 %v1816, %v1815
  %v1822 = vpack.c.b16 %v1818, %v1817
  %v1828 = vsel %vm180, %v1796, 0
  %v1831 = vsel %vm180, %v1797, 0
  %1833 = vmatprep.subr.bf16.mxu0 0
  %1834 = vmatpush1.bf16.msra.mxu0 0
  %1835 = vmatprep.subr.bf16.mxu0 0
  %1836 = vmatpush1.bf16.msra.mxu0 0
  %1837 = vmatprep.subr.bf16.mxu0 0
  %1838 = vmatpush1.bf16.msra.mxu0 0
  %1839 = vmatprep.subr.bf16.mxu0 0
  %1840 = vmatpush1.bf16.msra.mxu0 0
  %1841 = vmatprep.subr.bf16.mxu0 0
  %1842 = vmatpush1.bf16.msra.mxu0 %v1822
  %1843 = vmatprep.subr.bf16.mxu0 0
  %1844 = vmatpush1.bf16.msra.mxu0 %v1821
  %1845 = vmatprep.subr.bf16.mxu0 0
  %1846 = vmatpush1.bf16.msra.mxu0 %v1820
  %1847 = vmatprep.subr.bf16.mxu0 0
  %1848 = vmatpush1.bf16.msra.mxu0 %v1819
  %1849 = vmatprep.subr.bf16.mxu0 0
  %1850 = vmatpush2.bf16.msra.mxu0 0
  %1851 = vmatprep.subr.bf16.mxu0 0
  %1852 = vmatpush2.bf16.msra.mxu0 0
  %1853 = vmatprep.subr.bf16.mxu0 0
  %1854 = vmatpush2.bf16.msra.mxu0 0
  %1855 = vmatprep.subr.bf16.mxu0 0
  %1856 = vmatpush2.bf16.msra.mxu0 0
  %1857 = vmatprep.subr.bf16.mxu0 0
  %1858 = vmatpush2.bf16.msra.mxu0 0
  %1859 = vmatprep.subr.bf16.mxu0 0
  %1860 = vmatpush2.bf16.msra.mxu0 0
  %1861 = vmatprep.subr.bf16.mxu0 0
  %1862 = vmatpush2.bf16.msra.mxu0 0
  %1863 = vmatprep.subr.bf16.mxu0 0
  %1864 = vmatpush2.bf16.msra.mxu0 0
  %1865 = vmatprep.mubr.bf16.mxu0 0
  %1866 = vmatmul.mubr.bf16.gmra.mxu0 %v1828
  %v1867 = vpop.f32.mrf.mxu0
  %v1868 = vadd.f32 %v1802, %v1867
  %v1869 = vpop.f32.mrf.mxu0
  %v1870 = vpop.f32.mrf.mxu0
  %v1871 = vadd.f32 %v1802, %v1870
  %v1872 = vpop.f32.mrf.mxu0
  %1873 = vmatprep.mubr.bf16.mxu0 0
  %1874 = vmatmul.mubr.bf16.gmra.mxu0 %v1831
  %v1875 = vpop.f32.mrf.mxu0
  %v1876 = vadd.f32 %v1802, %v1875
  %v1877 = vpop.f32.mrf.mxu0
  %v1878 = vpop.f32.mrf.mxu0
  %v1879 = vadd.f32 %v1802, %v1878
  %v1880 = vpop.f32.mrf.mxu0
  %1881 = vdwg.mxu0
  %v1882 = vmul.f32 %v1868, 0.5
  %v1883 = vmul.f32 %v1871, 0.5
  %v1884 = vmul.f32 %v1876, 0.5
  %v1885 = vmul.f32 %v1879, 0.5
  %v1886 = vmul.f32 %v1868, 0.044715
  %v1887 = vmul.f32 %v1871, 0.044715
  %v1888 = vmul.f32 %v1876, 0.044715
  %v1889 = vmul.f32 %v1879, 0.044715
  %v1890 = vmul.f32 %v1886, %v1868
  %v1891 = vmul.f32 %v1887, %v1871
  %v1892 = vmul.f32 %v1888, %v1876
  %v1893 = vmul.f32 %v1889, %v1879
  %v1894 = vmul.f32 %v1890, %v1868
  %v1895 = vmul.f32 %v1891, %v1871
  %v1896 = vmul.f32 %v1892, %v1876
  %v1897 = vmul.f32 %v1893, %v1879
  %v1898 = vadd.f32 %v1868, %v1894
  %v1899 = vadd.f32 %v1871, %v1895
  %v1900 = vadd.f32 %v1876, %v1896
  %v1901 = vadd.f32 %v1879, %v1897
  %v1902 = vmul.f32 %v1898, 0.7978846
  %v1903 = vmul.f32 %v1899, 0.7978846
  %v1904 = vmul.f32 %v1900, 0.7978846
  %v1905 = vmul.f32 %v1901, 0.7978846
  %v1906 = vtanh.pop %v1902
  %v1907 = vtanh.pop %v1903
  %v1908 = vtanh.pop %v1904
  %v1909 = vtanh.pop %v1905
  %v1910 = vadd.f32 %v1906, 1.0
  %v1911 = vadd.f32 %v1907, 1.0
  %v1912 = vadd.f32 %v1908, 1.0
  %v1913 = vadd.f32 %v1909, 1.0
  %v1914 = vmul.f32 %v1882, %v1910
  %v1915 = vmul.f32 %v1883, %v1911
  %v1916 = vmul.f32 %v1884, %v1912
  %v1917 = vmul.f32 %v1885, %v1913
  %v1918 = vld [vmem:[%s6] sm:$0xf]
  %v1919 = vld [vmem:[%s6 + $0x4] sm:$0xf]
  %v1920 = vld [vmem:[%s6 + $0x8] sm:$0xf]
  %v1921 = vld [vmem:[%s6 + $0xc] sm:$0xf]
  %v1922 = vld [vmem:[%s6 + $0x10] sm:$0xf]
  %v1923 = vld [vmem:[%s6 + $0x14] sm:$0xf]
  %v1924 = vld [vmem:[%s6 + $0x18] sm:$0xf]
  %v1925 = vld [vmem:[%s6 + $0x1c] sm:$0xf]
  %v1926 = vld [vmem:[%s6 + $0x20] sm:$0xf]
  %v1927 = vld [vmem:[%s6 + $0x24] sm:$0xf]
  %v1928 = vld [vmem:[%s6 + $0x28] sm:$0xf]
  %v1929 = vld [vmem:[%s6 + $0x2c] sm:$0xf]
  %v1930 = vld [vmem:[%s6 + $0x30] sm:$0xf]
  %v1931 = vld [vmem:[%s6 + $0x34] sm:$0xf]
  %v1932 = vld [vmem:[%s6 + $0x38] sm:$0xf]
  %v1933 = vld [vmem:[%s6 + $0x3c] sm:$0xf]
  %v1934 = vpack.c.bf16 %v1915, %v1914
  %v1935 = vpack.c.bf16 %v1917, %v1916
  %v1936 = vld [vmem:[%s2 + $0x25] sm:$0x1]
  %v1937 = vlaneseq
  %v1938 = vshrl.u32 %v1937, 7
  %v1939 = vsub.s32 0, %v1938
  %v1940 = vrot.slane %v1936, %v1939
  %v1957 = vunpack.c.l.b16 %v1918
  %v1958 = vunpack.c.l.b16 %v1919
  %v1959 = vunpack.c.l.b16 %v1920
  %v1960 = vunpack.c.l.b16 %v1921
  %v1961 = vunpack.c.l.b16 %v1922
  %v1962 = vunpack.c.l.b16 %v1923
  %v1963 = vunpack.c.l.b16 %v1924
  %v1964 = vunpack.c.l.b16 %v1925
  %v1965 = vunpack.c.l.b16 %v1926
  %v1966 = vunpack.c.l.b16 %v1927
  %v1967 = vunpack.c.l.b16 %v1928
  %v1968 = vunpack.c.l.b16 %v1929
  %v1969 = vunpack.c.l.b16 %v1930
  %v1970 = vunpack.c.l.b16 %v1931
  %v1971 = vunpack.c.l.b16 %v1932
  %v1972 = vunpack.c.l.b16 %v1933
  %v1973 = vpack.c.b16 %v1958, %v1957
  %v1974 = vpack.c.b16 %v1960, %v1959
  %v1975 = vpack.c.b16 %v1962, %v1961
  %v1976 = vpack.c.b16 %v1964, %v1963
  %v1977 = vpack.c.b16 %v1966, %v1965
  %v1978 = vpack.c.b16 %v1968, %v1967
  %v1979 = vpack.c.b16 %v1970, %v1969
  %v1980 = vpack.c.b16 %v1972, %v1971
  %1989 = vmatprep.subr.bf16.mxu0 0
  %1990 = vmatpush1.bf16.msra.mxu0 %v1980
  %1991 = vmatprep.subr.bf16.mxu0 0
  %1992 = vmatpush1.bf16.msra.mxu0 %v1979
  %1993 = vmatprep.subr.bf16.mxu0 0
  %1994 = vmatpush1.bf16.msra.mxu0 %v1978
  %1995 = vmatprep.subr.bf16.mxu0 0
  %1996 = vmatpush1.bf16.msra.mxu0 %v1977
  %1997 = vmatprep.subr.bf16.mxu0 0
  %1998 = vmatpush1.bf16.msra.mxu0 %v1976
  %1999 = vmatprep.subr.bf16.mxu0 0
  %2000 = vmatpush1.bf16.msra.mxu0 %v1975
  %2001 = vmatprep.subr.bf16.mxu0 0
  %2002 = vmatpush1.bf16.msra.mxu0 %v1974
  %2003 = vmatprep.subr.bf16.mxu0 0
  %2004 = vmatpush1.bf16.msra.mxu0 %v1973
  %2005 = vmatprep.subr.bf16.mxu0 0
  %2006 = vmatpush2.bf16.msra.mxu0 0
  %2007 = vmatprep.subr.bf16.mxu0 0
  %2008 = vmatpush2.bf16.msra.mxu0 0
  %2009 = vmatprep.subr.bf16.mxu0 0
  %2010 = vmatpush2.bf16.msra.mxu0 0
  %2011 = vmatprep.subr.bf16.mxu0 0
  %2012 = vmatpush2.bf16.msra.mxu0 0
  %2013 = vmatprep.subr.bf16.mxu0 0
  %2014 = vmatpush2.bf16.msra.mxu0 0
  %2015 = vmatprep.subr.bf16.mxu0 0
  %2016 = vmatpush2.bf16.msra.mxu0 0
  %2017 = vmatprep.subr.bf16.mxu0 0
  %2018 = vmatpush2.bf16.msra.mxu0 0
  %2019 = vmatprep.subr.bf16.mxu0 0
  %2020 = vmatpush2.bf16.msra.mxu0 0
  %2021 = vmatprep.mubr.bf16.mxu0 0
  %2022 = vmatmul.mubr.bf16.gmra.mxu0 %v1934
  %v2023 = vpop.f32.mrf.mxu0
  %v2024 = vadd.f32 %v1940, %v2023
  %v2025 = vpop.f32.mrf.mxu0
  %v2026 = vpop.f32.mrf.mxu0
  %v2027 = vadd.f32 %v1940, %v2026
  %v2028 = vpop.f32.mrf.mxu0
  %2029 = vmatprep.mubr.bf16.mxu0 0
  %2030 = vmatmul.mubr.bf16.gmra.mxu0 %v1935
  %v2031 = vpop.f32.mrf.mxu0
  %v2032 = vadd.f32 %v1940, %v2031
  %v2033 = vpop.f32.mrf.mxu0
  %v2034 = vpop.f32.mrf.mxu0
  %v2035 = vadd.f32 %v1940, %v2034
  %v2036 = vpop.f32.mrf.mxu0
  %2037 = vdwg.mxu0
  %v2038 = vadd.f32 %v1784, %v2024
  %v2039 = vadd.f32 %v1785, %v2027
  %v2040 = vadd.f32 %v1786, %v2032
  %v2041 = vadd.f32 %v1787, %v2035
  %v2042 = vld [vmem:[%s2 + $0x24] sm:$0x1]
  %v2043 = vsel %vm180, %v2038, 0.0
  %2044 = vadd.xlane.f32.xlu0 %v2043
  %v2045 = vpop.xlane.xlu0 %2044
  %v2046 = vsel %vm180, %v2039, 0.0
  %2047 = vadd.xlane.f32.xlu0 %v2046
  %v2048 = vpop.xlane.xlu0 %2047
  %v2049 = vsel %vm180, %v2040, 0.0
  %2050 = vadd.xlane.f32.xlu0 %v2049
  %v2051 = vpop.xlane.xlu0 %2050
  %v2052 = vsel %vm190, %v2041, 0.0
  %2053 = vadd.xlane.f32.xlu0 %v2052
  %v2054 = vpop.xlane.xlu0 %2053
  %v2055 = vmul.f32 %v2045, %v194
  %v2056 = vmul.f32 %v2048, %v194
  %v2057 = vmul.f32 %v2051, %v194
  %v2058 = vmul.f32 %v2054, %v194
  %v2059 = vsub.f32 %v2038, %v2055
  %v2060 = vsub.f32 %v2039, %v2056
  %v2061 = vsub.f32 %v2040, %v2057
  %v2062 = vsub.f32 %v2041, %v2058
  %v2063 = vmul.f32 %v2059, %v2059
  %v2064 = vmul.f32 %v2060, %v2060
  %v2065 = vmul.f32 %v2061, %v2061
  %v2066 = vmul.f32 %v2062, %v2062
  %v2067 = vsel %vm180, %v2063, 0.0
  %2068 = vadd.xlane.f32.xlu0 %v2067
  %v2069 = vpop.xlane.xlu0 %2068
  %v2070 = vsel %vm180, %v2064, 0.0
  %2071 = vadd.xlane.f32.xlu0 %v2070
  %v2072 = vpop.xlane.xlu0 %2071
  %v2073 = vsel %vm180, %v2065, 0.0
  %2074 = vadd.xlane.f32.xlu0 %v2073
  %v2075 = vpop.xlane.xlu0 %2074
  %v2076 = vsel %vm190, %v2066, 0.0
  %2077 = vadd.xlane.f32.xlu0 %v2076
  %v2078 = vpop.xlane.xlu0 %2077
  %v2079 = vmul.f32 %v2069, %v194
  %v2080 = vmul.f32 %v2072, %v194
  %v2081 = vmul.f32 %v2075, %v194
  %v2082 = vmul.f32 %v2078, %v194
  %v2083 = vadd.f32 %v2079, 1e-12
  %v2084 = vadd.f32 %v2080, 1e-12
  %v2085 = vadd.f32 %v2081, 1e-12
  %v2086 = vadd.f32 %v2082, 1e-12
  %v2087 = vrsqrt.pop %v2083
  %v2088 = vrsqrt.pop %v2084
  %v2089 = vrsqrt.pop %v2085
  %v2090 = vrsqrt.pop %v2086
  %v2091 = vmul.f32 %v2059, %v2087
  %v2092 = vmul.f32 %v2060, %v2088
  %v2093 = vmul.f32 %v2061, %v2089
  %v2094 = vmul.f32 %v2062, %v2090
  %v2095 = vlaneseq
  %v2096 = vshrl.u32 %v2095, 7
  %v2097 = vsub.s32 0, %v2096
  %v2098 = vrot.slane %v2042, %v2097
  %v2099 = vmul.f32 %v2091, %v2098
  %v2100 = vmul.f32 %v2092, %v2098
  %v2101 = vmul.f32 %v2093, %v2098
  %v2102 = vmul.f32 %v2094, %v2098
  %2104 = vrot.lane.b32.xlu0 %v2098, 64
  %v2105 = vpop.permute.xlu0 %2104
  %v2107 = vadd.f32 %v2099, %v2105
  %v2108 = vadd.f32 %v2100, %v2105
  %v2109 = vadd.f32 %v2101, %v2105
  %v2110 = vadd.f32 %v2102, %v2105
  %s2111 = scalar_lea.vmem %s3, 64
  %v2112 = vld [vmem:[%s2111] sm:$0xff]
  %v2113 = vld [vmem:[%s2111 + $0x8] sm:$0xff]
  %v2114 = vld [vmem:[%s2111 + $0x10] sm:$0xff]
  %v2115 = vld [vmem:[%s2111 + $0x18] sm:$0xff]
  %v2116 = vld [vmem:[%s2111 + $0x20] sm:$0xff]
  %v2117 = vld [vmem:[%s2111 + $0x28] sm:$0xff]
  %v2118 = vld [vmem:[%s2111 + $0x30] sm:$0xff]
  %v2119 = vld [vmem:[%s2111 + $0x38] sm:$0xff]
  %v2120 = vpack.c.bf16 %v2108, %v2107
  %v2121 = vpack.c.bf16 %v2110, %v2109
  %v2130 = vunpack.c.l.b16 %v2112
  %v2131 = vunpack.c.h.b16 %v2112
  %v2132 = vunpack.c.l.b16 %v2113
  %v2133 = vunpack.c.h.b16 %v2113
  %v2134 = vunpack.c.l.b16 %v2114
  %v2135 = vunpack.c.h.b16 %v2114
  %v2136 = vunpack.c.l.b16 %v2115
  %v2137 = vunpack.c.h.b16 %v2115
  %v2138 = vunpack.c.l.b16 %v2116
  %v2139 = vunpack.c.h.b16 %v2116
  %v2140 = vunpack.c.l.b16 %v2117
  %v2141 = vunpack.c.h.b16 %v2117
  %v2142 = vunpack.c.l.b16 %v2118
  %v2143 = vunpack.c.h.b16 %v2118
  %v2144 = vunpack.c.l.b16 %v2119
  %v2145 = vunpack.c.h.b16 %v2119
  %v2146 = vpack.c.b16 %v2132, %v2130
  %v2147 = vpack.c.b16 %v2133, %v2131
  %v2148 = vpack.c.b16 %v2136, %v2134
  %v2149 = vpack.c.b16 %v2137, %v2135
  %v2150 = vpack.c.b16 %v2140, %v2138
  %v2151 = vpack.c.b16 %v2141, %v2139
  %v2152 = vpack.c.b16 %v2144, %v2142
  %v2153 = vpack.c.b16 %v2145, %v2143
  %v2163 = vsel %vm180, %v2120, 0
  %v2166 = vsel %vm180, %v2121, 0
  %2168 = vmatprep.subr.bf16.mxu0 0
  %2169 = vmatpush1.bf16.msra.mxu0 0
  %2170 = vmatprep.subr.bf16.mxu0 0
  %2171 = vmatpush1.bf16.msra.mxu0 0
  %2172 = vmatprep.subr.bf16.mxu0 0
  %2173 = vmatpush1.bf16.msra.mxu0 0
  %2174 = vmatprep.subr.bf16.mxu0 0
  %2175 = vmatpush1.bf16.msra.mxu0 0
  %2176 = vmatprep.subr.bf16.mxu0 %v2153
  %2177 = vmatpush1.bf16.msra.mxu0 %v2152
  %2178 = vmatprep.subr.bf16.mxu0 %v2151
  %2179 = vmatpush1.bf16.msra.mxu0 %v2150
  %2180 = vmatprep.subr.bf16.mxu0 %v2149
  %2181 = vmatpush1.bf16.msra.mxu0 %v2148
  %2182 = vmatprep.subr.bf16.mxu0 %v2147
  %2183 = vmatpush1.bf16.msra.mxu0 %v2146
  %2184 = vmatprep.subr.bf16.mxu0 0
  %2185 = vmatpush2.bf16.msra.mxu0 0
  %2186 = vmatprep.subr.bf16.mxu0 0
  %2187 = vmatpush2.bf16.msra.mxu0 0
  %2188 = vmatprep.subr.bf16.mxu0 0
  %2189 = vmatpush2.bf16.msra.mxu0 0
  %2190 = vmatprep.subr.bf16.mxu0 0
  %2191 = vmatpush2.bf16.msra.mxu0 0
  %2192 = vmatprep.subr.bf16.mxu0 0
  %2193 = vmatpush2.bf16.msra.mxu0 0
  %2194 = vmatprep.subr.bf16.mxu0 0
  %2195 = vmatpush2.bf16.msra.mxu0 0
  %2196 = vmatprep.subr.bf16.mxu0 0
  %2197 = vmatpush2.bf16.msra.mxu0 0
  %2198 = vmatprep.subr.bf16.mxu0 0
  %2199 = vmatpush2.bf16.msra.mxu0 0
  %2200 = vmatprep.mubr.bf16.mxu0 0
  %2201 = vmatmul.mubr.bf16.gmra.mxu0 %v2163
  %v2202 = vpop.f32.mrf.mxu0
  %v2203 = vadd.f32 0.0, %v2202
  %v2204 = vpop.f32.mrf.mxu0
  %v2205 = vadd.f32 0.0, %v2204
  %v2206 = vpop.f32.mrf.mxu0
  %v2207 = vadd.f32 0.0, %v2206
  %v2208 = vpop.f32.mrf.mxu0
  %v2209 = vadd.f32 0.0, %v2208
  %2210 = vmatprep.mubr.bf16.mxu0 0
  %2211 = vmatmul.mubr.bf16.gmra.mxu0 %v2166
  %v2212 = vpop.f32.mrf.mxu0
  %v2213 = vadd.f32 0.0, %v2212
  %v2214 = vpop.f32.mrf.mxu0
  %v2215 = vadd.f32 0.0, %v2214
  %v2216 = vpop.f32.mrf.mxu0
  %v2217 = vadd.f32 0.0, %v2216
  %v2218 = vpop.f32.mrf.mxu0
  %v2219 = vadd.f32 0.0, %v2218
  %2220 = vdwg.mxu0
  %v2221 = vld [vmem:[%s2 + $0x26] sm:$0x1]
  %v2222 = vlaneseq
  %v2223 = vshrl.u32 %v2222, 7
  %v2224 = vsub.s32 0, %v2223
  %v2225 = vrot.slane %v2221, %v2224
  %v2226 = vadd.f32 %v2203, %v2225
  %v2227 = vadd.f32 %v2207, %v2225
  %v2228 = vadd.f32 %v2213, %v2225
  %v2229 = vadd.f32 %v2217, %v2225
  %v2230 = vld [vmem:[%s2 + $0x27] sm:$0x1]
  %v2231 = vlaneseq
  %v2232 = vshrl.u32 %v2231, 7
  %v2233 = vsub.s32 0, %v2232
  %v2234 = vrot.slane %v2230, %v2233
  %v2235 = vadd.f32 %v2205, %v2234
  %v2236 = vadd.f32 %v2209, %v2234
  %v2237 = vadd.f32 %v2215, %v2234
  %v2238 = vadd.f32 %v2219, %v2234
  %2239 = vst.msk [vmem:[#allocation2] sm:$0xff] %vm920, %v2226
  %2240 = vst.msk [vmem:[#allocation2 + $0x8] sm:$0xff] %vm920, %v2227
  %2241 = vst.msk [vmem:[#allocation2 + $0x10] sm:$0xff] %vm920, %v2228
  %2242 = vst.msk [vmem:[#allocation2 + $0x18] sm:$0x3f] %vm924, %v2229
  %2247 = vrot.lane.b32.xlu0 %v2226, 80
  %v2248 = vpop.permute.xlu0 %2247
  %2249 = vrot.lane.b32.xlu0 %v2227, 80
  %v2250 = vpop.permute.xlu0 %2249
  %2251 = vrot.lane.b32.xlu0 %v2228, 80
  %v2252 = vpop.permute.xlu0 %2251
  %2253 = vrot.lane.b32.xlu0 %v2229, 80
  %v2254 = vpop.permute.xlu0 %2253
  %2259 = vst.msk [vmem:[#allocation2] sm:$0xff] %vm942, %v2248
  %2260 = vst.msk [vmem:[#allocation2 + $0x8] sm:$0xff] %vm942, %v2250
  %2261 = vst.msk [vmem:[#allocation2 + $0x10] sm:$0xff] %vm942, %v2252
  %2262 = vst.msk [vmem:[#allocation2 + $0x18] sm:$0x3f] %vm946, %v2254
  %2267 = vrot.lane.b32.xlu0 %v2235, 32
  %v2268 = vpop.permute.xlu0 %2267
  %2269 = vrot.lane.b32.xlu0 %v2236, 32
  %v2270 = vpop.permute.xlu0 %2269
  %2271 = vrot.lane.b32.xlu0 %v2237, 32
  %v2272 = vpop.permute.xlu0 %2271
  %2273 = vrot.lane.b32.xlu0 %v2238, 32
  %v2274 = vpop.permute.xlu0 %2273
  %2279 = vst.msk [vmem:[#allocation2] sm:$0xff] %vm964, %v2268
  %2280 = vst.msk [vmem:[#allocation2 + $0x8] sm:$0xff] %vm964, %v2270
  %2281 = vst.msk [vmem:[#allocation2 + $0x10] sm:$0xff] %vm964, %v2272
  %2282 = vst.msk [vmem:[#allocation2 + $0x18] sm:$0x3f] %vm968, %v2274
  %2283 = vrot.lane.b32.xlu0 %v2226, 112
  %v2284 = vpop.permute.xlu0 %2283
  %2285 = vrot.lane.b32.xlu0 %v2227, 112
  %v2286 = vpop.permute.xlu0 %2285
  %2287 = vrot.lane.b32.xlu0 %v2228, 112
  %v2288 = vpop.permute.xlu0 %2287
  %2289 = vrot.lane.b32.xlu0 %v2229, 112
  %v2290 = vpop.permute.xlu0 %2289
  %2295 = vst.msk [vmem:[#allocation2 + $0x20] sm:$0xff] %vm920, %v2284
  %2296 = vst.msk [vmem:[#allocation2 + $0x28] sm:$0xff] %vm920, %v2286
  %2297 = vst.msk [vmem:[#allocation2 + $0x30] sm:$0xff] %vm920, %v2288
  %2298 = vst.msk [vmem:[#allocation2 + $0x38] sm:$0x3f] %vm924, %v2290
  %2299 = vrot.lane.b32.xlu0 %v2226, 64
  %v2300 = vpop.permute.xlu0 %2299
  %2301 = vrot.lane.b32.xlu0 %v2227, 64
  %v2302 = vpop.permute.xlu0 %2301
  %2303 = vrot.lane.b32.xlu0 %v2228, 64
  %v2304 = vpop.permute.xlu0 %2303
  %2305 = vrot.lane.b32.xlu0 %v2229, 64
  %v2306 = vpop.permute.xlu0 %2305
  %2311 = vst.msk [vmem:[#allocation2 + $0x20] sm:$0xff] %vm942, %v2300
  %2312 = vst.msk [vmem:[#allocation2 + $0x28] sm:$0xff] %vm942, %v2302
  %2313 = vst.msk [vmem:[#allocation2 + $0x30] sm:$0xff] %vm942, %v2304
  %2314 = vst.msk [vmem:[#allocation2 + $0x38] sm:$0x3f] %vm946, %v2306
  %2315 = vrot.lane.b32.xlu0 %v2235, 16
  %v2316 = vpop.permute.xlu0 %2315
  %2317 = vrot.lane.b32.xlu0 %v2236, 16
  %v2318 = vpop.permute.xlu0 %2317
  %2319 = vrot.lane.b32.xlu0 %v2237, 16
  %v2320 = vpop.permute.xlu0 %2319
  %2321 = vrot.lane.b32.xlu0 %v2238, 16
  %v2322 = vpop.permute.xlu0 %2321
  %2327 = vst.msk [vmem:[#allocation2 + $0x20] sm:$0xff] %vm964, %v2316
  %2328 = vst.msk [vmem:[#allocation2 + $0x28] sm:$0xff] %vm964, %v2318
  %2329 = vst.msk [vmem:[#allocation2 + $0x30] sm:$0xff] %vm964, %v2320
  %2330 = vst.msk [vmem:[#allocation2 + $0x38] sm:$0x3f] %vm968, %v2322
  %2331 = vrot.lane.b32.xlu0 %v2226, 96
  %v2332 = vpop.permute.xlu0 %2331
  %2333 = vrot.lane.b32.xlu0 %v2227, 96
  %v2334 = vpop.permute.xlu0 %2333
  %2335 = vrot.lane.b32.xlu0 %v2228, 96
  %v2336 = vpop.permute.xlu0 %2335
  %2337 = vrot.lane.b32.xlu0 %v2229, 96
  %v2338 = vpop.permute.xlu0 %2337
  %2343 = vst.msk [vmem:[#allocation2 + $0x40] sm:$0xff] %vm920, %v2332
  %2344 = vst.msk [vmem:[#allocation2 + $0x48] sm:$0xff] %vm920, %v2334
  %2345 = vst.msk [vmem:[#allocation2 + $0x50] sm:$0xff] %vm920, %v2336
  %2346 = vst.msk [vmem:[#allocation2 + $0x58] sm:$0x3f] %vm924, %v2338
  %2347 = vrot.lane.b32.xlu0 %v2226, 48
  %v2348 = vpop.permute.xlu0 %2347
  %2349 = vrot.lane.b32.xlu0 %v2227, 48
  %v2350 = vpop.permute.xlu0 %2349
  %2351 = vrot.lane.b32.xlu0 %v2228, 48
  %v2352 = vpop.permute.xlu0 %2351
  %2353 = vrot.lane.b32.xlu0 %v2229, 48
  %v2354 = vpop.permute.xlu0 %2353
  %2359 = vst.msk [vmem:[#allocation2 + $0x40] sm:$0xff] %vm942, %v2348
  %2360 = vst.msk [vmem:[#allocation2 + $0x48] sm:$0xff] %vm942, %v2350
  %2361 = vst.msk [vmem:[#allocation2 + $0x50] sm:$0xff] %vm942, %v2352
  %2362 = vst.msk [vmem:[#allocation2 + $0x58] sm:$0x3f] %vm946, %v2354
  %2363 = vst.msk [vmem:[#allocation2 + $0x40] sm:$0xff] %vm964, %v2235
  %2364 = vst.msk [vmem:[#allocation2 + $0x48] sm:$0xff] %vm964, %v2236
  %2365 = vst.msk [vmem:[#allocation2 + $0x50] sm:$0xff] %vm964, %v2237
  %2366 = vst.msk [vmem:[#allocation2 + $0x58] sm:$0x3f] %vm968, %v2238
  %2367 = vst.msk [vmem:[#allocation2 + $0x60] sm:$0xff] %vm920, %v2248
  %2368 = vst.msk [vmem:[#allocation2 + $0x68] sm:$0xff] %vm920, %v2250
  %2369 = vst.msk [vmem:[#allocation2 + $0x70] sm:$0xff] %vm920, %v2252
  %2370 = vst.msk [vmem:[#allocation2 + $0x78] sm:$0x3f] %vm924, %v2254
  %2371 = vrot.lane.b32.xlu0 %v2226, 32
  %v2372 = vpop.permute.xlu0 %2371
  %2373 = vrot.lane.b32.xlu0 %v2227, 32
  %v2374 = vpop.permute.xlu0 %2373
  %2375 = vrot.lane.b32.xlu0 %v2228, 32
  %v2376 = vpop.permute.xlu0 %2375
  %2377 = vrot.lane.b32.xlu0 %v2229, 32
  %v2378 = vpop.permute.xlu0 %2377
  %2383 = vst.msk [vmem:[#allocation2 + $0x60] sm:$0xff] %vm942, %v2372
  %2384 = vst.msk [vmem:[#allocation2 + $0x68] sm:$0xff] %vm942, %v2374
  %2385 = vst.msk [vmem:[#allocation2 + $0x70] sm:$0xff] %vm942, %v2376
  %2386 = vst.msk [vmem:[#allocation2 + $0x78] sm:$0x3f] %vm946, %v2378
  %2387 = vrot.lane.b32.xlu0 %v2235, 112
  %v2388 = vpop.permute.xlu0 %2387
  %2389 = vrot.lane.b32.xlu0 %v2236, 112
  %v2390 = vpop.permute.xlu0 %2389
  %2391 = vrot.lane.b32.xlu0 %v2237, 112
  %v2392 = vpop.permute.xlu0 %2391
  %2393 = vrot.lane.b32.xlu0 %v2238, 112
  %v2394 = vpop.permute.xlu0 %2393
  %2399 = vst.msk [vmem:[#allocation2 + $0x60] sm:$0xff] %vm964, %v2388
  %2400 = vst.msk [vmem:[#allocation2 + $0x68] sm:$0xff] %vm964, %v2390
  %2401 = vst.msk [vmem:[#allocation2 + $0x70] sm:$0xff] %vm964, %v2392
  %2402 = vst.msk [vmem:[#allocation2 + $0x78] sm:$0x3f] %vm968, %v2394
  %v2403 = vld [vmem:[#allocation2] sm:$0xff]
  %v2404 = vld [vmem:[#allocation2 + $0x8] sm:$0xff]
  %v2405 = vld [vmem:[#allocation2 + $0x10] sm:$0xff]
  %v2406 = vld [vmem:[#allocation2 + $0x18] sm:$0xff]
  %v2407 = vld [vmem:[#allocation2 + $0x20] sm:$0xff]
  %v2408 = vld [vmem:[#allocation2 + $0x28] sm:$0xff]
  %v2409 = vld [vmem:[#allocation2 + $0x30] sm:$0xff]
  %v2410 = vld [vmem:[#allocation2 + $0x38] sm:$0xff]
  %v2411 = vld [vmem:[#allocation2 + $0x40] sm:$0xff]
  %v2412 = vld [vmem:[#allocation2 + $0x48] sm:$0xff]
  %v2413 = vld [vmem:[#allocation2 + $0x50] sm:$0xff]
  %v2414 = vld [vmem:[#allocation2 + $0x58] sm:$0xff]
  %v2415 = vld [vmem:[#allocation2 + $0x60] sm:$0xff]
  %v2416 = vld [vmem:[#allocation2 + $0x68] sm:$0xff]
  %v2417 = vld [vmem:[#allocation2 + $0x70] sm:$0xff]
  %v2418 = vld [vmem:[#allocation2 + $0x78] sm:$0xff]
  %v2419 = vpack.c.bf16 %v2404, %v2403
  %v2420 = vpack.c.bf16 %v2406, %v2405
  %v2421 = vpack.c.bf16 %v2408, %v2407
  %v2422 = vpack.c.bf16 %v2410, %v2409
  %v2423 = vpack.c.bf16 %v2412, %v2411
  %v2424 = vpack.c.bf16 %v2414, %v2413
  %v2425 = vpack.c.bf16 %v2416, %v2415
  %v2426 = vpack.c.bf16 %v2418, %v2417
  %2435 = vrot.lane.b32.xlu0 %v2419, 112
  %v2436 = vpop.permute.xlu0 %2435
  %2437 = vrot.lane.b32.xlu0 %v2420, 112
  %v2438 = vpop.permute.xlu0 %2437
  %2439 = vrot.lane.b32.xlu0 %v2421, 112
  %v2440 = vpop.permute.xlu0 %2439
  %2441 = vrot.lane.b32.xlu0 %v2422, 112
  %v2442 = vpop.permute.xlu0 %2441
  %2443 = vrot.lane.b32.xlu0 %v2423, 112
  %v2444 = vpop.permute.xlu0 %2443
  %2445 = vrot.lane.b32.xlu0 %v2424, 112
  %v2446 = vpop.permute.xlu0 %2445
  %2447 = vrot.lane.b32.xlu0 %v2425, 112
  %v2448 = vpop.permute.xlu0 %2447
  %2449 = vrot.lane.b32.xlu0 %v2426, 112
  %v2450 = vpop.permute.xlu0 %2449
  %v2452 = vsel %vm920, %v2419, 0
  %v2455 = vsel %vm920, %v2420, 0
  %v2458 = vsel %vm920, %v2421, 0
  %v2461 = vsel %vm920, %v2422, 0
  %v2464 = vsel %vm920, %v2423, 0
  %v2467 = vsel %vm920, %v2424, 0
  %v2470 = vsel %vm920, %v2425, 0
  %v2473 = vsel %vm920, %v2426, 0
  %v2476 = vsel %vm920, %v2436, 0
  %v2479 = vsel %vm920, %v2438, 0
  %v2482 = vsel %vm920, %v2440, 0
  %v2485 = vsel %vm920, %v2442, 0
  %v2488 = vsel %vm920, %v2444, 0
  %v2491 = vsel %vm920, %v2446, 0
  %v2494 = vsel %vm920, %v2448, 0
  %v2497 = vsel %vm920, %v2450, 0
  %2499 = vmatprep.subr.bf16.mxu0 0
  %2500 = vmatpush1.bf16.xpose.msra.mxu0 %v2497
  %2501 = vmatprep.subr.bf16.mxu0 0
  %2502 = vmatpush1.bf16.xpose.msra.mxu0 %v2494
  %2503 = vmatprep.subr.bf16.mxu0 0
  %2504 = vmatpush1.bf16.xpose.msra.mxu0 %v2491
  %2505 = vmatprep.subr.bf16.mxu0 0
  %2506 = vmatpush1.bf16.xpose.msra.mxu0 %v2488
  %2507 = vmatprep.subr.bf16.mxu0 0
  %2508 = vmatpush1.bf16.xpose.msra.mxu0 %v2485
  %2509 = vmatprep.subr.bf16.mxu0 0
  %2510 = vmatpush1.bf16.xpose.msra.mxu0 %v2482
  %2511 = vmatprep.subr.bf16.mxu0 0
  %2512 = vmatpush1.bf16.xpose.msra.mxu0 %v2479
  %2513 = vmatprep.subr.bf16.mxu0 0
  %2514 = vmatpush1.bf16.xpose.msra.mxu0 %v2476
  %2515 = vmatprep.subr.bf16.mxu0 0
  %2516 = vmatpush2.bf16.xpose.msra.mxu0 0
  %2517 = vmatprep.subr.bf16.mxu0 0
  %2518 = vmatpush2.bf16.xpose.msra.mxu0 0
  %2519 = vmatprep.subr.bf16.mxu0 0
  %2520 = vmatpush2.bf16.xpose.msra.mxu0 0
  %2521 = vmatprep.subr.bf16.mxu0 0
  %2522 = vmatpush2.bf16.xpose.msra.mxu0 0
  %2523 = vmatprep.subr.bf16.mxu0 0
  %2524 = vmatpush2.bf16.xpose.msra.mxu0 0
  %2525 = vmatprep.subr.bf16.mxu0 0
  %2526 = vmatpush2.bf16.xpose.msra.mxu0 0
  %2527 = vmatprep.subr.bf16.mxu0 0
  %2528 = vmatpush2.bf16.xpose.msra.mxu0 0
  %2529 = vmatprep.subr.bf16.mxu0 0
  %2530 = vmatpush2.bf16.xpose.msra.mxu0 0
  %2531 = vmatprep.mubr.bf16.mxu0 0
  %2532 = vmatmul.mubr.bf16.gmra.mxu0 %v2452
  %v2533 = vpop.f32.mrf.mxu0
  %v2534 = vadd.f32 %v777, %v2533
  %v2535 = vpop.f32.mrf.mxu0
  %v2536 = vpop.f32.mrf.mxu0
  %v2537 = vadd.f32 %v778, %v2536
  %v2538 = vpop.f32.mrf.mxu0
  %2539 = vmatprep.mubr.bf16.mxu0 0
  %2540 = vmatmul.mubr.bf16.gmra.mxu0 %v2455
  %v2541 = vpop.f32.mrf.mxu0
  %v2542 = vadd.f32 %v779, %v2541
  %v2543 = vpop.f32.mrf.mxu0
  %v2544 = vpop.f32.mrf.mxu0
  %v2545 = vadd.f32 %v780, %v2544
  %v2546 = vpop.f32.mrf.mxu0
  %2547 = vmatprep.mubr.bf16.mxu0 0
  %2548 = vmatmul.mubr.bf16.gmra.mxu0 %v2458
  %v2549 = vpop.f32.mrf.mxu0
  %v2550 = vadd.f32 %v781, %v2549
  %v2551 = vpop.f32.mrf.mxu0
  %v2552 = vpop.f32.mrf.mxu0
  %v2553 = vadd.f32 %v782, %v2552
  %v2554 = vpop.f32.mrf.mxu0
  %2555 = vmatprep.mubr.bf16.mxu0 0
  %2556 = vmatmul.mubr.bf16.gmra.mxu0 %v2461
  %v2557 = vpop.f32.mrf.mxu0
  %v2558 = vadd.f32 %v783, %v2557
  %v2559 = vpop.f32.mrf.mxu0
  %v2560 = vpop.f32.mrf.mxu0
  %v2561 = vadd.f32 %v784, %v2560
  %v2562 = vpop.f32.mrf.mxu0
  %2563 = vmatprep.mubr.bf16.mxu0 0
  %2564 = vmatmul.mubr.bf16.gmra.mxu0 %v2464
  %v2565 = vpop.f32.mrf.mxu0
  %v2566 = vadd.f32 %v785, %v2565
  %v2567 = vpop.f32.mrf.mxu0
  %v2568 = vpop.f32.mrf.mxu0
  %v2569 = vadd.f32 %v786, %v2568
  %v2570 = vpop.f32.mrf.mxu0
  %2571 = vmatprep.mubr.bf16.mxu0 0
  %2572 = vmatmul.mubr.bf16.gmra.mxu0 %v2467
  %v2573 = vpop.f32.mrf.mxu0
  %v2574 = vadd.f32 %v787, %v2573
  %v2575 = vpop.f32.mrf.mxu0
  %v2576 = vpop.f32.mrf.mxu0
  %v2577 = vadd.f32 %v788, %v2576
  %v2578 = vpop.f32.mrf.mxu0
  %2579 = vmatprep.mubr.bf16.mxu0 0
  %2580 = vmatmul.mubr.bf16.gmra.mxu0 %v2470
  %v2581 = vpop.f32.mrf.mxu0
  %v2582 = vadd.f32 %v789, %v2581
  %v2583 = vpop.f32.mrf.mxu0
  %v2584 = vpop.f32.mrf.mxu0
  %v2585 = vadd.f32 %v790, %v2584
  %v2586 = vpop.f32.mrf.mxu0
  %2587 = vmatprep.mubr.bf16.mxu0 0
  %2588 = vmatmul.mubr.bf16.gmra.mxu0 %v2473
  %v2589 = vpop.f32.mrf.mxu0
  %v2590 = vadd.f32 %v791, %v2589
  %v2591 = vpop.f32.mrf.mxu0
  %v2592 = vpop.f32.mrf.mxu0
  %v2593 = vadd.f32 %v792, %v2592
  %v2594 = vpop.f32.mrf.mxu0
  %2595 = vdwg.mxu0
  %2596 = vmax.xlane.f32.xlu0 %v2534
  %v2597 = vpop.xlane.xlu0 %2596
  %2598 = vmax.xlane.f32.xlu0 %v2537
  %v2599 = vpop.xlane.xlu0 %2598
  %2600 = vmax.xlane.f32.xlu0 %v2542
  %v2601 = vpop.xlane.xlu0 %2600
  %2602 = vmax.xlane.f32.xlu0 %v2545
  %v2603 = vpop.xlane.xlu0 %2602
  %2604 = vmax.xlane.f32.xlu0 %v2550
  %v2605 = vpop.xlane.xlu0 %2604
  %2606 = vmax.xlane.f32.xlu0 %v2553
  %v2607 = vpop.xlane.xlu0 %2606
  %2608 = vmax.xlane.f32.xlu0 %v2558
  %v2609 = vpop.xlane.xlu0 %2608
  %2610 = vmax.xlane.f32.xlu0 %v2561
  %v2611 = vpop.xlane.xlu0 %2610
  %2612 = vmax.xlane.f32.xlu0 %v2566
  %v2613 = vpop.xlane.xlu0 %2612
  %2614 = vmax.xlane.f32.xlu0 %v2569
  %v2615 = vpop.xlane.xlu0 %2614
  %2616 = vmax.xlane.f32.xlu0 %v2574
  %v2617 = vpop.xlane.xlu0 %2616
  %2618 = vmax.xlane.f32.xlu0 %v2577
  %v2619 = vpop.xlane.xlu0 %2618
  %2620 = vmax.xlane.f32.xlu0 %v2582
  %v2621 = vpop.xlane.xlu0 %2620
  %2622 = vmax.xlane.f32.xlu0 %v2585
  %v2623 = vpop.xlane.xlu0 %2622
  %2624 = vmax.xlane.f32.xlu0 %v2590
  %v2625 = vpop.xlane.xlu0 %2624
  %2626 = vmax.xlane.f32.xlu0 %v2593
  %v2627 = vpop.xlane.xlu0 %2626
  %v2628 = vsub.f32 %v2534, %v2597
  %v2629 = vsub.f32 %v2537, %v2599
  %v2630 = vsub.f32 %v2542, %v2601
  %v2631 = vsub.f32 %v2545, %v2603
  %v2632 = vsub.f32 %v2550, %v2605
  %v2633 = vsub.f32 %v2553, %v2607
  %v2634 = vsub.f32 %v2558, %v2609
  %v2635 = vsub.f32 %v2561, %v2611
  %v2636 = vsub.f32 %v2566, %v2613
  %v2637 = vsub.f32 %v2569, %v2615
  %v2638 = vsub.f32 %v2574, %v2617
  %v2639 = vsub.f32 %v2577, %v2619
  %v2640 = vsub.f32 %v2582, %v2621
  %v2641 = vsub.f32 %v2585, %v2623
  %v2642 = vsub.f32 %v2590, %v2625
  %v2643 = vsub.f32 %v2593, %v2627
  %v2644 = vmul.f32 %v2628, 1.442695
  %v2645 = vpow.pop %v2644
  %v2646 = vmul.f32 %v2629, 1.442695
  %v2647 = vpow.pop %v2646
  %v2648 = vmul.f32 %v2630, 1.442695
  %v2649 = vpow.pop %v2648
  %v2650 = vmul.f32 %v2631, 1.442695
  %v2651 = vpow.pop %v2650
  %v2652 = vmul.f32 %v2632, 1.442695
  %v2653 = vpow.pop %v2652
  %v2654 = vmul.f32 %v2633, 1.442695
  %v2655 = vpow.pop %v2654
  %v2656 = vmul.f32 %v2634, 1.442695
  %v2657 = vpow.pop %v2656
  %v2658 = vmul.f32 %v2635, 1.442695
  %v2659 = vpow.pop %v2658
  %v2660 = vmul.f32 %v2636, 1.442695
  %v2661 = vpow.pop %v2660
  %v2662 = vmul.f32 %v2637, 1.442695
  %v2663 = vpow.pop %v2662
  %v2664 = vmul.f32 %v2638, 1.442695
  %v2665 = vpow.pop %v2664
  %v2666 = vmul.f32 %v2639, 1.442695
  %v2667 = vpow.pop %v2666
  %v2668 = vmul.f32 %v2640, 1.442695
  %v2669 = vpow.pop %v2668
  %v2670 = vmul.f32 %v2641, 1.442695
  %v2671 = vpow.pop %v2670
  %v2672 = vmul.f32 %v2642, 1.442695
  %v2673 = vpow.pop %v2672
  %v2674 = vmul.f32 %v2643, 1.442695
  %v2675 = vpow.pop %v2674
  %2676 = vadd.xlane.f32.xlu0 %v2645
  %v2677 = vpop.xlane.xlu0 %2676
  %2678 = vadd.xlane.f32.xlu0 %v2647
  %v2679 = vpop.xlane.xlu0 %2678
  %2680 = vadd.xlane.f32.xlu0 %v2649
  %v2681 = vpop.xlane.xlu0 %2680
  %2682 = vadd.xlane.f32.xlu0 %v2651
  %v2683 = vpop.xlane.xlu0 %2682
  %2684 = vadd.xlane.f32.xlu0 %v2653
  %v2685 = vpop.xlane.xlu0 %2684
  %2686 = vadd.xlane.f32.xlu0 %v2655
  %v2687 = vpop.xlane.xlu0 %2686
  %2688 = vadd.xlane.f32.xlu0 %v2657
  %v2689 = vpop.xlane.xlu0 %2688
  %2690 = vadd.xlane.f32.xlu0 %v2659
  %v2691 = vpop.xlane.xlu0 %2690
  %2692 = vadd.xlane.f32.xlu0 %v2661
  %v2693 = vpop.xlane.xlu0 %2692
  %2694 = vadd.xlane.f32.xlu0 %v2663
  %v2695 = vpop.xlane.xlu0 %2694
  %2696 = vadd.xlane.f32.xlu0 %v2665
  %v2697 = vpop.xlane.xlu0 %2696
  %2698 = vadd.xlane.f32.xlu0 %v2667
  %v2699 = vpop.xlane.xlu0 %2698
  %2700 = vadd.xlane.f32.xlu0 %v2669
  %v2701 = vpop.xlane.xlu0 %2700
  %2702 = vadd.xlane.f32.xlu0 %v2671
  %v2703 = vpop.xlane.xlu0 %2702
  %2704 = vadd.xlane.f32.xlu0 %v2673
  %v2705 = vpop.xlane.xlu0 %2704
  %2706 = vadd.xlane.f32.xlu0 %v2675
  %v2707 = vpop.xlane.xlu0 %2706
  %v2708 = vrcp.pop %v2677
  %v2709 = vrcp.pop %v2679
  %v2710 = vrcp.pop %v2681
  %v2711 = vrcp.pop %v2683
  %v2712 = vrcp.pop %v2685
  %v2713 = vrcp.pop %v2687
  %v2714 = vrcp.pop %v2689
  %v2715 = vrcp.pop %v2691
  %v2716 = vrcp.pop %v2693
  %v2717 = vrcp.pop %v2695
  %v2718 = vrcp.pop %v2697
  %v2719 = vrcp.pop %v2699
  %v2720 = vrcp.pop %v2701
  %v2721 = vrcp.pop %v2703
  %v2722 = vrcp.pop %v2705
  %v2723 = vrcp.pop %v2707
  %v2724 = vmul.f32 %v2645, %v2708
  %v2725 = vmul.f32 %v2647, %v2709
  %v2726 = vmul.f32 %v2649, %v2710
  %v2727 = vmul.f32 %v2651, %v2711
  %v2728 = vmul.f32 %v2653, %v2712
  %v2729 = vmul.f32 %v2655, %v2713
  %v2730 = vmul.f32 %v2657, %v2714
  %v2731 = vmul.f32 %v2659, %v2715
  %v2732 = vmul.f32 %v2661, %v2716
  %v2733 = vmul.f32 %v2663, %v2717
  %v2734 = vmul.f32 %v2665, %v2718
  %v2735 = vmul.f32 %v2667, %v2719
  %v2736 = vmul.f32 %v2669, %v2720
  %v2737 = vmul.f32 %v2671, %v2721
  %v2738 = vmul.f32 %v2673, %v2722
  %v2739 = vmul.f32 %v2675, %v2723
  %v2740 = vpack.c.bf16 %v2725, %v2724
  %v2741 = vpack.c.bf16 %v2727, %v2726
  %v2742 = vpack.c.bf16 %v2729, %v2728
  %v2743 = vpack.c.bf16 %v2731, %v2730
  %v2744 = vpack.c.bf16 %v2733, %v2732
  %v2745 = vpack.c.bf16 %v2735, %v2734
  %v2746 = vpack.c.bf16 %v2737, %v2736
  %v2747 = vpack.c.bf16 %v2739, %v2738
  %2748 = vrot.lane.b32.xlu0 %v2419, 96
  %v2749 = vpop.permute.xlu0 %2748
  %2750 = vrot.lane.b32.xlu0 %v2420, 96
  %v2751 = vpop.permute.xlu0 %2750
  %2752 = vrot.lane.b32.xlu0 %v2421, 96
  %v2753 = vpop.permute.xlu0 %2752
  %2754 = vrot.lane.b32.xlu0 %v2422, 96
  %v2755 = vpop.permute.xlu0 %2754
  %2756 = vrot.lane.b32.xlu0 %v2423, 96
  %v2757 = vpop.permute.xlu0 %2756
  %2758 = vrot.lane.b32.xlu0 %v2424, 96
  %v2759 = vpop.permute.xlu0 %2758
  %2760 = vrot.lane.b32.xlu0 %v2425, 96
  %v2761 = vpop.permute.xlu0 %2760
  %2762 = vrot.lane.b32.xlu0 %v2426, 96
  %v2763 = vpop.permute.xlu0 %2762
  %2772 = vmatprep.subr.bf16.mxu0 0
  %2773 = vmatpush1.bf16.msra.mxu0 %v2763
  %2774 = vmatprep.subr.bf16.mxu0 0
  %2775 = vmatpush1.bf16.msra.mxu0 %v2761
  %2776 = vmatprep.subr.bf16.mxu0 0
  %2777 = vmatpush1.bf16.msra.mxu0 %v2759
  %2778 = vmatprep.subr.bf16.mxu0 0
  %2779 = vmatpush1.bf16.msra.mxu0 %v2757
  %2780 = vmatprep.subr.bf16.mxu0 0
  %2781 = vmatpush1.bf16.msra.mxu0 %v2755
  %2782 = vmatprep.subr.bf16.mxu0 0
  %2783 = vmatpush1.bf16.msra.mxu0 %v2753
  %2784 = vmatprep.subr.bf16.mxu0 0
  %2785 = vmatpush1.bf16.msra.mxu0 %v2751
  %2786 = vmatprep.subr.bf16.mxu0 0
  %2787 = vmatpush1.bf16.msra.mxu0 %v2749
  %2788 = vmatprep.subr.bf16.mxu0 0
  %2789 = vmatpush2.bf16.msra.mxu0 0
  %2790 = vmatprep.subr.bf16.mxu0 0
  %2791 = vmatpush2.bf16.msra.mxu0 0
  %2792 = vmatprep.subr.bf16.mxu0 0
  %2793 = vmatpush2.bf16.msra.mxu0 0
  %2794 = vmatprep.subr.bf16.mxu0 0
  %2795 = vmatpush2.bf16.msra.mxu0 0
  %2796 = vmatprep.subr.bf16.mxu0 0
  %2797 = vmatpush2.bf16.msra.mxu0 0
  %2798 = vmatprep.subr.bf16.mxu0 0
  %2799 = vmatpush2.bf16.msra.mxu0 0
  %2800 = vmatprep.subr.bf16.mxu0 0
  %2801 = vmatpush2.bf16.msra.mxu0 0
  %2802 = vmatprep.subr.bf16.mxu0 0
  %2803 = vmatpush2.bf16.msra.mxu0 0
  %2804 = vmatprep.mubr.bf16.mxu0 0
  %2805 = vmatmul.mubr.bf16.gmra.mxu0 %v2740
  %v2806 = vpop.f32.mrf.mxu0
  %v2807 = vadd.f32 0.0, %v2806
  %v2808 = vpop.f32.mrf.mxu0
  %v2809 = vpop.f32.mrf.mxu0
  %v2810 = vadd.f32 0.0, %v2809
  %v2811 = vpop.f32.mrf.mxu0
  %2812 = vmatprep.mubr.bf16.mxu0 0
  %2813 = vmatmul.mubr.bf16.gmra.mxu0 %v2741
  %v2814 = vpop.f32.mrf.mxu0
  %v2815 = vadd.f32 0.0, %v2814
  %v2816 = vpop.f32.mrf.mxu0
  %v2817 = vpop.f32.mrf.mxu0
  %v2818 = vadd.f32 0.0, %v2817
  %v2819 = vpop.f32.mrf.mxu0
  %2820 = vmatprep.mubr.bf16.mxu0 0
  %2821 = vmatmul.mubr.bf16.gmra.mxu0 %v2742
  %v2822 = vpop.f32.mrf.mxu0
  %v2823 = vadd.f32 0.0, %v2822
  %v2824 = vpop.f32.mrf.mxu0
  %v2825 = vpop.f32.mrf.mxu0
  %v2826 = vadd.f32 0.0, %v2825
  %v2827 = vpop.f32.mrf.mxu0
  %2828 = vmatprep.mubr.bf16.mxu0 0
  %2829 = vmatmul.mubr.bf16.gmra.mxu0 %v2743
  %v2830 = vpop.f32.mrf.mxu0
  %v2831 = vadd.f32 0.0, %v2830
  %v2832 = vpop.f32.mrf.mxu0
  %v2833 = vpop.f32.mrf.mxu0
  %v2834 = vadd.f32 0.0, %v2833
  %v2835 = vpop.f32.mrf.mxu0
  %2836 = vmatprep.mubr.bf16.mxu0 0
  %2837 = vmatmul.mubr.bf16.gmra.mxu0 %v2744
  %v2838 = vpop.f32.mrf.mxu0
  %v2839 = vadd.f32 0.0, %v2838
  %v2840 = vpop.f32.mrf.mxu0
  %v2841 = vpop.f32.mrf.mxu0
  %v2842 = vadd.f32 0.0, %v2841
  %v2843 = vpop.f32.mrf.mxu0
  %2844 = vmatprep.mubr.bf16.mxu0 0
  %2845 = vmatmul.mubr.bf16.gmra.mxu0 %v2745
  %v2846 = vpop.f32.mrf.mxu0
  %v2847 = vadd.f32 0.0, %v2846
  %v2848 = vpop.f32.mrf.mxu0
  %v2849 = vpop.f32.mrf.mxu0
  %v2850 = vadd.f32 0.0, %v2849
  %v2851 = vpop.f32.mrf.mxu0
  %2852 = vmatprep.mubr.bf16.mxu0 0
  %2853 = vmatmul.mubr.bf16.gmra.mxu0 %v2746
  %v2854 = vpop.f32.mrf.mxu0
  %v2855 = vadd.f32 0.0, %v2854
  %v2856 = vpop.f32.mrf.mxu0
  %v2857 = vpop.f32.mrf.mxu0
  %v2858 = vadd.f32 0.0, %v2857
  %v2859 = vpop.f32.mrf.mxu0
  %2860 = vmatprep.mubr.bf16.mxu0 0
  %2861 = vmatmul.mubr.bf16.gmra.mxu0 %v2747
  %v2862 = vpop.f32.mrf.mxu0
  %v2863 = vadd.f32 0.0, %v2862
  %v2864 = vpop.f32.mrf.mxu0
  %v2865 = vpop.f32.mrf.mxu0
  %v2866 = vadd.f32 0.0, %v2865
  %v2867 = vpop.f32.mrf.mxu0
  %2868 = vdwg.mxu0
  %2873 = vrot.lane.b32.xlu0 %v2823, 16
  %v2874 = vpop.permute.xlu0 %2873
  %2875 = vrot.lane.b32.xlu0 %v2826, 16
  %v2876 = vpop.permute.xlu0 %2875
  %2877 = vrot.lane.b32.xlu0 %v2831, 16
  %v2878 = vpop.permute.xlu0 %2877
  %2879 = vrot.lane.b32.xlu0 %v2834, 16
  %v2880 = vpop.permute.xlu0 %2879
  %2889 = vrot.lane.b32.xlu0 %v2839, 32
  %v2890 = vpop.permute.xlu0 %2889
  %2891 = vrot.lane.b32.xlu0 %v2842, 32
  %v2892 = vpop.permute.xlu0 %2891
  %2893 = vrot.lane.b32.xlu0 %v2847, 32
  %v2894 = vpop.permute.xlu0 %2893
  %2895 = vrot.lane.b32.xlu0 %v2850, 32
  %v2896 = vpop.permute.xlu0 %2895
  %2905 = vrot.lane.b32.xlu0 %v2855, 48
  %v2906 = vpop.permute.xlu0 %2905
  %2907 = vrot.lane.b32.xlu0 %v2858, 48
  %v2908 = vpop.permute.xlu0 %2907
  %2909 = vrot.lane.b32.xlu0 %v2863, 48
  %v2910 = vpop.permute.xlu0 %2909
  %2911 = vrot.lane.b32.xlu0 %v2866, 48
  %v2912 = vpop.permute.xlu0 %2911
  %v2917 = vsel %vm920, %v2807, %v2874
  %v2918 = vsel %vm920, %v2810, %v2876
  %v2919 = vsel %vm920, %v2815, %v2878
  %v2920 = vsel %vm920, %v2818, %v2880
  %v2921 = vsel %vm1608, %v2917, %v2890
  %v2922 = vsel %vm1608, %v2918, %v2892
  %v2923 = vsel %vm1608, %v2919, %v2894
  %v2924 = vsel %vm1608, %v2920, %v2896
  %v2925 = vsel %vm27, %v2921, %v2906
  %v2926 = vsel %vm27, %v2922, %v2908
  %v2927 = vsel %vm27, %v2923, %v2910
  %v2928 = vsel %vm27, %v2924, %v2912
  %s2929 = scalar_lea.vmem %s4, 32
  %v2930 = vld [vmem:[%s2929] sm:$0xf]
  %v2931 = vld [vmem:[%s2929 + $0x4] sm:$0xf]
  %v2932 = vld [vmem:[%s2929 + $0x8] sm:$0xf]
  %v2933 = vld [vmem:[%s2929 + $0xc] sm:$0xf]
  %v2934 = vld [vmem:[%s2929 + $0x10] sm:$0xf]
  %v2935 = vld [vmem:[%s2929 + $0x14] sm:$0xf]
  %v2936 = vld [vmem:[%s2929 + $0x18] sm:$0xf]
  %v2937 = vld [vmem:[%s2929 + $0x1c] sm:$0xf]
  %v2938 = vpack.c.bf16 %v2926, %v2925
  %v2939 = vpack.c.bf16 %v2928, %v2927
  %v2940 = vld [vmem:[%s2 + $0x27] sm:$0x1]
  %v2941 = vlaneseq
  %v2942 = vshrl.u32 %v2941, 7
  %v2943 = vsub.s32 0, %v2942
  %v2944 = vrot.slane %v2940, %v2943
  %v2953 = vunpack.c.l.b16 %v2930
  %v2954 = vunpack.c.l.b16 %v2931
  %v2955 = vunpack.c.l.b16 %v2932
  %v2956 = vunpack.c.l.b16 %v2933
  %v2957 = vunpack.c.l.b16 %v2934
  %v2958 = vunpack.c.l.b16 %v2935
  %v2959 = vunpack.c.l.b16 %v2936
  %v2960 = vunpack.c.l.b16 %v2937
  %v2961 = vpack.c.b16 %v2954, %v2953
  %v2962 = vpack.c.b16 %v2956, %v2955
  %v2963 = vpack.c.b16 %v2958, %v2957
  %v2964 = vpack.c.b16 %v2960, %v2959
  %2970 = vrot.lane.b32.xlu0 %v2944, 64
  %v2971 = vpop.permute.xlu0 %2970
  %v2974 = vsel %vm180, %v2938, 0
  %v2977 = vsel %vm180, %v2939, 0
  %2979 = vmatprep.subr.bf16.mxu0 0
  %2980 = vmatpush1.bf16.msra.mxu0 0
  %2981 = vmatprep.subr.bf16.mxu0 0
  %2982 = vmatpush1.bf16.msra.mxu0 0
  %2983 = vmatprep.subr.bf16.mxu0 0
  %2984 = vmatpush1.bf16.msra.mxu0 0
  %2985 = vmatprep.subr.bf16.mxu0 0
  %2986 = vmatpush1.bf16.msra.mxu0 0
  %2987 = vmatprep.subr.bf16.mxu0 0
  %2988 = vmatpush1.bf16.msra.mxu0 %v2964
  %2989 = vmatprep.subr.bf16.mxu0 0
  %2990 = vmatpush1.bf16.msra.mxu0 %v2963
  %2991 = vmatprep.subr.bf16.mxu0 0
  %2992 = vmatpush1.bf16.msra.mxu0 %v2962
  %2993 = vmatprep.subr.bf16.mxu0 0
  %2994 = vmatpush1.bf16.msra.mxu0 %v2961
  %2995 = vmatprep.subr.bf16.mxu0 0
  %2996 = vmatpush2.bf16.msra.mxu0 0
  %2997 = vmatprep.subr.bf16.mxu0 0
  %2998 = vmatpush2.bf16.msra.mxu0 0
  %2999 = vmatprep.subr.bf16.mxu0 0
  %3000 = vmatpush2.bf16.msra.mxu0 0
  %3001 = vmatprep.subr.bf16.mxu0 0
  %3002 = vmatpush2.bf16.msra.mxu0 0
  %3003 = vmatprep.subr.bf16.mxu0 0
  %3004 = vmatpush2.bf16.msra.mxu0 0
  %3005 = vmatprep.subr.bf16.mxu0 0
  %3006 = vmatpush2.bf16.msra.mxu0 0
  %3007 = vmatprep.subr.bf16.mxu0 0
  %3008 = vmatpush2.bf16.msra.mxu0 0
  %3009 = vmatprep.subr.bf16.mxu0 0
  %3010 = vmatpush2.bf16.msra.mxu0 0
  %3011 = vmatprep.mubr.bf16.mxu0 0
  %3012 = vmatmul.mubr.bf16.gmra.mxu0 %v2974
  %v3013 = vpop.f32.mrf.mxu0
  %v3014 = vadd.f32 %v2971, %v3013
  %v3015 = vpop.f32.mrf.mxu0
  %v3016 = vpop.f32.mrf.mxu0
  %v3017 = vadd.f32 %v2971, %v3016
  %v3018 = vpop.f32.mrf.mxu0
  %3019 = vmatprep.mubr.bf16.mxu0 0
  %3020 = vmatmul.mubr.bf16.gmra.mxu0 %v2977
  %v3021 = vpop.f32.mrf.mxu0
  %v3022 = vadd.f32 %v2971, %v3021
  %v3023 = vpop.f32.mrf.mxu0
  %v3024 = vpop.f32.mrf.mxu0
  %v3025 = vadd.f32 %v2971, %v3024
  %v3026 = vpop.f32.mrf.mxu0
  %3027 = vdwg.mxu0
  %v3028 = vadd.f32 %v2107, %v3014
  %v3029 = vadd.f32 %v2108, %v3017
  %v3030 = vadd.f32 %v2109, %v3022
  %v3031 = vadd.f32 %v2110, %v3025
  %v3032 = vld [vmem:[%s2 + $0x28] sm:$0x1]
  %v3033 = vsel %vm180, %v3028, 0.0
  %3034 = vadd.xlane.f32.xlu0 %v3033
  %v3035 = vpop.xlane.xlu0 %3034
  %v3036 = vsel %vm180, %v3029, 0.0
  %3037 = vadd.xlane.f32.xlu0 %v3036
  %v3038 = vpop.xlane.xlu0 %3037
  %v3039 = vsel %vm180, %v3030, 0.0
  %3040 = vadd.xlane.f32.xlu0 %v3039
  %v3041 = vpop.xlane.xlu0 %3040
  %v3042 = vsel %vm190, %v3031, 0.0
  %3043 = vadd.xlane.f32.xlu0 %v3042
  %v3044 = vpop.xlane.xlu0 %3043
  %v3045 = vmul.f32 %v3035, %v194
  %v3046 = vmul.f32 %v3038, %v194
  %v3047 = vmul.f32 %v3041, %v194
  %v3048 = vmul.f32 %v3044, %v194
  %v3049 = vsub.f32 %v3028, %v3045
  %v3050 = vsub.f32 %v3029, %v3046
  %v3051 = vsub.f32 %v3030, %v3047
  %v3052 = vsub.f32 %v3031, %v3048
  %v3053 = vmul.f32 %v3049, %v3049
  %v3054 = vmul.f32 %v3050, %v3050
  %v3055 = vmul.f32 %v3051, %v3051
  %v3056 = vmul.f32 %v3052, %v3052
  %v3057 = vsel %vm180, %v3053, 0.0
  %3058 = vadd.xlane.f32.xlu0 %v3057
  %v3059 = vpop.xlane.xlu0 %3058
  %v3060 = vsel %vm180, %v3054, 0.0
  %3061 = vadd.xlane.f32.xlu0 %v3060
  %v3062 = vpop.xlane.xlu0 %3061
  %v3063 = vsel %vm180, %v3055, 0.0
  %3064 = vadd.xlane.f32.xlu0 %v3063
  %v3065 = vpop.xlane.xlu0 %3064
  %v3066 = vsel %vm190, %v3056, 0.0
  %3067 = vadd.xlane.f32.xlu0 %v3066
  %v3068 = vpop.xlane.xlu0 %3067
  %v3069 = vmul.f32 %v3059, %v194
  %v3070 = vmul.f32 %v3062, %v194
  %v3071 = vmul.f32 %v3065, %v194
  %v3072 = vmul.f32 %v3068, %v194
  %v3073 = vadd.f32 %v3069, 1e-12
  %v3074 = vadd.f32 %v3070, 1e-12
  %v3075 = vadd.f32 %v3071, 1e-12
  %v3076 = vadd.f32 %v3072, 1e-12
  %v3077 = vrsqrt.pop %v3073
  %v3078 = vrsqrt.pop %v3074
  %v3079 = vrsqrt.pop %v3075
  %v3080 = vrsqrt.pop %v3076
  %v3081 = vmul.f32 %v3049, %v3077
  %v3082 = vmul.f32 %v3050, %v3078
  %v3083 = vmul.f32 %v3051, %v3079
  %v3084 = vmul.f32 %v3052, %v3080
  %v3085 = vlaneseq
  %v3086 = vshrl.u32 %v3085, 7
  %v3087 = vsub.s32 0, %v3086
  %v3088 = vrot.slane %v3032, %v3087
  %v3089 = vmul.f32 %v3081, %v3088
  %v3090 = vmul.f32 %v3082, %v3088
  %v3091 = vmul.f32 %v3083, %v3088
  %v3092 = vmul.f32 %v3084, %v3088
  %3094 = vrot.lane.b32.xlu0 %v3088, 64
  %v3095 = vpop.permute.xlu0 %3094
  %v3097 = vadd.f32 %v3089, %v3095
  %v3098 = vadd.f32 %v3090, %v3095
  %v3099 = vadd.f32 %v3091, %v3095
  %v3100 = vadd.f32 %v3092, %v3095
  %s3101 = scalar_lea.vmem %s5, 32
  %v3102 = vld [vmem:[%s3101] sm:$0xf]
  %v3103 = vld [vmem:[%s3101 + $0x4] sm:$0xf]
  %v3104 = vld [vmem:[%s3101 + $0x8] sm:$0xf]
  %v3105 = vld [vmem:[%s3101 + $0xc] sm:$0xf]
  %v3106 = vld [vmem:[%s3101 + $0x10] sm:$0xf]
  %v3107 = vld [vmem:[%s3101 + $0x14] sm:$0xf]
  %v3108 = vld [vmem:[%s3101 + $0x18] sm:$0xf]
  %v3109 = vld [vmem:[%s3101 + $0x1c] sm:$0xf]
  %v3110 = vpack.c.bf16 %v3098, %v3097
  %v3111 = vpack.c.bf16 %v3100, %v3099
  %v3112 = vld [vmem:[%s2 + $0x29] sm:$0x1]
  %v3113 = vlaneseq
  %v3114 = vshrl.u32 %v3113, 7
  %v3115 = vsub.s32 0, %v3114
  %v3116 = vrot.slane %v3112, %v3115
  %v3125 = vunpack.c.l.b16 %v3102
  %v3126 = vunpack.c.l.b16 %v3103
  %v3127 = vunpack.c.l.b16 %v3104
  %v3128 = vunpack.c.l.b16 %v3105
  %v3129 = vunpack.c.l.b16 %v3106
  %v3130 = vunpack.c.l.b16 %v3107
  %v3131 = vunpack.c.l.b16 %v3108
  %v3132 = vunpack.c.l.b16 %v3109
  %v3133 = vpack.c.b16 %v3126, %v3125
  %v3134 = vpack.c.b16 %v3128, %v3127
  %v3135 = vpack.c.b16 %v3130, %v3129
  %v3136 = vpack.c.b16 %v3132, %v3131
  %v3142 = vsel %vm180, %v3110, 0
  %v3145 = vsel %vm180, %v3111, 0
  %3147 = vmatprep.subr.bf16.mxu0 0
  %3148 = vmatpush1.bf16.msra.mxu0 0
  %3149 = vmatprep.subr.bf16.mxu0 0
  %3150 = vmatpush1.bf16.msra.mxu0 0
  %3151 = vmatprep.subr.bf16.mxu0 0
  %3152 = vmatpush1.bf16.msra.mxu0 0
  %3153 = vmatprep.subr.bf16.mxu0 0
  %3154 = vmatpush1.bf16.msra.mxu0 0
  %3155 = vmatprep.subr.bf16.mxu0 0
  %3156 = vmatpush1.bf16.msra.mxu0 %v3136
  %3157 = vmatprep.subr.bf16.mxu0 0
  %3158 = vmatpush1.bf16.msra.mxu0 %v3135
  %3159 = vmatprep.subr.bf16.mxu0 0
  %3160 = vmatpush1.bf16.msra.mxu0 %v3134
  %3161 = vmatprep.subr.bf16.mxu0 0
  %3162 = vmatpush1.bf16.msra.mxu0 %v3133
  %3163 = vmatprep.subr.bf16.mxu0 0
  %3164 = vmatpush2.bf16.msra.mxu0 0
  %3165 = vmatprep.subr.bf16.mxu0 0
  %3166 = vmatpush2.bf16.msra.mxu0 0
  %3167 = vmatprep.subr.bf16.mxu0 0
  %3168 = vmatpush2.bf16.msra.mxu0 0
  %3169 = vmatprep.subr.bf16.mxu0 0
  %3170 = vmatpush2.bf16.msra.mxu0 0
  %3171 = vmatprep.subr.bf16.mxu0 0
  %3172 = vmatpush2.bf16.msra.mxu0 0
  %3173 = vmatprep.subr.bf16.mxu0 0
  %3174 = vmatpush2.bf16.msra.mxu0 0
  %3175 = vmatprep.subr.bf16.mxu0 0
  %3176 = vmatpush2.bf16.msra.mxu0 0
  %3177 = vmatprep.subr.bf16.mxu0 0
  %3178 = vmatpush2.bf16.msra.mxu0 0
  %3179 = vmatprep.mubr.bf16.mxu0 0
  %3180 = vmatmul.mubr.bf16.gmra.mxu0 %v3142
  %v3181 = vpop.f32.mrf.mxu0
  %v3182 = vadd.f32 %v3116, %v3181
  %v3183 = vpop.f32.mrf.mxu0
  %v3184 = vpop.f32.mrf.mxu0
  %v3185 = vadd.f32 %v3116, %v3184
  %v3186 = vpop.f32.mrf.mxu0
  %3187 = vmatprep.mubr.bf16.mxu0 0
  %3188 = vmatmul.mubr.bf16.gmra.mxu0 %v3145
  %v3189 = vpop.f32.mrf.mxu0
  %v3190 = vadd.f32 %v3116, %v3189
  %v3191 = vpop.f32.mrf.mxu0
  %v3192 = vpop.f32.mrf.mxu0
  %v3193 = vadd.f32 %v3116, %v3192
  %v3194 = vpop.f32.mrf.mxu0
  %3195 = vdwg.mxu0
  %v3196 = vmul.f32 %v3182, 0.5
  %v3197 = vmul.f32 %v3185, 0.5
  %v3198 = vmul.f32 %v3190, 0.5
  %v3199 = vmul.f32 %v3193, 0.5
  %v3200 = vmul.f32 %v3182, 0.044715
  %v3201 = vmul.f32 %v3185, 0.044715
  %v3202 = vmul.f32 %v3190, 0.044715
  %v3203 = vmul.f32 %v3193, 0.044715
  %v3204 = vmul.f32 %v3200, %v3182
  %v3205 = vmul.f32 %v3201, %v3185
  %v3206 = vmul.f32 %v3202, %v3190
  %v3207 = vmul.f32 %v3203, %v3193
  %v3208 = vmul.f32 %v3204, %v3182
  %v3209 = vmul.f32 %v3205, %v3185
  %v3210 = vmul.f32 %v3206, %v3190
  %v3211 = vmul.f32 %v3207, %v3193
  %v3212 = vadd.f32 %v3182, %v3208
  %v3213 = vadd.f32 %v3185, %v3209
  %v3214 = vadd.f32 %v3190, %v3210
  %v3215 = vadd.f32 %v3193, %v3211
  %v3216 = vmul.f32 %v3212, 0.7978846
  %v3217 = vmul.f32 %v3213, 0.7978846
  %v3218 = vmul.f32 %v3214, 0.7978846
  %v3219 = vmul.f32 %v3215, 0.7978846
  %v3220 = vtanh.pop %v3216
  %v3221 = vtanh.pop %v3217
  %v3222 = vtanh.pop %v3218
  %v3223 = vtanh.pop %v3219
  %v3224 = vadd.f32 %v3220, 1.0
  %v3225 = vadd.f32 %v3221, 1.0
  %v3226 = vadd.f32 %v3222, 1.0
  %v3227 = vadd.f32 %v3223, 1.0
  %v3228 = vmul.f32 %v3196, %v3224
  %v3229 = vmul.f32 %v3197, %v3225
  %v3230 = vmul.f32 %v3198, %v3226
  %v3231 = vmul.f32 %v3199, %v3227
  %s3232 = scalar_lea.vmem %s6, 64
  %v3233 = vld [vmem:[%s3232] sm:$0xf]
  %v3234 = vld [vmem:[%s3232 + $0x4] sm:$0xf]
  %v3235 = vld [vmem:[%s3232 + $0x8] sm:$0xf]
  %v3236 = vld [vmem:[%s3232 + $0xc] sm:$0xf]
  %v3237 = vld [vmem:[%s3232 + $0x10] sm:$0xf]
  %v3238 = vld [vmem:[%s3232 + $0x14] sm:$0xf]
  %v3239 = vld [vmem:[%s3232 + $0x18] sm:$0xf]
  %v3240 = vld [vmem:[%s3232 + $0x1c] sm:$0xf]
  %v3241 = vld [vmem:[%s3232 + $0x20] sm:$0xf]
  %v3242 = vld [vmem:[%s3232 + $0x24] sm:$0xf]
  %v3243 = vld [vmem:[%s3232 + $0x28] sm:$0xf]
  %v3244 = vld [vmem:[%s3232 + $0x2c] sm:$0xf]
  %v3245 = vld [vmem:[%s3232 + $0x30] sm:$0xf]
  %v3246 = vld [vmem:[%s3232 + $0x34] sm:$0xf]
  %v3247 = vld [vmem:[%s3232 + $0x38] sm:$0xf]
  %v3248 = vld [vmem:[%s3232 + $0x3c] sm:$0xf]
  %v3249 = vpack.c.bf16 %v3229, %v3228
  %v3250 = vpack.c.bf16 %v3231, %v3230
  %v3251 = vld [vmem:[%s2 + $0x2b] sm:$0x1]
  %v3252 = vlaneseq
  %v3253 = vshrl.u32 %v3252, 7
  %v3254 = vsub.s32 0, %v3253
  %v3255 = vrot.slane %v3251, %v3254
  %v3272 = vunpack.c.l.b16 %v3233
  %v3273 = vunpack.c.l.b16 %v3234
  %v3274 = vunpack.c.l.b16 %v3235
  %v3275 = vunpack.c.l.b16 %v3236
  %v3276 = vunpack.c.l.b16 %v3237
  %v3277 = vunpack.c.l.b16 %v3238
  %v3278 = vunpack.c.l.b16 %v3239
  %v3279 = vunpack.c.l.b16 %v3240
  %v3280 = vunpack.c.l.b16 %v3241
  %v3281 = vunpack.c.l.b16 %v3242
  %v3282 = vunpack.c.l.b16 %v3243
  %v3283 = vunpack.c.l.b16 %v3244
  %v3284 = vunpack.c.l.b16 %v3245
  %v3285 = vunpack.c.l.b16 %v3246
  %v3286 = vunpack.c.l.b16 %v3247
  %v3287 = vunpack.c.l.b16 %v3248
  %v3288 = vpack.c.b16 %v3273, %v3272
  %v3289 = vpack.c.b16 %v3275, %v3274
  %v3290 = vpack.c.b16 %v3277, %v3276
  %v3291 = vpack.c.b16 %v3279, %v3278
  %v3292 = vpack.c.b16 %v3281, %v3280
  %v3293 = vpack.c.b16 %v3283, %v3282
  %v3294 = vpack.c.b16 %v3285, %v3284
  %v3295 = vpack.c.b16 %v3287, %v3286
  %3304 = vmatprep.subr.bf16.mxu0 0
  %3305 = vmatpush1.bf16.msra.mxu0 %v3295
  %3306 = vmatprep.subr.bf16.mxu0 0
  %3307 = vmatpush1.bf16.msra.mxu0 %v3294
  %3308 = vmatprep.subr.bf16.mxu0 0
  %3309 = vmatpush1.bf16.msra.mxu0 %v3293
  %3310 = vmatprep.subr.bf16.mxu0 0
  %3311 = vmatpush1.bf16.msra.mxu0 %v3292
  %3312 = vmatprep.subr.bf16.mxu0 0
  %3313 = vmatpush1.bf16.msra.mxu0 %v3291
  %3314 = vmatprep.subr.bf16.mxu0 0
  %3315 = vmatpush1.bf16.msra.mxu0 %v3290
  %3316 = vmatprep.subr.bf16.mxu0 0
  %3317 = vmatpush1.bf16.msra.mxu0 %v3289
  %3318 = vmatprep.subr.bf16.mxu0 0
  %3319 = vmatpush1.bf16.msra.mxu0 %v3288
  %3320 = vmatprep.subr.bf16.mxu0 0
  %3321 = vmatpush2.bf16.msra.mxu0 0
  %3322 = vmatprep.subr.bf16.mxu0 0
  %3323 = vmatpush2.bf16.msra.mxu0 0
  %3324 = vmatprep.subr.bf16.mxu0 0
  %3325 = vmatpush2.bf16.msra.mxu0 0
  %3326 = vmatprep.subr.bf16.mxu0 0
  %3327 = vmatpush2.bf16.msra.mxu0 0
  %3328 = vmatprep.subr.bf16.mxu0 0
  %3329 = vmatpush2.bf16.msra.mxu0 0
  %3330 = vmatprep.subr.bf16.mxu0 0
  %3331 = vmatpush2.bf16.msra.mxu0 0
  %3332 = vmatprep.subr.bf16.mxu0 0
  %3333 = vmatpush2.bf16.msra.mxu0 0
  %3334 = vmatprep.subr.bf16.mxu0 0
  %3335 = vmatpush2.bf16.msra.mxu0 0
  %3336 = vmatprep.mubr.bf16.mxu0 0
  %3337 = vmatmul.mubr.bf16.gmra.mxu0 %v3249
  %v3338 = vpop.f32.mrf.mxu0
  %v3339 = vadd.f32 %v3255, %v3338
  %v3340 = vpop.f32.mrf.mxu0
  %v3341 = vpop.f32.mrf.mxu0
  %v3342 = vadd.f32 %v3255, %v3341
  %v3343 = vpop.f32.mrf.mxu0
  %3344 = vmatprep.mubr.bf16.mxu0 0
  %3345 = vmatmul.mubr.bf16.gmra.mxu0 %v3250
  %v3346 = vpop.f32.mrf.mxu0
  %v3347 = vadd.f32 %v3255, %v3346
  %v3348 = vpop.f32.mrf.mxu0
  %v3349 = vpop.f32.mrf.mxu0
  %v3350 = vadd.f32 %v3255, %v3349
  %v3351 = vpop.f32.mrf.mxu0
  %3352 = vdwg.mxu0
  %v3353 = vadd.f32 %v3097, %v3339
  %v3354 = vadd.f32 %v3098, %v3342
  %v3355 = vadd.f32 %v3099, %v3347
  %v3356 = vadd.f32 %v3100, %v3350
  %v3357 = vld [vmem:[%s2 + $0x2a] sm:$0x1]
  %v3358 = vsel %vm180, %v3353, 0.0
  %3359 = vadd.xlane.f32.xlu0 %v3358
  %v3360 = vpop.xlane.xlu0 %3359
  %v3361 = vsel %vm180, %v3354, 0.0
  %3362 = vadd.xlane.f32.xlu0 %v3361
  %v3363 = vpop.xlane.xlu0 %3362
  %v3364 = vsel %vm180, %v3355, 0.0
  %3365 = vadd.xlane.f32.xlu0 %v3364
  %v3366 = vpop.xlane.xlu0 %3365
  %v3367 = vsel %vm190, %v3356, 0.0
  %3368 = vadd.xlane.f32.xlu0 %v3367
  %v3369 = vpop.xlane.xlu0 %3368
  %v3370 = vmul.f32 %v3360, %v194
  %v3371 = vmul.f32 %v3363, %v194
  %v3372 = vmul.f32 %v3366, %v194
  %v3373 = vmul.f32 %v3369, %v194
  %v3374 = vsub.f32 %v3353, %v3370
  %v3375 = vsub.f32 %v3354, %v3371
  %v3376 = vsub.f32 %v3355, %v3372
  %v3377 = vsub.f32 %v3356, %v3373
  %v3378 = vmul.f32 %v3374, %v3374
  %v3379 = vmul.f32 %v3375, %v3375
  %v3380 = vmul.f32 %v3376, %v3376
  %v3381 = vmul.f32 %v3377, %v3377
  %v3382 = vsel %vm180, %v3378, 0.0
  %3383 = vadd.xlane.f32.xlu0 %v3382
  %v3384 = vpop.xlane.xlu0 %3383
  %v3385 = vsel %vm180, %v3379, 0.0
  %3386 = vadd.xlane.f32.xlu0 %v3385
  %v3387 = vpop.xlane.xlu0 %3386
  %v3388 = vsel %vm180, %v3380, 0.0
  %3389 = vadd.xlane.f32.xlu0 %v3388
  %v3390 = vpop.xlane.xlu0 %3389
  %v3391 = vsel %vm190, %v3381, 0.0
  %3392 = vadd.xlane.f32.xlu0 %v3391
  %v3393 = vpop.xlane.xlu0 %3392
  %v3394 = vmul.f32 %v3384, %v194
  %v3395 = vmul.f32 %v3387, %v194
  %v3396 = vmul.f32 %v3390, %v194
  %v3397 = vmul.f32 %v3393, %v194
  %v3398 = vadd.f32 %v3394, 1e-12
  %v3399 = vadd.f32 %v3395, 1e-12
  %v3400 = vadd.f32 %v3396, 1e-12
  %v3401 = vadd.f32 %v3397, 1e-12
  %v3402 = vrsqrt.pop %v3398
  %v3403 = vrsqrt.pop %v3399
  %v3404 = vrsqrt.pop %v3400
  %v3405 = vrsqrt.pop %v3401
  %v3406 = vmul.f32 %v3374, %v3402
  %v3407 = vmul.f32 %v3375, %v3403
  %v3408 = vmul.f32 %v3376, %v3404
  %v3409 = vmul.f32 %v3377, %v3405
  %v3410 = vlaneseq
  %v3411 = vshrl.u32 %v3410, 7
  %v3412 = vsub.s32 0, %v3411
  %v3413 = vrot.slane %v3357, %v3412
  %v3414 = vmul.f32 %v3406, %v3413
  %v3415 = vmul.f32 %v3407, %v3413
  %v3416 = vmul.f32 %v3408, %v3413
  %v3417 = vmul.f32 %v3409, %v3413
  %3419 = vrot.lane.b32.xlu0 %v3413, 64
  %v3420 = vpop.permute.xlu0 %3419
  %v3422 = vadd.f32 %v3414, %v3420
  %v3423 = vadd.f32 %v3415, %v3420
  %v3424 = vadd.f32 %v3416, %v3420
  %v3425 = vadd.f32 %v3417, %v3420
  %vm3431 = vcmask 1041408
  %v3432 = vrot.slane %v166, 6
  %v3433 = vrot.slane %v167, 6
  %v3434 = vsel %vm3431, %v3432, %v3433
  %v3435 = vrot.slane %v168, 6
  %v3436 = vsel %vm3431, %v3433, %v3435
  %v3437 = vrot.slane %v169, 6
  %v3438 = vsel %vm3431, %v3435, %v3437
  %v3439 = vrot.slane %v170, 6
  %v3440 = vsel %vm3431, %v3437, %v3439
  %3441 = vrot.lane.b32.xlu0 %v3434, 64
  %v3442 = vpop.permute.xlu0 %3441
  %3443 = vrot.lane.b32.xlu0 %v3436, 64
  %v3444 = vpop.permute.xlu0 %3443
  %3445 = vrot.lane.b32.xlu0 %v3438, 64
  %v3446 = vpop.permute.xlu0 %3445
  %3447 = vrot.lane.b32.xlu0 %v3440, 64
  %v3448 = vpop.permute.xlu0 %3447
  %v3453 = vsel %vm180, %v3422, %v3442
  %v3454 = vsel %vm180, %v3423, %v3444
  %v3455 = vsel %vm180, %v3424, %v3446
  %v3456 = vsel %vm180, %v3425, %v3448
  %3457 = vst [vmem:[%s7] sm:$0xff] %v3453
  %3458 = vst [vmem:[%s7 + $0x8] sm:$0xff] %v3454
  %3459 = vst [vmem:[%s7 + $0x10] sm:$0xff] %v3455
  %3460 = vst [vmem:[%s7 + $0x18] sm:$0x3f] %v3456
  // Predicated region
  $region30: #{bert_eeg_forward.1} parent=0 // pred_check
    _
  $region31: #{bert_eeg_forward.1} parent=0 // pred_check_branch
    %3462 = sbr.rel (0) target = $region33
  $region32: #{bert_eeg_forward.1} parent=0 // pred_region
    _
  $region33: #{bert_eeg_forward.1} parent=0 // pred_fallthru
    _
  // Predicated region
  $region34: #{bert_eeg_forward.1} parent=0 // pred_check
    _
  $region35: #{bert_eeg_forward.1} parent=0 // pred_check_branch
    %3464 = sbr.rel (0) target = $region37
  $region36: #{bert_eeg_forward.1} parent=0 // pred_region
    _
  $region37: #{bert_eeg_forward.1} parent=0 // pred_fallthru
    _

</llo_original>
